<compile_context>
chip_gen: v5e
topology: v5e:2x2
jax: 0.10.0
libtpu: 0.0.40
codegen_flags: <defaults>
</compile_context>

<pallas_src>
import functools

import jax
import jax.numpy as jnp
from jax import lax
from jax.experimental import pallas as pl
from jax.experimental.pallas import tpu as pltpu


def _make_rpn_head_kernel(TH, W, Cin, C, A, NH):
    """Per-row-tile RPN-head kernel (grid axis = B * num_row_tiles, squeezed)."""

    def kernel(x_ref, w1_ref, b1_ref, wh_ref, bh_ref, out_ref, colL_ref, colR_ref):
        # ---- width-shifted neighbour views (dx = 0 and dx = 2) ---------------
        # Zero ONLY the 1-column border (O(perimeter)); the interior of each
        # buffer is a single sublane-shifted copy. The centre tap (dx = 1)
        # needs no copy at all: its row slices are read straight from x_ref.
        zero_col = jnp.zeros((TH + 2, 1, Cin), jnp.bfloat16)
        colL_ref[:, 0:1, :] = zero_col
        colL_ref[:, 1:W, :] = x_ref[:, 0:W - 1, :]
        colR_ref[:, W - 1:W, :] = zero_col
        colR_ref[:, 0:W - 1, :] = x_ref[:, 1:W, :]

        # ---- conv1 (3x3 'SAME') as 9 accumulating K=Cin matmuls --------------
        # dy shifts are free slices along the 3rd-from-last axis; the
        # (TH, W, Cin) -> (TH*W, Cin) collapse is layout preserving, so the MXU
        # reads the shifted views directly (no 9x im2col scratch, no masked vst).
        taps = (colL_ref, x_ref, colR_ref)          # dx = 0, 1, 2
        acc = None
        for dy in range(3):
            for dx in range(3):
                lhs = taps[dx][dy:dy + TH, :, :].reshape(TH * W, Cin)
                p = jnp.dot(lhs, w1_ref[dy * 3 + dx],
                            preferred_element_type=jnp.float32)
                acc = p if acc is None else acc + p
        h = jnp.maximum(acc + b1_ref[...], 0.0)     # bias + ReLU in f32

        # ---- fused score + loc 1x1 heads, lane-padded to NH >= 128 -----------
        # wh columns: [0,A) = score, [A,5A) = loc, [5A,6A) = score (again, for
        # the in-kernel sigmoid), rest zero-pad -> one unmasked lane-dense
        # (TH*W, NH) store per grid step.
        raw = jnp.dot(h.astype(wh_ref.dtype), wh_ref[...],
                      preferred_element_type=jnp.float32) + bh_ref[...]
        lane = lax.broadcasted_iota(jnp.int32, raw.shape, 1)
        sig_band = (lane >= 5 * A) & (lane < 6 * A)
        # Sigmoid over all 128 lanes is EUP-slot filler while the MXU / stores
        # dominate; restricting it to lanes [5A,6A) would need masked lane ops.
        out_ref[...] = jnp.where(sig_band, jax.nn.sigmoid(raw), raw).astype(out_ref.dtype)

    return kernel


def prepare_rpn_head_params(w1_pt, b1, ws_pt, bs, wl_pt, bl):
    """Repack PyTorch-layout weights into the fused kernel layout.

    w1_pt: (C, Cin, 3, 3)   conv1 weight     b1: (C,)
    ws_pt: (A, C, 1, 1)     score weight     bs: (A,)
    wl_pt: (4A, C, 1, 1)    loc weight       bl: (4A,)

    Returns ((w1_taps, b1, w_head, b_head), anchor_depth) where
      w1_taps : (9, Cin, C)  bf16, tap t = dy*3 + dx
      w_head  : (C, NH)      bf16, cols [0,A)=score, [A,5A)=loc, [5A,6A)=score
      b_head  : (1, NH)      f32
    """
    C, Cin, kh, kw = w1_pt.shape
    A = ws_pt.shape[0]
    assert (kh, kw) == (3, 3)

    w1 = jnp.transpose(w1_pt, (2, 3, 1, 0)).reshape(9, Cin, C).astype(jnp.bfloat16)
    b1k = b1.reshape(1, C).astype(jnp.float32)

    ws = jnp.transpose(ws_pt[:, :, 0, 0], (1, 0))           # (C, A)
    wl = jnp.transpose(wl_pt[:, :, 0, 0], (1, 0))           # (C, 4A)
    nh = max(128, ((6 * A + 127) // 128) * 128)              # lane-dense width
    w_head = jnp.concatenate(
        [ws, wl, ws, jnp.zeros((C, nh - 6 * A), ws.dtype)], axis=1
    ).astype(jnp.bfloat16)
    b_head = jnp.concatenate(
        [bs, bl, bs, jnp.zeros((nh - 6 * A,), bs.dtype)]
    ).reshape(1, nh).astype(jnp.float32)
    return (w1, b1k, w_head, b_head), A


def _vmem_limit_bytes():
    """Scoped-VMEM limit with headroom below physical: ~56 MiB on v7x (64 MiB
    physical), 100 MiB on v5e/v6e (128 MiB physical)."""
    try:
        cap = int(pltpu.get_tpu_info().vmem_capacity_bytes)
    except Exception:
        cap = 64 << 20                        # conservative fallback (v7x-sized)
    return int(min(cap - (8 << 20), 100 << 20))


def _choose_row_tile(H, W, Cin, C, NH, vmem_limit):
    """Largest divisor of H whose per-step working set fits the VMEM budget."""
    budget = int(vmem_limit * 0.7)            # headroom for compiler temporaries
    candidates = [th for th in range(H, 0, -1)
                  if H % th == 0 and (th == H or (th * W) % 8 == 0)]
    for th in candidates:
        need = (
            2 * 2 * (th + 2) * W * Cin        # input block  (bf16, double-buffered)
            + 2 * 4 * th * W * NH             # output block (f32,  double-buffered)
            + 2 * 2 * (th + 2) * W * Cin      # colL + colR scratch (bf16)
            + 2 * 4 * th * W * C              # f32 conv acc / ReLU intermediate
            + 4 * th * W * NH                 # f32 head intermediate
            + 2 * (2 * 9 * Cin * C + 2 * C * NH + 4 * (C + NH))   # weights (x2 buf)
        )
        if need <= budget:
            return th
    return candidates[-1]                     # smallest legal tile


@functools.partial(jax.jit, static_argnames=("anchor_depth", "row_tile"))
def rpn_head_forward(x_nchw, w1, b1, w_head, b_head, anchor_depth, row_tile=None):
    """RPNHead forward. Returns (rpn_scores, rpn_boxes, raw_rpn_scores, raw_rpn_boxes)."""
    B, Cin, H, W = x_nchw.shape
    C = w1.shape[-1]
    NH = w_head.shape[-1]
    A = anchor_depth

    vmem_limit = _vmem_limit_bytes()
    TH = row_tile if row_tile is not None else _choose_row_tile(H, W, Cin, C, NH, vmem_limit)
    R = H // TH
    G = B * R

    # Single wrapper layout pass: NCHW -> NHWC, bf16 cast, 1-row top/bottom zero
    # halo, and overlapping row-tile blocking (halo duplication ~ (TH+2)/TH).
    x_nhwc = jnp.transpose(x_nchw, (0, 2, 3, 1)).astype(jnp.bfloat16)
    xp = jnp.pad(x_nhwc, ((0, 0), (1, 1), (0, 0), (0, 0)))
    x_blk = jnp.stack([xp[:, r * TH:r * TH + TH + 2] for r in range(R)],
                      axis=1).reshape(G, TH + 2, W, Cin)

    kernel = _make_rpn_head_kernel(TH, W, Cin, C, A, NH)

    grid_spec = pltpu.PrefetchScalarGridSpec(
        num_scalar_prefetch=0,
        grid=(G,),
        in_specs=[
            pl.BlockSpec((pl.Squeezed(), TH + 2, W, Cin), lambda g: (g, 0, 0, 0)),
            pl.BlockSpec((9, Cin, C), lambda g: (0, 0, 0)),
            pl.BlockSpec((1, C), lambda g: (0, 0)),
            pl.BlockSpec((C, NH), lambda g: (0, 0)),
            pl.BlockSpec((1, NH), lambda g: (0, 0)),
        ],
        out_specs=pl.BlockSpec((pl.Squeezed(), TH * W, NH), lambda g: (g, 0, 0)),
        scratch_shapes=[
            pltpu.VMEM((TH + 2, W, Cin), jnp.bfloat16),   # left-neighbour view (dx=0)
            pltpu.VMEM((TH + 2, W, Cin), jnp.bfloat16),   # right-neighbour view (dx=2)
        ],
    )

    out = pl.pallas_call(
        kernel,
        out_shape=jax.ShapeDtypeStruct((G, TH * W, NH), jnp.float32),
        grid_spec=grid_spec,
        compiler_params=pltpu.CompilerParams(
            dimension_semantics=("parallel",),
            vmem_limit_bytes=vmem_limit),
    )(x_blk, w1, b1, w_head, b_head)

    # Row blocks are contiguous, so this is a pure reshape + cheap column slices.
    out = out.reshape(B, H * W, NH)
    raw_rpn_scores = out[:, :, 0:A].reshape(B, H * W * A, 1)
    raw_rpn_boxes = out[:, :, A:5 * A].reshape(B, H * W * A, 4)
    rpn_scores = out[:, :, 5 * A:6 * A].reshape(B, H * W * A, 1)
    rpn_boxes = raw_rpn_boxes  # TODO(synk): RPNProposal decode/clip + box_nms not translated
    return rpn_scores, rpn_boxes, raw_rpn_scores, raw_rpn_boxes


def _reference(x_nchw, w1_pt, b1, ws_pt, bs, wl_pt, bl):
    """Pure-JAX f32 reference of the PyTorch module's math."""
    dn = ("NCHW", "OIHW", "NCHW")
    h = lax.conv_general_dilated(x_nchw, w1_pt, (1, 1), "SAME",
                                 dimension_numbers=dn)
    h = jnp.maximum(h + b1[None, :, None, None], 0.0)
    s = lax.conv_general_dilated(h, ws_pt, (1, 1), "VALID",
                                 dimension_numbers=dn) + bs[None, :, None, None]
    l = lax.conv_general_dilated(h, wl_pt, (1, 1), "VALID",
                                 dimension_numbers=dn) + bl[None, :, None, None]
    B = x_nchw.shape[0]
    raw_s = jnp.transpose(s, (0, 2, 3, 1)).reshape(B, -1, 1)
    raw_b = jnp.transpose(l, (0, 2, 3, 1)).reshape(B, -1, 4)
    return jax.nn.sigmoid(raw_s), raw_b, raw_s, raw_b


if __name__ == "__main__":
    # Small shapes consistent with the module: in_channels=16, channels=32,
    # anchor_depth = len(scales)*len(ratios) = 9, feature map 16x16, batch 2.
    B, Cin, C, H, W = 2, 16, 32, 16, 16
    A = 9

    key = jax.random.PRNGKey(0)
    kx, k1, k2, k3, k4, k5, k6 = jax.random.split(key, 7)

    x = jax.random.normal(kx, (B, Cin, H, W), jnp.float32)

    # PyTorch-layout parameters (Conv2d weights are (Cout, Cin, kh, kw)).
    w1_pt = 0.1 * jax.random.normal(k1, (C, Cin, 3, 3), jnp.float32)
    b1_pt = 0.1 * jax.random.normal(k2, (C,), jnp.float32)
    ws_pt = 0.1 * jax.random.normal(k3, (A, C, 1, 1), jnp.float32)
    bs_pt = 0.1 * jax.random.normal(k4, (A,), jnp.float32)
    wl_pt = 0.1 * jax.random.normal(k5, (A * 4, C, 1, 1), jnp.float32)
    bl_pt = 0.1 * jax.random.normal(k6, (A * 4,), jnp.float32)

    params, anchor_depth = prepare_rpn_head_params(
        w1_pt, b1_pt, ws_pt, bs_pt, wl_pt, bl_pt)
    ref = _reference(x, w1_pt, b1_pt, ws_pt, bs_pt, wl_pt, bl_pt)

    # Run twice: auto-sized row tile (whole image per step at this toy shape)
    # and an explicit TH=8 run to exercise the halo'd row-tiled path (R=2).
    # Kernel feeds the MXU with bf16 operands, hence the tolerance.
    for row_tile in (None, 8):
        outs = jax.block_until_ready(
            rpn_head_forward(x, *params, anchor_depth=anchor_depth, row_tile=row_tile))
        for got, want in zip(outs, ref):
            assert got.shape == want.shape, (got.shape, want.shape)
            assert jnp.allclose(got, want, atol=3e-2, rtol=3e-2), \
                (row_tile, float(jnp.max(jnp.abs(got - want))))

    print("KERNEL_OK")
</pallas_src>

<mosaic_0001>
module attributes {stable_mosaic.version = 11 : i64} {
  func.func @kernel(%arg0: i32, %arg1: memref<1x18x16x16xbf16, #tpu.memory_space<vmem>>, %arg2: memref<9x16x32xbf16, #tpu.memory_space<vmem>>, %arg3: memref<1x32xf32, #tpu.memory_space<vmem>>, %arg4: memref<32x128xbf16, #tpu.memory_space<vmem>>, %arg5: memref<1x128xf32, #tpu.memory_space<vmem>>, %arg6: memref<1x256x128xf32, #tpu.memory_space<vmem>>, %arg7: memref<18x16x16xbf16, #tpu.memory_space<vmem>>, %arg8: memref<18x16x16xbf16, #tpu.memory_space<vmem>>) attributes {dimension_semantics = [#tpu.dimension_semantics<parallel>], iteration_bounds = array<i64: 2>, scalar_prefetch = 0 : i64, scratch_operands = 2 : i64, tpu.core_type = #tpu.core_type<tc>, window_params = [{transform_indices = @transform_0, window_bounds = array<i64: 1, 18, 16, 16>}, {pipeline_mode = #tpu.pipeline_mode<synchronous>, transform_indices = @transform_1, window_bounds = array<i64: 9, 16, 32>}, {pipeline_mode = #tpu.pipeline_mode<synchronous>, transform_indices = @transform_2, window_bounds = array<i64: 1, 32>}, {pipeline_mode = #tpu.pipeline_mode<synchronous>, transform_indices = @transform_3, window_bounds = array<i64: 32, 128>}, {pipeline_mode = #tpu.pipeline_mode<synchronous>, transform_indices = @transform_4, window_bounds = array<i64: 1, 128>}, {transform_indices = @transform_5, window_bounds = array<i64: 1, 256, 128>}]} {
    %cst = arith.constant 0.000000e+00 : bf16
    %0 = vector.broadcast %cst : bf16 to vector<18x1x16xbf16>
    %c0 = arith.constant 0 : index
    %c0_0 = arith.constant 0 : index
    %c0_1 = arith.constant 0 : index
    %1 = vector.load %arg7[%c0, %c0_0, %c0_1] : memref<18x16x16xbf16, #tpu.memory_space<vmem>>, vector<18x1x16xbf16>
    tpu.vector_store %arg7[%c0, %c0_0, %c0_1], %0 {strides = array<i32>} : memref<18x16x16xbf16, #tpu.memory_space<vmem>>, vector<18x1x16xbf16>,
    %c0_2 = arith.constant 0 : index
    %c0_3 = arith.constant 0 : index
    %c0_4 = arith.constant 0 : index
    %c0_5 = arith.constant 0 : index
    %2 = vector.load %arg1[%c0_2, %c0_3, %c0_4, %c0_5] : memref<1x18x16x16xbf16, #tpu.memory_space<vmem>>, vector<1x18x15x16xbf16>
    %3 = vector.shape_cast %2 : vector<1x18x15x16xbf16> to vector<18x15x16xbf16>
    %c0_6 = arith.constant 0 : index
    %c1 = arith.constant 1 : index
    %c0_7 = arith.constant 0 : index
    %4 = vector.load %arg7[%c0_6, %c1, %c0_7] : memref<18x16x16xbf16, #tpu.memory_space<vmem>>, vector<18x15x16xbf16>
    tpu.vector_store %arg7[%c0_6, %c1, %c0_7], %3 {strides = array<i32>} : memref<18x16x16xbf16, #tpu.memory_space<vmem>>, vector<18x15x16xbf16>,
    %c0_8 = arith.constant 0 : index
    %c15 = arith.constant 15 : index
    %c0_9 = arith.constant 0 : index
    %5 = vector.load %arg8[%c0_8, %c15, %c0_9] : memref<18x16x16xbf16, #tpu.memory_space<vmem>>, vector<18x1x16xbf16>
    tpu.vector_store %arg8[%c0_8, %c15, %c0_9], %0 {strides = array<i32>} : memref<18x16x16xbf16, #tpu.memory_space<vmem>>, vector<18x1x16xbf16>,
    %c0_10 = arith.constant 0 : index
    %c0_11 = arith.constant 0 : index
    %c1_12 = arith.constant 1 : index
    %c0_13 = arith.constant 0 : index
    %6 = vector.load %arg1[%c0_10, %c0_11, %c1_12, %c0_13] : memref<1x18x16x16xbf16, #tpu.memory_space<vmem>>, vector<1x18x15x16xbf16>
    %7 = vector.shape_cast %6 : vector<1x18x15x16xbf16> to vector<18x15x16xbf16>
    %c0_14 = arith.constant 0 : index
    %c0_15 = arith.constant 0 : index
    %c0_16 = arith.constant 0 : index
    %8 = vector.load %arg8[%c0_14, %c0_15, %c0_16] : memref<18x16x16xbf16, #tpu.memory_space<vmem>>, vector<18x15x16xbf16>
    tpu.vector_store %arg8[%c0_14, %c0_15, %c0_16], %7 {strides = array<i32>} : memref<18x16x16xbf16, #tpu.memory_space<vmem>>, vector<18x15x16xbf16>,
    %c0_17 = arith.constant 0 : index
    %c0_18 = arith.constant 0 : index
    %c0_19 = arith.constant 0 : index
    %9 = vector.load %arg7[%c0_17, %c0_18, %c0_19] : memref<18x16x16xbf16, #tpu.memory_space<vmem>>, vector<16x16x16xbf16>
    %10 = vector.shape_cast %9 : vector<16x16x16xbf16> to vector<256x16xbf16>
    %c0_20 = arith.constant 0 : index
    %c0_21 = arith.constant 0 : index
    %c0_22 = arith.constant 0 : index
    %11 = vector.load %arg2[%c0_20, %c0_21, %c0_22] : memref<9x16x32xbf16, #tpu.memory_space<vmem>>, vector<1x16x32xbf16>
    %12 = vector.shape_cast %11 : vector<1x16x32xbf16> to vector<16x32xbf16>
    %cst_23 = arith.constant dense<0.000000e+00> : vector<256x32xf32>
    %13 = tpu.matmul %10, %12, %cst_23 {dimension_numbers = #tpu.dot_dimension_numbers<[1], [0], [0], [1], [0, 0, 1, 1], [], []>} : vector<256x16xbf16>, vector<16x32xbf16>, vector<256x32xf32> -> vector<256x32xf32>
    %c0_24 = arith.constant 0 : index
    %c0_25 = arith.constant 0 : index
    %c0_26 = arith.constant 0 : index
    %c0_27 = arith.constant 0 : index
    %14 = vector.load %arg1[%c0_24, %c0_25, %c0_26, %c0_27] : memref<1x18x16x16xbf16, #tpu.memory_space<vmem>>, vector<1x16x16x16xbf16>
    %15 = vector.shape_cast %14 : vector<1x16x16x16xbf16> to vector<16x16x16xbf16>
    %16 = vector.shape_cast %15 : vector<16x16x16xbf16> to vector<256x16xbf16>
    %c1_28 = arith.constant 1 : index
    %c0_29 = arith.constant 0 : index
    %c0_30 = arith.constant 0 : index
    %17 = vector.load %arg2[%c1_28, %c0_29, %c0_30] : memref<9x16x32xbf16, #tpu.memory_space<vmem>>, vector<1x16x32xbf16>
    %18 = vector.shape_cast %17 : vector<1x16x32xbf16> to vector<16x32xbf16>
    %cst_31 = arith.constant dense<0.000000e+00> : vector<256x32xf32>
    %19 = tpu.matmul %16, %18, %cst_31 {dimension_numbers = #tpu.dot_dimension_numbers<[1], [0], [0], [1], [0, 0, 1, 1], [], []>} : vector<256x16xbf16>, vector<16x32xbf16>, vector<256x32xf32> -> vector<256x32xf32>
    %20 = arith.addf %13, %19 : vector<256x32xf32>
    %c0_32 = arith.constant 0 : index
    %c0_33 = arith.constant 0 : index
    %c0_34 = arith.constant 0 : index
    %21 = vector.load %arg8[%c0_32, %c0_33, %c0_34] : memref<18x16x16xbf16, #tpu.memory_space<vmem>>, vector<16x16x16xbf16>
    %22 = vector.shape_cast %21 : vector<16x16x16xbf16> to vector<256x16xbf16>
    %c2 = arith.constant 2 : index
    %c0_35 = arith.constant 0 : index
    %c0_36 = arith.constant 0 : index
    %23 = vector.load %arg2[%c2, %c0_35, %c0_36] : memref<9x16x32xbf16, #tpu.memory_space<vmem>>, vector<1x16x32xbf16>
    %24 = vector.shape_cast %23 : vector<1x16x32xbf16> to vector<16x32xbf16>
    %cst_37 = arith.constant dense<0.000000e+00> : vector<256x32xf32>
    %25 = tpu.matmul %22, %24, %cst_37 {dimension_numbers = #tpu.dot_dimension_numbers<[1], [0], [0], [1], [0, 0, 1, 1], [], []>} : vector<256x16xbf16>, vector<16x32xbf16>, vector<256x32xf32> -> vector<256x32xf32>
    %26 = arith.addf %20, %25 : vector<256x32xf32>
    %c1_38 = arith.constant 1 : index
    %c0_39 = arith.constant 0 : index
    %c0_40 = arith.constant 0 : index
    %27 = vector.load %arg7[%c1_38, %c0_39, %c0_40] : memref<18x16x16xbf16, #tpu.memory_space<vmem>>, vector<16x16x16xbf16>
    %28 = vector.shape_cast %27 : vector<16x16x16xbf16> to vector<256x16xbf16>
    %c3 = arith.constant 3 : index
    %c0_41 = arith.constant 0 : index
    %c0_42 = arith.constant 0 : index
    %29 = vector.load %arg2[%c3, %c0_41, %c0_42] : memref<9x16x32xbf16, #tpu.memory_space<vmem>>, vector<1x16x32xbf16>
    %30 = vector.shape_cast %29 : vector<1x16x32xbf16> to vector<16x32xbf16>
    %cst_43 = arith.constant dense<0.000000e+00> : vector<256x32xf32>
    %31 = tpu.matmul %28, %30, %cst_43 {dimension_numbers = #tpu.dot_dimension_numbers<[1], [0], [0], [1], [0, 0, 1, 1], [], []>} : vector<256x16xbf16>, vector<16x32xbf16>, vector<256x32xf32> -> vector<256x32xf32>
    %32 = arith.addf %26, %31 : vector<256x32xf32>
    %c0_44 = arith.constant 0 : index
    %c1_45 = arith.constant 1 : index
    %c0_46 = arith.constant 0 : index
    %c0_47 = arith.constant 0 : index
    %33 = vector.load %arg1[%c0_44, %c1_45, %c0_46, %c0_47] : memref<1x18x16x16xbf16, #tpu.memory_space<vmem>>, vector<1x16x16x16xbf16>
    %34 = vector.shape_cast %33 : vector<1x16x16x16xbf16> to vector<16x16x16xbf16>
    %35 = vector.shape_cast %34 : vector<16x16x16xbf16> to vector<256x16xbf16>
    %c4 = arith.constant 4 : index
    %c0_48 = arith.constant 0 : index
    %c0_49 = arith.constant 0 : index
    %36 = vector.load %arg2[%c4, %c0_48, %c0_49] : memref<9x16x32xbf16, #tpu.memory_space<vmem>>, vector<1x16x32xbf16>
    %37 = vector.shape_cast %36 : vector<1x16x32xbf16> to vector<16x32xbf16>
    %cst_50 = arith.constant dense<0.000000e+00> : vector<256x32xf32>
    %38 = tpu.matmul %35, %37, %cst_50 {dimension_numbers = #tpu.dot_dimension_numbers<[1], [0], [0], [1], [0, 0, 1, 1], [], []>} : vector<256x16xbf16>, vector<16x32xbf16>, vector<256x32xf32> -> vector<256x32xf32>
    %39 = arith.addf %32, %38 : vector<256x32xf32>
    %c1_51 = arith.constant 1 : index
    %c0_52 = arith.constant 0 : index
    %c0_53 = arith.constant 0 : index
    %40 = vector.load %arg8[%c1_51, %c0_52, %c0_53] : memref<18x16x16xbf16, #tpu.memory_space<vmem>>, vector<16x16x16xbf16>
    %41 = vector.shape_cast %40 : vector<16x16x16xbf16> to vector<256x16xbf16>
    %c5 = arith.constant 5 : index
    %c0_54 = arith.constant 0 : index
    %c0_55 = arith.constant 0 : index
    %42 = vector.load %arg2[%c5, %c0_54, %c0_55] : memref<9x16x32xbf16, #tpu.memory_space<vmem>>, vector<1x16x32xbf16>
    %43 = vector.shape_cast %42 : vector<1x16x32xbf16> to vector<16x32xbf16>
    %cst_56 = arith.constant dense<0.000000e+00> : vector<256x32xf32>
    %44 = tpu.matmul %41, %43, %cst_56 {dimension_numbers = #tpu.dot_dimension_numbers<[1], [0], [0], [1], [0, 0, 1, 1], [], []>} : vector<256x16xbf16>, vector<16x32xbf16>, vector<256x32xf32> -> vector<256x32xf32>
    %45 = arith.addf %39, %44 : vector<256x32xf32>
    %c2_57 = arith.constant 2 : index
    %c0_58 = arith.constant 0 : index
    %c0_59 = arith.constant 0 : index
    %46 = vector.load %arg7[%c2_57, %c0_58, %c0_59] : memref<18x16x16xbf16, #tpu.memory_space<vmem>>, vector<16x16x16xbf16>
    %47 = vector.shape_cast %46 : vector<16x16x16xbf16> to vector<256x16xbf16>
    %c6 = arith.constant 6 : index
    %c0_60 = arith.constant 0 : index
    %c0_61 = arith.constant 0 : index
    %48 = vector.load %arg2[%c6, %c0_60, %c0_61] : memref<9x16x32xbf16, #tpu.memory_space<vmem>>, vector<1x16x32xbf16>
    %49 = vector.shape_cast %48 : vector<1x16x32xbf16> to vector<16x32xbf16>
    %cst_62 = arith.constant dense<0.000000e+00> : vector<256x32xf32>
    %50 = tpu.matmul %47, %49, %cst_62 {dimension_numbers = #tpu.dot_dimension_numbers<[1], [0], [0], [1], [0, 0, 1, 1], [], []>} : vector<256x16xbf16>, vector<16x32xbf16>, vector<256x32xf32> -> vector<256x32xf32>
    %51 = arith.addf %45, %50 : vector<256x32xf32>
    %c0_63 = arith.constant 0 : index
    %c2_64 = arith.constant 2 : index
    %c0_65 = arith.constant 0 : index
    %c0_66 = arith.constant 0 : index
    %52 = vector.load %arg1[%c0_63, %c2_64, %c0_65, %c0_66] : memref<1x18x16x16xbf16, #tpu.memory_space<vmem>>, vector<1x16x16x16xbf16>
    %53 = vector.shape_cast %52 : vector<1x16x16x16xbf16> to vector<16x16x16xbf16>
    %54 = vector.shape_cast %53 : vector<16x16x16xbf16> to vector<256x16xbf16>
    %c7 = arith.constant 7 : index
    %c0_67 = arith.constant 0 : index
    %c0_68 = arith.constant 0 : index
    %55 = vector.load %arg2[%c7, %c0_67, %c0_68] : memref<9x16x32xbf16, #tpu.memory_space<vmem>>, vector<1x16x32xbf16>
    %56 = vector.shape_cast %55 : vector<1x16x32xbf16> to vector<16x32xbf16>
    %cst_69 = arith.constant dense<0.000000e+00> : vector<256x32xf32>
    %57 = tpu.matmul %54, %56, %cst_69 {dimension_numbers = #tpu.dot_dimension_numbers<[1], [0], [0], [1], [0, 0, 1, 1], [], []>} : vector<256x16xbf16>, vector<16x32xbf16>, vector<256x32xf32> -> vector<256x32xf32>
    %58 = arith.addf %51, %57 : vector<256x32xf32>
    %c2_70 = arith.constant 2 : index
    %c0_71 = arith.constant 0 : index
    %c0_72 = arith.constant 0 : index
    %59 = vector.load %arg8[%c2_70, %c0_71, %c0_72] : memref<18x16x16xbf16, #tpu.memory_space<vmem>>, vector<16x16x16xbf16>
    %60 = vector.shape_cast %59 : vector<16x16x16xbf16> to vector<256x16xbf16>
    %c8 = arith.constant 8 : index
    %c0_73 = arith.constant 0 : index
    %c0_74 = arith.constant 0 : index
    %61 = vector.load %arg2[%c8, %c0_73, %c0_74] : memref<9x16x32xbf16, #tpu.memory_space<vmem>>, vector<1x16x32xbf16>
    %62 = vector.shape_cast %61 : vector<1x16x32xbf16> to vector<16x32xbf16>
    %cst_75 = arith.constant dense<0.000000e+00> : vector<256x32xf32>
    %63 = tpu.matmul %60, %62, %cst_75 {dimension_numbers = #tpu.dot_dimension_numbers<[1], [0], [0], [1], [0, 0, 1, 1], [], []>} : vector<256x16xbf16>, vector<16x32xbf16>, vector<256x32xf32> -> vector<256x32xf32>
    %64 = arith.addf %58, %63 : vector<256x32xf32>
    %c0_76 = arith.constant 0 : index
    %c0_77 = arith.constant 0 : index
    %65 = vector.load %arg3[%c0_76, %c0_77] : memref<1x32xf32, #tpu.memory_space<vmem>>, vector<1x32xf32>
    %66 = vector.broadcast %65 : vector<1x32xf32> to vector<256x32xf32>
    %67 = arith.addf %64, %66 : vector<256x32xf32>
    %cst_78 = arith.constant 0.000000e+00 : f32
    %68 = vector.broadcast %cst_78 : f32 to vector<256x32xf32>
    %69 = arith.maximumf %67, %68 : vector<256x32xf32>
    %70 = arith.truncf %69 : vector<256x32xf32> to vector<256x32xbf16>
    %c0_79 = arith.constant 0 : index
    %c0_80 = arith.constant 0 : index
    %71 = vector.load %arg4[%c0_79, %c0_80] : memref<32x128xbf16, #tpu.memory_space<vmem>>, vector<32x128xbf16>
    %cst_81 = arith.constant dense<0.000000e+00> : vector<256x128xf32>
    %72 = tpu.matmul %70, %71, %cst_81 {dimension_numbers = #tpu.dot_dimension_numbers<[1], [0], [0], [1], [0, 0, 1, 1], [], []>} : vector<256x32xbf16>, vector<32x128xbf16>, vector<256x128xf32> -> vector<256x128xf32>
    %c0_82 = arith.constant 0 : index
    %c0_83 = arith.constant 0 : index
    %73 = vector.load %arg5[%c0_82, %c0_83] : memref<1x128xf32, #tpu.memory_space<vmem>>, vector<1x128xf32>
    %74 = vector.broadcast %73 : vector<1x128xf32> to vector<256x128xf32>
    %75 = arith.addf %72, %74 : vector<256x128xf32>
    %76 = tpu.iota {dimensions = array<i32: 1>} : vector<256x128xi32>
    %c45_i32 = arith.constant 45 : i32
    %77 = vector.broadcast %c45_i32 : i32 to vector<256x128xi32>
    %78 = arith.cmpi sge, %76, %77 : vector<256x128xi32>
    %c54_i32 = arith.constant 54 : i32
    %79 = vector.broadcast %c54_i32 : i32 to vector<256x128xi32>
    %80 = arith.cmpi slt, %76, %79 : vector<256x128xi32>
    %81 = arith.andi %78, %80 : vector<256x128xi1>
    %82 = arith.negf %75 : vector<256x128xf32>
    %83 = math.exp %82 : vector<256x128xf32>
    %cst_84 = arith.constant 1.000000e+00 : f32
    %84 = vector.broadcast %cst_84 : f32 to vector<256x128xf32>
    %85 = arith.addf %84, %83 : vector<256x128xf32>
    %86 = arith.divf %84, %85 : vector<256x128xf32>
    %87 = arith.select %81, %86, %75 : vector<256x128xi1>, vector<256x128xf32>
    %c0_85 = arith.constant 0 : index
    %c0_86 = arith.constant 0 : index
    %c0_87 = arith.constant 0 : index
    %88 = vector.load %arg6[%c0_85, %c0_86, %c0_87] : memref<1x256x128xf32, #tpu.memory_space<vmem>>, vector<1x256x128xf32>
    %89 = vector.shape_cast %88 : vector<1x256x128xf32> to vector<256x128xf32>
    %90 = vector.shape_cast %87 : vector<256x128xf32> to vector<1x256x128xf32>
    tpu.vector_store %arg6[%c0_85, %c0_86, %c0_87], %90 {strides = array<i32>} : memref<1x256x128xf32, #tpu.memory_space<vmem>>, vector<1x256x128xf32>,
    return
  }
  func.func @transform_0(%arg0: i32) -> (i32, i32, i32, i32) {
    %c0_i32 = arith.constant 0 : i32
    %c0_i32_0 = arith.constant 0 : i32
    %c0_i32_1 = arith.constant 0 : i32
    %c0_i32_2 = arith.constant 0 : i32
    return %arg0, %c0_i32, %c0_i32_0, %c0_i32_1 : i32, i32, i32, i32
  }
  func.func @transform_1(%arg0: i32) -> (i32, i32, i32) {
    %c0_i32 = arith.constant 0 : i32
    %c0_i32_0 = arith.constant 0 : i32
    %c0_i32_1 = arith.constant 0 : i32
    %c0_i32_2 = arith.constant 0 : i32
    return %c0_i32, %c0_i32_0, %c0_i32_1 : i32, i32, i32
  }
  func.func @transform_2(%arg0: i32) -> (i32, i32) {
    %c0_i32 = arith.constant 0 : i32
    %c0_i32_0 = arith.constant 0 : i32
    %c0_i32_1 = arith.constant 0 : i32
    return %c0_i32, %c0_i32_0 : i32, i32
  }
  func.func @transform_3(%arg0: i32) -> (i32, i32) {
    %c0_i32 = arith.constant 0 : i32
    %c0_i32_0 = arith.constant 0 : i32
    %c0_i32_1 = arith.constant 0 : i32
    return %c0_i32, %c0_i32_0 : i32, i32
  }
  func.func @transform_4(%arg0: i32) -> (i32, i32) {
    %c0_i32 = arith.constant 0 : i32
    %c0_i32_0 = arith.constant 0 : i32
    %c0_i32_1 = arith.constant 0 : i32
    return %c0_i32, %c0_i32_0 : i32, i32
  }
  func.func @transform_5(%arg0: i32) -> (i32, i32, i32) {
    %c0_i32 = arith.constant 0 : i32
    %c0_i32_0 = arith.constant 0 : i32
    %c0_i32_1 = arith.constant 0 : i32
    return %arg0, %c0_i32, %c0_i32_0 : i32, i32, i32
  }
}

</mosaic_0001>

<llo_original>
// kernel: rpn_head_forward.1
$region0: #{rpn_head_forward.1}
  #allocation0 [shape = 'u32[]', space=smem, size = 0x4, offset = 0x4, fixed_abs, tag = 'smem constant byte address 0x4 - core index']
  #allocation1 [shape = 'u32[72,128]{1,0:T(1,128)}', space=vmem, size = 0x9000, scoped, tag = 'internal scratch']
  #allocation2 [shape = 'bf16[18,16,16]{2,1,0:T(8,128)(2,1)}', space=vmem, size = 0x12000, scoped, tag = 'scratch operand']
  #allocation3 [shape = 'bf16[18,16,16]{2,1,0:T(8,128)(2,1)}', space=vmem, size = 0x12000, scoped, tag = 'scratch operand']
  %s0 = inlined_call_operand.vmem [shape: bf16[2,18,16,16], index: 0, kind: input, shape index: {}]
  %s1 = inlined_call_operand.hbm [shape: bf16[9,16,32], index: 1, kind: input, shape index: {}]
  %s2 = inlined_call_operand.hbm [shape: f32[1,32], index: 2, kind: input, shape index: {}]
  %s3 = inlined_call_operand.hbm [shape: bf16[32,128], index: 3, kind: input, shape index: {}]
  %s4 = inlined_call_operand.hbm [shape: f32[1,128], index: 4, kind: input, shape index: {}]
  %s5 = inlined_call_operand.vmem [shape: f32[2,256,128], index: 5, kind: output, shape index: {}]
  %s6 = sld [smem:[#allocation0]]
  $region69: #{rpn_head_forward.1} parent=0
    _
  %s8 = ssub.s32 1, %s6
  %s9 = scalar_select 0, %s8, %s6
  $region1: #{rpn_head_forward.1} parent=0
    #allocation4 [shape = 'u8[36864]{0}', space=vmem, size = 0x9000, scoped, tag = 'input window, operand 1, single buffered']
    #allocation5 [shape = 's32[2]{0}', space=sflag, size = 0x8, scoped, tag = 'scoped memory for rpn_head_forward.1']
    #allocation6 [shape = 'u8[512]{0}', space=vmem, size = 0x400, scoped, tag = 'input window, operand 2, single buffered']
    #allocation7 [shape = 's32[1]{0}', space=sflag, size = 0x4, scoped, tag = 'scoped memory for rpn_head_forward.1']
    #allocation8 [shape = 'u8[8192]{0}', space=vmem, size = 0x2000, scoped, tag = 'input window, operand 3, single buffered']
    #allocation9 [shape = 'u8[512]{0}', space=vmem, size = 0x400, scoped, tag = 'input window, operand 4, single buffered']
    #allocation10 [shape = 's32[1]{0}', space=sflag, size = 0x4, scoped, tag = 'scoped memory for rpn_head_forward.1']
    %10 = vsyncpa [#allocation5], 0
    %11 = vsyncpa [#allocation7], 0
    %12 = vsyncpa [#allocation10], 0
    loop: start=0, step=1, limit=4
    $region2: #{rpn_head_forward.1} parent=1 // loop_pre_header
      _
    $region3: #{rpn_head_forward.1} parent=1 // loop_header
      %s14 = sphi 0, %s18
      %p15 = scmp.ge.s32.totalorder %s14, 4
      %s24 = sphi 0, %s26
      %s27 = sphi 0, %s24
      %s28 = sphi 0, %s27
      %s44 = sphi 0, %s28
      %s48 = sphi 0, %s48
      %s50 = sphi 0, %s48
      %s51 = sphi 0, %s50
      %s65 = sphi 0, %s51
      %s69 = sphi 0, %s69
      %s71 = sphi 0, %s69
      %s72 = sphi 0, %s71
      %s86 = sphi 0, %s72
      %s90 = sphi 0, %s90
      %s92 = sphi 0, %s90
      %s93 = sphi 0, %s92
      %s107 = sphi 0, %s93
      %s111 = sphi 0, %s111
      %s113 = sphi 0, %s111
      %s114 = sphi 0, %s113
      %s128 = sphi 0, %s114
      %s134 = sphi 0, %s136
      %s137 = sphi 0, %s134
      %s138 = sphi 0, %s137
      %s154 = sphi 0, %s138
    $region4: #{rpn_head_forward.1} parent=1 // loop_header_branch
      %17 = sbr.rel (%p15) target = $region8
    $region5: #{rpn_head_forward.1} parent=1 // loop_body
      %s19 = ssub.s32 %s14, 1
      %s20 = ssub.s32 %s14, 2
      %s21 = sadd.s32 %s14, 1
      %s22 = ssub.s32 %s14, %s21
      %p23 = scmp.eq.s32.totalorder %s22, 0
      %s25 = sadd.s32 %s24, 1
      %s26 = scalar_select %p23, %s24, %s25
      %p29 = pneg %p23
      %p30 = scmp.eq.s32.totalorder %s14, 1
      %p31 = por %p29, %p30
      %p32 = scmp.ne.s32.totalorder %s24, %s27
      %p33 = scmp.eq.s32.totalorder %s14, 0
      %p34 = por %p32, %p33
      %p35 = scmp.ne.s32.totalorder %s24, %s27
      %p36 = scmp.eq.s32.totalorder %s19, 1
      %p37 = por %p35, %p36
      %p38 = scmp.ne.s32.totalorder %s27, %s28
      %p39 = scmp.eq.s32.totalorder %s19, 0
      %p40 = por %p38, %p39
      %p41 = scmp.ne.s32.totalorder %s27, %s28
      %p42 = scmp.eq.s32.totalorder %s20, 1
      %p43 = por %p41, %p42
      %p45 = scmp.ne.s32.totalorder %s28, %s44
      %p46 = scmp.eq.s32.totalorder %s20, 0
      %p47 = por %p45, %p46
      %s49 = sadd.s32 %s48, 1
      %p52 = scmp.eq.s32.totalorder %s14, 1
      %p53 = scmp.ne.s32.totalorder %s48, %s50
      %p54 = scmp.eq.s32.totalorder %s14, 0
      %p55 = por %p53, %p54
      %p56 = scmp.ne.s32.totalorder %s48, %s50
      %p57 = scmp.eq.s32.totalorder %s19, 1
      %p58 = por %p56, %p57
      %p59 = scmp.ne.s32.totalorder %s50, %s51
      %p60 = scmp.eq.s32.totalorder %s19, 0
      %p61 = por %p59, %p60
      %p62 = scmp.ne.s32.totalorder %s50, %s51
      %p63 = scmp.eq.s32.totalorder %s20, 1
      %p64 = por %p62, %p63
      %p66 = scmp.ne.s32.totalorder %s51, %s65
      %p67 = scmp.eq.s32.totalorder %s20, 0
      %p68 = por %p66, %p67
      %s70 = sadd.s32 %s69, 1
      %p73 = scmp.eq.s32.totalorder %s14, 1
      %p74 = scmp.ne.s32.totalorder %s69, %s71
      %p75 = scmp.eq.s32.totalorder %s14, 0
      %p76 = por %p74, %p75
      %p77 = scmp.ne.s32.totalorder %s69, %s71
      %p78 = scmp.eq.s32.totalorder %s19, 1
      %p79 = por %p77, %p78
      %p80 = scmp.ne.s32.totalorder %s71, %s72
      %p81 = scmp.eq.s32.totalorder %s19, 0
      %p82 = por %p80, %p81
      %p83 = scmp.ne.s32.totalorder %s71, %s72
      %p84 = scmp.eq.s32.totalorder %s20, 1
      %p85 = por %p83, %p84
      %p87 = scmp.ne.s32.totalorder %s72, %s86
      %p88 = scmp.eq.s32.totalorder %s20, 0
      %p89 = por %p87, %p88
      %s91 = sadd.s32 %s90, 1
      %p94 = scmp.eq.s32.totalorder %s14, 1
      %p95 = scmp.ne.s32.totalorder %s90, %s92
      %p96 = scmp.eq.s32.totalorder %s14, 0
      %p97 = por %p95, %p96
      %p98 = scmp.ne.s32.totalorder %s90, %s92
      %p99 = scmp.eq.s32.totalorder %s19, 1
      %p100 = por %p98, %p99
      %p101 = scmp.ne.s32.totalorder %s92, %s93
      %p102 = scmp.eq.s32.totalorder %s19, 0
      %p103 = por %p101, %p102
      %p104 = scmp.ne.s32.totalorder %s92, %s93
      %p105 = scmp.eq.s32.totalorder %s20, 1
      %p106 = por %p104, %p105
      %p108 = scmp.ne.s32.totalorder %s93, %s107
      %p109 = scmp.eq.s32.totalorder %s20, 0
      %p110 = por %p108, %p109
      %s112 = sadd.s32 %s111, 1
      %p115 = scmp.eq.s32.totalorder %s14, 1
      %p116 = scmp.ne.s32.totalorder %s111, %s113
      %p117 = scmp.eq.s32.totalorder %s14, 0
      %p118 = por %p116, %p117
      %p119 = scmp.ne.s32.totalorder %s111, %s113
      %p120 = scmp.eq.s32.totalorder %s19, 1
      %p121 = por %p119, %p120
      %p122 = scmp.ne.s32.totalorder %s113, %s114
      %p123 = scmp.eq.s32.totalorder %s19, 0
      %p124 = por %p122, %p123
      %p125 = scmp.ne.s32.totalorder %s113, %s114
      %p126 = scmp.eq.s32.totalorder %s20, 1
      %p127 = por %p125, %p126
      %p129 = scmp.ne.s32.totalorder %s114, %s128
      %p130 = scmp.eq.s32.totalorder %s20, 0
      %p131 = por %p129, %p130
      %s132 = ssub.s32 %s14, %s21
      %p133 = scmp.eq.s32.totalorder %s132, 0
      %s135 = sadd.s32 %s134, 1
      %s136 = scalar_select %p133, %s134, %s135
      %p139 = pneg %p133
      %p140 = scmp.eq.s32.totalorder %s14, 1
      %p141 = por %p139, %p140
      %p142 = scmp.ne.s32.totalorder %s134, %s137
      %p143 = scmp.eq.s32.totalorder %s14, 0
      %p144 = por %p142, %p143
      %p145 = scmp.ne.s32.totalorder %s134, %s137
      %p146 = scmp.eq.s32.totalorder %s19, 1
      %p147 = por %p145, %p146
      %p148 = scmp.ne.s32.totalorder %s137, %s138
      %p149 = scmp.eq.s32.totalorder %s19, 0
      %p150 = por %p148, %p149
      %p151 = scmp.ne.s32.totalorder %s137, %s138
      %p152 = scmp.eq.s32.totalorder %s20, 1
      %p153 = por %p151, %p152
      %p155 = scmp.ne.s32.totalorder %s138, %s154
      %p156 = scmp.eq.s32.totalorder %s20, 0
      %p157 = por %p155, %p156
      %p158 = scmp.le.s32.totalorder 1, %s14
      %p159 = scmp.lt.s32.totalorder %s14, 3
      %p160 = pnand %p158, %p159
      %p161 = pneg %p160
      // Predicated region
      $region9: #{rpn_head_forward.1} parent=5 // pred_check
        _
      $region10: #{rpn_head_forward.1} parent=5 // pred_check_branch
        %163 = sbr.rel (%p160) target = $region12
      $region11: #{rpn_head_forward.1} parent=5 // pred_region
        %s164 = ssub.s32 %s14, 1
        // Predicated region
        $region13: #{rpn_head_forward.1} parent=11 // pred_check
          %p165 = pneg %p61
        $region14: #{rpn_head_forward.1} parent=11 // pred_check_branch
          %167 = sbr.rel (%p165) target = $region16
        $region15: #{rpn_head_forward.1} parent=11 // pred_region
          %169 = vsyncadd [#allocation5], 0
          %s170 = sshll.u32 %s1, 4
          %s171 = int_to_ptr.hbm [resolvable:$true] %s170
          %s172 = sshll.u32 [#allocation4], 4
          %s173 = int_to_ptr.vmem [resolvable:$true] %s172
          %178 = dma.hbm_to_vmem [thread:$0]  %s171, 1152, %s173, [#allocation5], 64, 64, 4
        $region16: #{rpn_head_forward.1} parent=11 // pred_fallthru
          _
        // Predicated region
        $region17: #{rpn_head_forward.1} parent=11 // pred_check
          %p179 = pneg %p82
        $region18: #{rpn_head_forward.1} parent=11 // pred_check_branch
          %181 = sbr.rel (%p179) target = $region20
        $region19: #{rpn_head_forward.1} parent=11 // pred_region
          %183 = vsyncadd [#allocation7], 0
          %s185 = sshll.u32 %s2, 4
          %s186 = int_to_ptr.hbm [resolvable:$true] %s185
          %s187 = sshll.u32 [#allocation6], 4
          %s188 = int_to_ptr.vmem [resolvable:$true] %s187
          %190 = dma.hbm_to_vmem [thread:$0]  %s186, 16, %s188, [#allocation7]
        $region20: #{rpn_head_forward.1} parent=11 // pred_fallthru
          _
        // Predicated region
        $region21: #{rpn_head_forward.1} parent=11 // pred_check
          %p191 = pneg %p103
        $region22: #{rpn_head_forward.1} parent=11 // pred_check_branch
          %193 = sbr.rel (%p191) target = $region24
        $region23: #{rpn_head_forward.1} parent=11 // pred_region
          %195 = vsyncadd [#allocation7], 0
          %s196 = sshll.u32 %s3, 4
          %s197 = int_to_ptr.hbm [resolvable:$true] %s196
          %s198 = sshll.u32 [#allocation8], 4
          %s199 = int_to_ptr.vmem [resolvable:$true] %s198
          %204 = dma.hbm_to_vmem [thread:$0]  %s197, 256, %s199, [#allocation7], 64, 64, 4
        $region24: #{rpn_head_forward.1} parent=11 // pred_fallthru
          _
        // Predicated region
        $region25: #{rpn_head_forward.1} parent=11 // pred_check
          %p205 = pneg %p124
        $region26: #{rpn_head_forward.1} parent=11 // pred_check_branch
          %207 = sbr.rel (%p205) target = $region28
        $region27: #{rpn_head_forward.1} parent=11 // pred_region
          %209 = vsyncadd [#allocation10], 0
          %s211 = sshll.u32 %s4, 4
          %s212 = int_to_ptr.hbm [resolvable:$true] %s211
          %s213 = sshll.u32 [#allocation9], 4
          %s214 = int_to_ptr.vmem [resolvable:$true] %s213
          %216 = dma.hbm_to_vmem [thread:$0]  %s212, 16, %s214, [#allocation10]
        $region28: #{rpn_head_forward.1} parent=11 // pred_fallthru
          _
      $region12: #{rpn_head_forward.1} parent=5 // pred_fallthru
        _
      %p217 = scmp.lt.s32.totalorder %s14, 2
      // Predicated region
      $region29: #{rpn_head_forward.1} parent=5 // pred_check
        %p218 = pneg %p217
      $region30: #{rpn_head_forward.1} parent=5 // pred_check_branch
        %220 = sbr.rel (%p218) target = $region32
      $region31: #{rpn_head_forward.1} parent=5 // pred_region
        // Predicated region
        $region33: #{rpn_head_forward.1} parent=31 // pred_check
          %p221 = pneg %p34
        $region34: #{rpn_head_forward.1} parent=31 // pred_check_branch
          %223 = sbr.rel (%p221) target = $region36
        $region35: #{rpn_head_forward.1} parent=31 // pred_region
          %p224 = scmp.lt.s32.totalorder %s14, 1
          %s225 = scalar_select %p224, %s14, 1
          %s226 = smul.addr %s225, 36
          %s227 = smul.addr %s226, 4
          %s228 = scalar_lea.vmem %s0, %s227
        $region36: #{rpn_head_forward.1} parent=31 // pred_fallthru
          _
      $region32: #{rpn_head_forward.1} parent=5 // pred_fallthru
        _
      %p229 = scmp.le.s32.totalorder 1, %s14
      %p230 = scmp.lt.s32.totalorder %s14, 3
      %p231 = pnand %p229, %p230
      %p232 = pneg %p231
      // Predicated region
      $region37: #{rpn_head_forward.1} parent=5 // pred_check
        _
      $region38: #{rpn_head_forward.1} parent=5 // pred_check_branch
        %234 = sbr.rel (%p231) target = $region40
      $region39: #{rpn_head_forward.1} parent=5 // pred_region
        %s235 = ssub.s32 %s14, 1
        // Predicated region
        $region41: #{rpn_head_forward.1} parent=39 // pred_check
          %p236 = pneg %p61
        $region42: #{rpn_head_forward.1} parent=39 // pred_check_branch
          %238 = sbr.rel (%p236) target = $region44
        $region43: #{rpn_head_forward.1} parent=39 // pred_region
          %240 = dma.done [#allocation5], 1152
        $region44: #{rpn_head_forward.1} parent=39 // pred_fallthru
          _
        // Predicated region
        $region45: #{rpn_head_forward.1} parent=39 // pred_check
          %p241 = pneg %p82
        $region46: #{rpn_head_forward.1} parent=39 // pred_check_branch
          %243 = sbr.rel (%p241) target = $region48
        $region47: #{rpn_head_forward.1} parent=39 // pred_region
          %245 = dma.done [#allocation7], 16
        $region48: #{rpn_head_forward.1} parent=39 // pred_fallthru
          _
        // Predicated region
        $region49: #{rpn_head_forward.1} parent=39 // pred_check
          %p246 = pneg %p103
        $region50: #{rpn_head_forward.1} parent=39 // pred_check_branch
          %248 = sbr.rel (%p246) target = $region52
        $region51: #{rpn_head_forward.1} parent=39 // pred_region
          %250 = dma.done [#allocation7], 256
        $region52: #{rpn_head_forward.1} parent=39 // pred_fallthru
          _
        // Predicated region
        $region53: #{rpn_head_forward.1} parent=39 // pred_check
          %p251 = pneg %p124
        $region54: #{rpn_head_forward.1} parent=39 // pred_check_branch
          %253 = sbr.rel (%p251) target = $region56
        $region55: #{rpn_head_forward.1} parent=39 // pred_region
          %255 = dma.done [#allocation10], 16
        $region56: #{rpn_head_forward.1} parent=39 // pred_fallthru
          _
        %p256 = scmp.lt.s32.totalorder %s19, 1
        %s257 = scalar_select %p256, %s19, 1
        %s258 = smul.addr %s257, 36
        %s259 = smul.addr %s258, 4
        %s260 = scalar_lea.vmem %s0, %s259
        %p261 = pneg %p40
        %p262 = pneg %p37
        %p263 = pneg %p61
        %p264 = pneg %p58
        %p265 = pneg %p82
        %p266 = pneg %p79
        %p267 = pneg %p103
        %p268 = pneg %p100
        %p269 = pneg %p124
        %p270 = pneg %p121
        %p271 = pneg %p150
        %p272 = pneg %p147
        %p273 = scmp.lt.s32.totalorder %s19, 1
        %s274 = scalar_select %p273, %s19, 1
        %s275 = smul.addr %s274, 32
        %s276 = smul.addr %s275, 8
        %s277 = scalar_lea.vmem %s5, %s276
        %p278 = scmp.lt.s32.totalorder %s19, 1
        %s279 = scalar_select %p278, %s19, 1
        %s280 = smul.addr %s279, 36
        %s281 = smul.addr %s280, 4
        %s282 = scalar_lea.vmem %s0, %s281
        %p283 = scmp.lt.s32.totalorder %s19, 1
        %s284 = scalar_select %p283, %s19, 1
        %s285 = smul.addr %s284, 32
        %s286 = smul.addr %s285, 8
        %s287 = scalar_lea.vmem %s5, %s286
        %vm289 = vcmask 122880
        %vm290 = vsmask.f32 256
        %vm291 = vmand %vm289, %vm290
        %v292 = vld [vmem:[#allocation2] sm:$0x1]
        %v293 = vsel %vm291, 0, %v292
        %294 = vst [vmem:[#allocation2] sm:$0x1] %v293
        %v295 = vld [vmem:[#allocation2 + $0x8] sm:$0x1]
        %v296 = vsel %vm291, 0, %v295
        %297 = vst [vmem:[#allocation2 + $0x8] sm:$0x1] %v296
        %v298 = vld [vmem:[#allocation2 + $0x10] sm:$0x1]
        %v299 = vsel %vm291, 0, %v298
        %300 = vst [vmem:[#allocation2 + $0x10] sm:$0x1] %v299
        %v301 = vld [vmem:[#allocation2 + $0x18] sm:$0x1]
        %v302 = vsel %vm291, 0, %v301
        %303 = vst [vmem:[#allocation2 + $0x18] sm:$0x1] %v302
        %v304 = vld [vmem:[#allocation2 + $0x20] sm:$0x1]
        %v305 = vsel %vm291, 0, %v304
        %306 = vst [vmem:[#allocation2 + $0x20] sm:$0x1] %v305
        %v307 = vld [vmem:[#allocation2 + $0x28] sm:$0x1]
        %v308 = vsel %vm291, 0, %v307
        %309 = vst [vmem:[#allocation2 + $0x28] sm:$0x1] %v308
        %v310 = vld [vmem:[#allocation2 + $0x30] sm:$0x1]
        %v311 = vsel %vm291, 0, %v310
        %312 = vst [vmem:[#allocation2 + $0x30] sm:$0x1] %v311
        %v313 = vld [vmem:[#allocation2 + $0x38] sm:$0x1]
        %v314 = vsel %vm291, 0, %v313
        %315 = vst [vmem:[#allocation2 + $0x38] sm:$0x1] %v314
        %v316 = vld [vmem:[#allocation2 + $0x40] sm:$0x1]
        %v317 = vsel %vm291, 0, %v316
        %318 = vst [vmem:[#allocation2 + $0x40] sm:$0x1] %v317
        %v319 = vld [vmem:[#allocation2 + $0x48] sm:$0x1]
        %v320 = vsel %vm291, 0, %v319
        %321 = vst [vmem:[#allocation2 + $0x48] sm:$0x1] %v320
        %v322 = vld [vmem:[#allocation2 + $0x50] sm:$0x1]
        %v323 = vsel %vm291, 0, %v322
        %324 = vst [vmem:[#allocation2 + $0x50] sm:$0x1] %v323
        %v325 = vld [vmem:[#allocation2 + $0x58] sm:$0x1]
        %v326 = vsel %vm291, 0, %v325
        %327 = vst [vmem:[#allocation2 + $0x58] sm:$0x1] %v326
        %v328 = vld [vmem:[#allocation2 + $0x60] sm:$0x1]
        %v329 = vsel %vm291, 0, %v328
        %330 = vst [vmem:[#allocation2 + $0x60] sm:$0x1] %v329
        %v331 = vld [vmem:[#allocation2 + $0x68] sm:$0x1]
        %v332 = vsel %vm291, 0, %v331
        %333 = vst [vmem:[#allocation2 + $0x68] sm:$0x1] %v332
        %v334 = vld [vmem:[#allocation2 + $0x70] sm:$0x1]
        %v335 = vsel %vm291, 0, %v334
        %336 = vst [vmem:[#allocation2 + $0x70] sm:$0x1] %v335
        %v337 = vld [vmem:[#allocation2 + $0x78] sm:$0x1]
        %v338 = vsel %vm291, 0, %v337
        %339 = vst [vmem:[#allocation2 + $0x78] sm:$0x1] %v338
        %v340 = vld [vmem:[#allocation2 + $0x80] sm:$0x1]
        %v341 = vsel %vm291, 0, %v340
        %342 = vst [vmem:[#allocation2 + $0x80] sm:$0x1] %v341
        %v343 = vld [vmem:[#allocation2 + $0x88] sm:$0x1]
        %v344 = vsel %vm291, 0, %v343
        %345 = vst [vmem:[#allocation2 + $0x88] sm:$0x1] %v344
        %v346 = vld [vmem:[%s282] sm:$0xf]
        %v347 = vld [vmem:[%s282 + $0x4] sm:$0xf]
        %v348 = vld [vmem:[%s282 + $0x8] sm:$0xf]
        %v349 = vld [vmem:[%s282 + $0xc] sm:$0xf]
        %v350 = vld [vmem:[%s282 + $0x10] sm:$0xf]
        %v351 = vld [vmem:[%s282 + $0x14] sm:$0xf]
        %v352 = vld [vmem:[%s282 + $0x18] sm:$0xf]
        %v353 = vld [vmem:[%s282 + $0x1c] sm:$0xf]
        %v354 = vld [vmem:[%s282 + $0x20] sm:$0xf]
        %v355 = vld [vmem:[%s282 + $0x24] sm:$0xf]
        %v356 = vld [vmem:[%s282 + $0x28] sm:$0xf]
        %v357 = vld [vmem:[%s282 + $0x2c] sm:$0xf]
        %v358 = vld [vmem:[%s282 + $0x30] sm:$0xf]
        %v359 = vld [vmem:[%s282 + $0x34] sm:$0xf]
        %v360 = vld [vmem:[%s282 + $0x38] sm:$0xf]
        %v361 = vld [vmem:[%s282 + $0x3c] sm:$0xf]
        %v362 = vld [vmem:[%s282 + $0x40] sm:$0xf]
        %v363 = vld [vmem:[%s282 + $0x44] sm:$0xf]
        %v364 = vld [vmem:[%s282 + $0x48] sm:$0xf]
        %v365 = vld [vmem:[%s282 + $0x4c] sm:$0xf]
        %v366 = vld [vmem:[%s282 + $0x50] sm:$0xf]
        %v367 = vld [vmem:[%s282 + $0x54] sm:$0xf]
        %v368 = vld [vmem:[%s282 + $0x58] sm:$0xf]
        %v369 = vld [vmem:[%s282 + $0x5c] sm:$0xf]
        %v370 = vld [vmem:[%s282 + $0x60] sm:$0xf]
        %v371 = vld [vmem:[%s282 + $0x64] sm:$0xf]
        %v372 = vld [vmem:[%s282 + $0x68] sm:$0xf]
        %v373 = vld [vmem:[%s282 + $0x6c] sm:$0xf]
        %v374 = vld [vmem:[%s282 + $0x70] sm:$0xf]
        %v375 = vld [vmem:[%s282 + $0x74] sm:$0xf]
        %v376 = vld [vmem:[%s282 + $0x78] sm:$0xf]
        %v377 = vld [vmem:[%s282 + $0x7c] sm:$0xf]
        %v378 = vld [vmem:[%s282 + $0x80] sm:$0xf]
        %v379 = vld [vmem:[%s282 + $0x84] sm:$0xf]
        %v380 = vld [vmem:[%s282 + $0x88] sm:$0xf]
        %v381 = vld [vmem:[%s282 + $0x8c] sm:$0xf]
        %vm382 = vsmask.f32 4368
        %vm383 = vmor %vm290, %vm382
        %v385 = vshrl.u32 %v346, 16
        %v387 = vrot.slane %v385, 7
        %v388 = vshll.u32 %v346, 16
        %v390 = vor.u32 %v387, %v388
        %v391 = vrot.slane %v387, 4
        %v393 = vshrl.u32 %v347, 16
        %v395 = vrot.slane %v393, 7
        %v396 = vshll.u32 %v347, 16
        %v398 = vor.u32 %v395, %v396
        %v399 = vsel %vm383, %v391, %v398
        %v401 = vshrl.u32 %v348, 16
        %v403 = vrot.slane %v401, 7
        %v404 = vshll.u32 %v348, 16
        %v406 = vor.u32 %v403, %v404
        %v407 = vrot.slane %v403, 4
        %v409 = vshrl.u32 %v349, 16
        %v411 = vrot.slane %v409, 7
        %v412 = vshll.u32 %v349, 16
        %v414 = vor.u32 %v411, %v412
        %v415 = vsel %vm383, %v407, %v414
        %v417 = vshrl.u32 %v350, 16
        %v419 = vrot.slane %v417, 7
        %v420 = vshll.u32 %v350, 16
        %v422 = vor.u32 %v419, %v420
        %v423 = vrot.slane %v419, 4
        %v425 = vshrl.u32 %v351, 16
        %v427 = vrot.slane %v425, 7
        %v428 = vshll.u32 %v351, 16
        %v430 = vor.u32 %v427, %v428
        %v431 = vsel %vm383, %v423, %v430
        %v433 = vshrl.u32 %v352, 16
        %v435 = vrot.slane %v433, 7
        %v436 = vshll.u32 %v352, 16
        %v438 = vor.u32 %v435, %v436
        %v439 = vrot.slane %v435, 4
        %v441 = vshrl.u32 %v353, 16
        %v443 = vrot.slane %v441, 7
        %v444 = vshll.u32 %v353, 16
        %v446 = vor.u32 %v443, %v444
        %v447 = vsel %vm383, %v439, %v446
        %v449 = vshrl.u32 %v354, 16
        %v451 = vrot.slane %v449, 7
        %v452 = vshll.u32 %v354, 16
        %v454 = vor.u32 %v451, %v452
        %v455 = vrot.slane %v451, 4
        %v457 = vshrl.u32 %v355, 16
        %v459 = vrot.slane %v457, 7
        %v460 = vshll.u32 %v355, 16
        %v462 = vor.u32 %v459, %v460
        %v463 = vsel %vm383, %v455, %v462
        %v465 = vshrl.u32 %v356, 16
        %v467 = vrot.slane %v465, 7
        %v468 = vshll.u32 %v356, 16
        %v470 = vor.u32 %v467, %v468
        %v471 = vrot.slane %v467, 4
        %v473 = vshrl.u32 %v357, 16
        %v475 = vrot.slane %v473, 7
        %v476 = vshll.u32 %v357, 16
        %v478 = vor.u32 %v475, %v476
        %v479 = vsel %vm383, %v471, %v478
        %v481 = vshrl.u32 %v358, 16
        %v483 = vrot.slane %v481, 7
        %v484 = vshll.u32 %v358, 16
        %v486 = vor.u32 %v483, %v484
        %v487 = vrot.slane %v483, 4
        %v489 = vshrl.u32 %v359, 16
        %v491 = vrot.slane %v489, 7
        %v492 = vshll.u32 %v359, 16
        %v494 = vor.u32 %v491, %v492
        %v495 = vsel %vm383, %v487, %v494
        %v497 = vshrl.u32 %v360, 16
        %v499 = vrot.slane %v497, 7
        %v500 = vshll.u32 %v360, 16
        %v502 = vor.u32 %v499, %v500
        %v503 = vrot.slane %v499, 4
        %v505 = vshrl.u32 %v361, 16
        %v507 = vrot.slane %v505, 7
        %v508 = vshll.u32 %v361, 16
        %v510 = vor.u32 %v507, %v508
        %v511 = vsel %vm383, %v503, %v510
        %v513 = vshrl.u32 %v362, 16
        %v515 = vrot.slane %v513, 7
        %v516 = vshll.u32 %v362, 16
        %v518 = vor.u32 %v515, %v516
        %v519 = vrot.slane %v515, 4
        %v521 = vshrl.u32 %v363, 16
        %v523 = vrot.slane %v521, 7
        %v524 = vshll.u32 %v363, 16
        %v526 = vor.u32 %v523, %v524
        %v527 = vsel %vm383, %v519, %v526
        %v529 = vshrl.u32 %v364, 16
        %v531 = vrot.slane %v529, 7
        %v532 = vshll.u32 %v364, 16
        %v534 = vor.u32 %v531, %v532
        %v535 = vrot.slane %v531, 4
        %v537 = vshrl.u32 %v365, 16
        %v539 = vrot.slane %v537, 7
        %v540 = vshll.u32 %v365, 16
        %v542 = vor.u32 %v539, %v540
        %v543 = vsel %vm383, %v535, %v542
        %v545 = vshrl.u32 %v366, 16
        %v547 = vrot.slane %v545, 7
        %v548 = vshll.u32 %v366, 16
        %v550 = vor.u32 %v547, %v548
        %v551 = vrot.slane %v547, 4
        %v553 = vshrl.u32 %v367, 16
        %v555 = vrot.slane %v553, 7
        %v556 = vshll.u32 %v367, 16
        %v558 = vor.u32 %v555, %v556
        %v559 = vsel %vm383, %v551, %v558
        %v561 = vshrl.u32 %v368, 16
        %v563 = vrot.slane %v561, 7
        %v564 = vshll.u32 %v368, 16
        %v566 = vor.u32 %v563, %v564
        %v567 = vrot.slane %v563, 4
        %v569 = vshrl.u32 %v369, 16
        %v571 = vrot.slane %v569, 7
        %v572 = vshll.u32 %v369, 16
        %v574 = vor.u32 %v571, %v572
        %v575 = vsel %vm383, %v567, %v574
        %v577 = vshrl.u32 %v370, 16
        %v579 = vrot.slane %v577, 7
        %v580 = vshll.u32 %v370, 16
        %v582 = vor.u32 %v579, %v580
        %v583 = vrot.slane %v579, 4
        %v585 = vshrl.u32 %v371, 16
        %v587 = vrot.slane %v585, 7
        %v588 = vshll.u32 %v371, 16
        %v590 = vor.u32 %v587, %v588
        %v591 = vsel %vm383, %v583, %v590
        %v593 = vshrl.u32 %v372, 16
        %v595 = vrot.slane %v593, 7
        %v596 = vshll.u32 %v372, 16
        %v598 = vor.u32 %v595, %v596
        %v599 = vrot.slane %v595, 4
        %v601 = vshrl.u32 %v373, 16
        %v603 = vrot.slane %v601, 7
        %v604 = vshll.u32 %v373, 16
        %v606 = vor.u32 %v603, %v604
        %v607 = vsel %vm383, %v599, %v606
        %v609 = vshrl.u32 %v374, 16
        %v611 = vrot.slane %v609, 7
        %v612 = vshll.u32 %v374, 16
        %v614 = vor.u32 %v611, %v612
        %v615 = vrot.slane %v611, 4
        %v617 = vshrl.u32 %v375, 16
        %v619 = vrot.slane %v617, 7
        %v620 = vshll.u32 %v375, 16
        %v622 = vor.u32 %v619, %v620
        %v623 = vsel %vm383, %v615, %v622
        %v625 = vshrl.u32 %v376, 16
        %v627 = vrot.slane %v625, 7
        %v628 = vshll.u32 %v376, 16
        %v630 = vor.u32 %v627, %v628
        %v631 = vrot.slane %v627, 4
        %v633 = vshrl.u32 %v377, 16
        %v635 = vrot.slane %v633, 7
        %v636 = vshll.u32 %v377, 16
        %v638 = vor.u32 %v635, %v636
        %v639 = vsel %vm383, %v631, %v638
        %v641 = vshrl.u32 %v378, 16
        %v643 = vrot.slane %v641, 7
        %v644 = vshll.u32 %v378, 16
        %v646 = vor.u32 %v643, %v644
        %v647 = vrot.slane %v643, 4
        %v649 = vshrl.u32 %v379, 16
        %v651 = vrot.slane %v649, 7
        %v652 = vshll.u32 %v379, 16
        %v654 = vor.u32 %v651, %v652
        %v655 = vsel %vm383, %v647, %v654
        %v657 = vshrl.u32 %v380, 16
        %v659 = vrot.slane %v657, 7
        %v660 = vshll.u32 %v380, 16
        %v662 = vor.u32 %v659, %v660
        %v663 = vrot.slane %v659, 4
        %v665 = vshrl.u32 %v381, 16
        %v667 = vrot.slane %v665, 7
        %v668 = vshll.u32 %v381, 16
        %v670 = vor.u32 %v667, %v668
        %v671 = vsel %vm383, %v663, %v670
        %vm708 = vcmask 125952
        %vm709 = vsmask.f32 7938
        %vm710 = vmand %vm708, %vm709
        %v711 = vld [vmem:[#allocation2] sm:$0xf]
        %v712 = vsel %vm710, %v390, %v711
        %713 = vst [vmem:[#allocation2] sm:$0xf] %v712
        %vm714 = vcmask 125952
        %715 = vst.msk [vmem:[#allocation2 + $0x4] sm:$0xf] %vm714, %v399
        %v716 = vld [vmem:[#allocation2 + $0x8] sm:$0xf]
        %v717 = vsel %vm710, %v406, %v716
        %718 = vst [vmem:[#allocation2 + $0x8] sm:$0xf] %v717
        %719 = vst.msk [vmem:[#allocation2 + $0xc] sm:$0xf] %vm714, %v415
        %v720 = vld [vmem:[#allocation2 + $0x10] sm:$0xf]
        %v721 = vsel %vm710, %v422, %v720
        %722 = vst [vmem:[#allocation2 + $0x10] sm:$0xf] %v721
        %723 = vst.msk [vmem:[#allocation2 + $0x14] sm:$0xf] %vm714, %v431
        %v724 = vld [vmem:[#allocation2 + $0x18] sm:$0xf]
        %v725 = vsel %vm710, %v438, %v724
        %726 = vst [vmem:[#allocation2 + $0x18] sm:$0xf] %v725
        %727 = vst.msk [vmem:[#allocation2 + $0x1c] sm:$0xf] %vm714, %v447
        %v728 = vld [vmem:[#allocation2 + $0x20] sm:$0xf]
        %v729 = vsel %vm710, %v454, %v728
        %730 = vst [vmem:[#allocation2 + $0x20] sm:$0xf] %v729
        %731 = vst.msk [vmem:[#allocation2 + $0x24] sm:$0xf] %vm714, %v463
        %v732 = vld [vmem:[#allocation2 + $0x28] sm:$0xf]
        %v733 = vsel %vm710, %v470, %v732
        %734 = vst [vmem:[#allocation2 + $0x28] sm:$0xf] %v733
        %735 = vst.msk [vmem:[#allocation2 + $0x2c] sm:$0xf] %vm714, %v479
        %v736 = vld [vmem:[#allocation2 + $0x30] sm:$0xf]
        %v737 = vsel %vm710, %v486, %v736
        %738 = vst [vmem:[#allocation2 + $0x30] sm:$0xf] %v737
        %739 = vst.msk [vmem:[#allocation2 + $0x34] sm:$0xf] %vm714, %v495
        %v740 = vld [vmem:[#allocation2 + $0x38] sm:$0xf]
        %v741 = vsel %vm710, %v502, %v740
        %742 = vst [vmem:[#allocation2 + $0x38] sm:$0xf] %v741
        %743 = vst.msk [vmem:[#allocation2 + $0x3c] sm:$0xf] %vm714, %v511
        %v744 = vld [vmem:[#allocation2 + $0x40] sm:$0xf]
        %v745 = vsel %vm710, %v518, %v744
        %746 = vst [vmem:[#allocation2 + $0x40] sm:$0xf] %v745
        %747 = vst.msk [vmem:[#allocation2 + $0x44] sm:$0xf] %vm714, %v527
        %v748 = vld [vmem:[#allocation2 + $0x48] sm:$0xf]
        %v749 = vsel %vm710, %v534, %v748
        %750 = vst [vmem:[#allocation2 + $0x48] sm:$0xf] %v749
        %751 = vst.msk [vmem:[#allocation2 + $0x4c] sm:$0xf] %vm714, %v543
        %v752 = vld [vmem:[#allocation2 + $0x50] sm:$0xf]
        %v753 = vsel %vm710, %v550, %v752
        %754 = vst [vmem:[#allocation2 + $0x50] sm:$0xf] %v753
        %755 = vst.msk [vmem:[#allocation2 + $0x54] sm:$0xf] %vm714, %v559
        %v756 = vld [vmem:[#allocation2 + $0x58] sm:$0xf]
        %v757 = vsel %vm710, %v566, %v756
        %758 = vst [vmem:[#allocation2 + $0x58] sm:$0xf] %v757
        %759 = vst.msk [vmem:[#allocation2 + $0x5c] sm:$0xf] %vm714, %v575
        %v760 = vld [vmem:[#allocation2 + $0x60] sm:$0xf]
        %v761 = vsel %vm710, %v582, %v760
        %762 = vst [vmem:[#allocation2 + $0x60] sm:$0xf] %v761
        %763 = vst.msk [vmem:[#allocation2 + $0x64] sm:$0xf] %vm714, %v591
        %v764 = vld [vmem:[#allocation2 + $0x68] sm:$0xf]
        %v765 = vsel %vm710, %v598, %v764
        %766 = vst [vmem:[#allocation2 + $0x68] sm:$0xf] %v765
        %767 = vst.msk [vmem:[#allocation2 + $0x6c] sm:$0xf] %vm714, %v607
        %v768 = vld [vmem:[#allocation2 + $0x70] sm:$0xf]
        %v769 = vsel %vm710, %v614, %v768
        %770 = vst [vmem:[#allocation2 + $0x70] sm:$0xf] %v769
        %771 = vst.msk [vmem:[#allocation2 + $0x74] sm:$0xf] %vm714, %v623
        %v772 = vld [vmem:[#allocation2 + $0x78] sm:$0xf]
        %v773 = vsel %vm710, %v630, %v772
        %774 = vst [vmem:[#allocation2 + $0x78] sm:$0xf] %v773
        %775 = vst.msk [vmem:[#allocation2 + $0x7c] sm:$0xf] %vm714, %v639
        %v776 = vld [vmem:[#allocation2 + $0x80] sm:$0xf]
        %v777 = vsel %vm710, %v646, %v776
        %778 = vst [vmem:[#allocation2 + $0x80] sm:$0xf] %v777
        %779 = vst.msk [vmem:[#allocation2 + $0x84] sm:$0xf] %vm714, %v655
        %v780 = vld [vmem:[#allocation2 + $0x88] sm:$0xf]
        %v781 = vsel %vm710, %v662, %v780
        %782 = vst [vmem:[#allocation2 + $0x88] sm:$0xf] %v781
        %783 = vst.msk [vmem:[#allocation2 + $0x8c] sm:$0xf] %vm714, %v671
        %vm784 = vcmask 125955
        %vm785 = vsmask.f32 7950
        %vm786 = vmand %vm784, %vm785
        %v787 = vld [vmem:[#allocation3 + $0x4] sm:$0x8]
        %v788 = vsel %vm786, 0, %v787
        %789 = vst [vmem:[#allocation3 + $0x4] sm:$0x8] %v788
        %v790 = vld [vmem:[#allocation3 + $0xc] sm:$0x8]
        %v791 = vsel %vm786, 0, %v790
        %792 = vst [vmem:[#allocation3 + $0xc] sm:$0x8] %v791
        %v793 = vld [vmem:[#allocation3 + $0x14] sm:$0x8]
        %v794 = vsel %vm786, 0, %v793
        %795 = vst [vmem:[#allocation3 + $0x14] sm:$0x8] %v794
        %v796 = vld [vmem:[#allocation3 + $0x1c] sm:$0x8]
        %v797 = vsel %vm786, 0, %v796
        %798 = vst [vmem:[#allocation3 + $0x1c] sm:$0x8] %v797
        %v799 = vld [vmem:[#allocation3 + $0x24] sm:$0x8]
        %v800 = vsel %vm786, 0, %v799
        %801 = vst [vmem:[#allocation3 + $0x24] sm:$0x8] %v800
        %v802 = vld [vmem:[#allocation3 + $0x2c] sm:$0x8]
        %v803 = vsel %vm786, 0, %v802
        %804 = vst [vmem:[#allocation3 + $0x2c] sm:$0x8] %v803
        %v805 = vld [vmem:[#allocation3 + $0x34] sm:$0x8]
        %v806 = vsel %vm786, 0, %v805
        %807 = vst [vmem:[#allocation3 + $0x34] sm:$0x8] %v806
        %v808 = vld [vmem:[#allocation3 + $0x3c] sm:$0x8]
        %v809 = vsel %vm786, 0, %v808
        %810 = vst [vmem:[#allocation3 + $0x3c] sm:$0x8] %v809
        %v811 = vld [vmem:[#allocation3 + $0x44] sm:$0x8]
        %v812 = vsel %vm786, 0, %v811
        %813 = vst [vmem:[#allocation3 + $0x44] sm:$0x8] %v812
        %v814 = vld [vmem:[#allocation3 + $0x4c] sm:$0x8]
        %v815 = vsel %vm786, 0, %v814
        %816 = vst [vmem:[#allocation3 + $0x4c] sm:$0x8] %v815
        %v817 = vld [vmem:[#allocation3 + $0x54] sm:$0x8]
        %v818 = vsel %vm786, 0, %v817
        %819 = vst [vmem:[#allocation3 + $0x54] sm:$0x8] %v818
        %v820 = vld [vmem:[#allocation3 + $0x5c] sm:$0x8]
        %v821 = vsel %vm786, 0, %v820
        %822 = vst [vmem:[#allocation3 + $0x5c] sm:$0x8] %v821
        %v823 = vld [vmem:[#allocation3 + $0x64] sm:$0x8]
        %v824 = vsel %vm786, 0, %v823
        %825 = vst [vmem:[#allocation3 + $0x64] sm:$0x8] %v824
        %v826 = vld [vmem:[#allocation3 + $0x6c] sm:$0x8]
        %v827 = vsel %vm786, 0, %v826
        %828 = vst [vmem:[#allocation3 + $0x6c] sm:$0x8] %v827
        %v829 = vld [vmem:[#allocation3 + $0x74] sm:$0x8]
        %v830 = vsel %vm786, 0, %v829
        %831 = vst [vmem:[#allocation3 + $0x74] sm:$0x8] %v830
        %v832 = vld [vmem:[#allocation3 + $0x7c] sm:$0x8]
        %v833 = vsel %vm786, 0, %v832
        %834 = vst [vmem:[#allocation3 + $0x7c] sm:$0x8] %v833
        %v835 = vld [vmem:[#allocation3 + $0x84] sm:$0x8]
        %v836 = vsel %vm786, 0, %v835
        %837 = vst [vmem:[#allocation3 + $0x84] sm:$0x8] %v836
        %v838 = vld [vmem:[#allocation3 + $0x8c] sm:$0x8]
        %v839 = vsel %vm786, 0, %v838
        %840 = vst [vmem:[#allocation3 + $0x8c] sm:$0x8] %v839
        %v841 = vld [vmem:[%s282] sm:$0xf]
        %v842 = vld [vmem:[%s282 + $0x4] sm:$0xf]
        %v843 = vld [vmem:[%s282 + $0x8] sm:$0xf]
        %v844 = vld [vmem:[%s282 + $0xc] sm:$0xf]
        %v845 = vld [vmem:[%s282 + $0x10] sm:$0xf]
        %v846 = vld [vmem:[%s282 + $0x14] sm:$0xf]
        %v847 = vld [vmem:[%s282 + $0x18] sm:$0xf]
        %v848 = vld [vmem:[%s282 + $0x1c] sm:$0xf]
        %v849 = vld [vmem:[%s282 + $0x20] sm:$0xf]
        %v850 = vld [vmem:[%s282 + $0x24] sm:$0xf]
        %v851 = vld [vmem:[%s282 + $0x28] sm:$0xf]
        %v852 = vld [vmem:[%s282 + $0x2c] sm:$0xf]
        %v853 = vld [vmem:[%s282 + $0x30] sm:$0xf]
        %v854 = vld [vmem:[%s282 + $0x34] sm:$0xf]
        %v855 = vld [vmem:[%s282 + $0x38] sm:$0xf]
        %v856 = vld [vmem:[%s282 + $0x3c] sm:$0xf]
        %v857 = vld [vmem:[%s282 + $0x40] sm:$0xf]
        %v858 = vld [vmem:[%s282 + $0x44] sm:$0xf]
        %v859 = vld [vmem:[%s282 + $0x48] sm:$0xf]
        %v860 = vld [vmem:[%s282 + $0x4c] sm:$0xf]
        %v861 = vld [vmem:[%s282 + $0x50] sm:$0xf]
        %v862 = vld [vmem:[%s282 + $0x54] sm:$0xf]
        %v863 = vld [vmem:[%s282 + $0x58] sm:$0xf]
        %v864 = vld [vmem:[%s282 + $0x5c] sm:$0xf]
        %v865 = vld [vmem:[%s282 + $0x60] sm:$0xf]
        %v866 = vld [vmem:[%s282 + $0x64] sm:$0xf]
        %v867 = vld [vmem:[%s282 + $0x68] sm:$0xf]
        %v868 = vld [vmem:[%s282 + $0x6c] sm:$0xf]
        %v869 = vld [vmem:[%s282 + $0x70] sm:$0xf]
        %v870 = vld [vmem:[%s282 + $0x74] sm:$0xf]
        %v871 = vld [vmem:[%s282 + $0x78] sm:$0xf]
        %v872 = vld [vmem:[%s282 + $0x7c] sm:$0xf]
        %v873 = vld [vmem:[%s282 + $0x80] sm:$0xf]
        %v874 = vld [vmem:[%s282 + $0x84] sm:$0xf]
        %v875 = vld [vmem:[%s282 + $0x88] sm:$0xf]
        %v876 = vld [vmem:[%s282 + $0x8c] sm:$0xf]
        %vm877 = vsmask.f32 3328
        %vm878 = vsmask.f32 7440
        %vm879 = vmor %vm877, %vm878
        %v881 = vshrl.u32 %v841, 16
        %v883 = vrot.slane %v881, 4
        %v884 = vshll.u32 %v841, 16
        %v886 = vrot.slane %v884, 5
        %v887 = vor.u32 %v883, %v886
        %v888 = vrot.slane %v887, 4
        %v890 = vshll.u32 %v842, 16
        %v892 = vrot.slane %v890, 5
        %v893 = vsel %vm879, %v888, %v892
        %v894 = vshrl.u32 %v842, 16
        %v896 = vrot.slane %v894, 4
        %v897 = vor.u32 %v896, %v892
        %v898 = vrot.slane %v897, 4
        %v900 = vshrl.u32 %v843, 16
        %v902 = vrot.slane %v900, 4
        %v903 = vshll.u32 %v843, 16
        %v905 = vrot.slane %v903, 5
        %v906 = vor.u32 %v902, %v905
        %v907 = vrot.slane %v906, 4
        %v909 = vshll.u32 %v844, 16
        %v911 = vrot.slane %v909, 5
        %v912 = vsel %vm879, %v907, %v911
        %v913 = vshrl.u32 %v844, 16
        %v915 = vrot.slane %v913, 4
        %v916 = vor.u32 %v915, %v911
        %v917 = vrot.slane %v916, 4
        %v919 = vshrl.u32 %v845, 16
        %v921 = vrot.slane %v919, 4
        %v922 = vshll.u32 %v845, 16
        %v924 = vrot.slane %v922, 5
        %v925 = vor.u32 %v921, %v924
        %v926 = vrot.slane %v925, 4
        %v928 = vshll.u32 %v846, 16
        %v930 = vrot.slane %v928, 5
        %v931 = vsel %vm879, %v926, %v930
        %v932 = vshrl.u32 %v846, 16
        %v934 = vrot.slane %v932, 4
        %v935 = vor.u32 %v934, %v930
        %v936 = vrot.slane %v935, 4
        %v938 = vshrl.u32 %v847, 16
        %v940 = vrot.slane %v938, 4
        %v941 = vshll.u32 %v847, 16
        %v943 = vrot.slane %v941, 5
        %v944 = vor.u32 %v940, %v943
        %v945 = vrot.slane %v944, 4
        %v947 = vshll.u32 %v848, 16
        %v949 = vrot.slane %v947, 5
        %v950 = vsel %vm879, %v945, %v949
        %v951 = vshrl.u32 %v848, 16
        %v953 = vrot.slane %v951, 4
        %v954 = vor.u32 %v953, %v949
        %v955 = vrot.slane %v954, 4
        %v957 = vshrl.u32 %v849, 16
        %v959 = vrot.slane %v957, 4
        %v960 = vshll.u32 %v849, 16
        %v962 = vrot.slane %v960, 5
        %v963 = vor.u32 %v959, %v962
        %v964 = vrot.slane %v963, 4
        %v966 = vshll.u32 %v850, 16
        %v968 = vrot.slane %v966, 5
        %v969 = vsel %vm879, %v964, %v968
        %v970 = vshrl.u32 %v850, 16
        %v972 = vrot.slane %v970, 4
        %v973 = vor.u32 %v972, %v968
        %v974 = vrot.slane %v973, 4
        %v976 = vshrl.u32 %v851, 16
        %v978 = vrot.slane %v976, 4
        %v979 = vshll.u32 %v851, 16
        %v981 = vrot.slane %v979, 5
        %v982 = vor.u32 %v978, %v981
        %v983 = vrot.slane %v982, 4
        %v985 = vshll.u32 %v852, 16
        %v987 = vrot.slane %v985, 5
        %v988 = vsel %vm879, %v983, %v987
        %v989 = vshrl.u32 %v852, 16
        %v991 = vrot.slane %v989, 4
        %v992 = vor.u32 %v991, %v987
        %v993 = vrot.slane %v992, 4
        %v995 = vshrl.u32 %v853, 16
        %v997 = vrot.slane %v995, 4
        %v998 = vshll.u32 %v853, 16
        %v1000 = vrot.slane %v998, 5
        %v1001 = vor.u32 %v997, %v1000
        %v1002 = vrot.slane %v1001, 4
        %v1004 = vshll.u32 %v854, 16
        %v1006 = vrot.slane %v1004, 5
        %v1007 = vsel %vm879, %v1002, %v1006
        %v1008 = vshrl.u32 %v854, 16
        %v1010 = vrot.slane %v1008, 4
        %v1011 = vor.u32 %v1010, %v1006
        %v1012 = vrot.slane %v1011, 4
        %v1014 = vshrl.u32 %v855, 16
        %v1016 = vrot.slane %v1014, 4
        %v1017 = vshll.u32 %v855, 16
        %v1019 = vrot.slane %v1017, 5
        %v1020 = vor.u32 %v1016, %v1019
        %v1021 = vrot.slane %v1020, 4
        %v1023 = vshll.u32 %v856, 16
        %v1025 = vrot.slane %v1023, 5
        %v1026 = vsel %vm879, %v1021, %v1025
        %v1027 = vshrl.u32 %v856, 16
        %v1029 = vrot.slane %v1027, 4
        %v1030 = vor.u32 %v1029, %v1025
        %v1031 = vrot.slane %v1030, 4
        %v1033 = vshrl.u32 %v857, 16
        %v1035 = vrot.slane %v1033, 4
        %v1036 = vshll.u32 %v857, 16
        %v1038 = vrot.slane %v1036, 5
        %v1039 = vor.u32 %v1035, %v1038
        %v1040 = vrot.slane %v1039, 4
        %v1042 = vshll.u32 %v858, 16
        %v1044 = vrot.slane %v1042, 5
        %v1045 = vsel %vm879, %v1040, %v1044
        %v1046 = vshrl.u32 %v858, 16
        %v1048 = vrot.slane %v1046, 4
        %v1049 = vor.u32 %v1048, %v1044
        %v1050 = vrot.slane %v1049, 4
        %v1052 = vshrl.u32 %v859, 16
        %v1054 = vrot.slane %v1052, 4
        %v1055 = vshll.u32 %v859, 16
        %v1057 = vrot.slane %v1055, 5
        %v1058 = vor.u32 %v1054, %v1057
        %v1059 = vrot.slane %v1058, 4
        %v1061 = vshll.u32 %v860, 16
        %v1063 = vrot.slane %v1061, 5
        %v1064 = vsel %vm879, %v1059, %v1063
        %v1065 = vshrl.u32 %v860, 16
        %v1067 = vrot.slane %v1065, 4
        %v1068 = vor.u32 %v1067, %v1063
        %v1069 = vrot.slane %v1068, 4
        %v1071 = vshrl.u32 %v861, 16
        %v1073 = vrot.slane %v1071, 4
        %v1074 = vshll.u32 %v861, 16
        %v1076 = vrot.slane %v1074, 5
        %v1077 = vor.u32 %v1073, %v1076
        %v1078 = vrot.slane %v1077, 4
        %v1080 = vshll.u32 %v862, 16
        %v1082 = vrot.slane %v1080, 5
        %v1083 = vsel %vm879, %v1078, %v1082
        %v1084 = vshrl.u32 %v862, 16
        %v1086 = vrot.slane %v1084, 4
        %v1087 = vor.u32 %v1086, %v1082
        %v1088 = vrot.slane %v1087, 4
        %v1090 = vshrl.u32 %v863, 16
        %v1092 = vrot.slane %v1090, 4
        %v1093 = vshll.u32 %v863, 16
        %v1095 = vrot.slane %v1093, 5
        %v1096 = vor.u32 %v1092, %v1095
        %v1097 = vrot.slane %v1096, 4
        %v1099 = vshll.u32 %v864, 16
        %v1101 = vrot.slane %v1099, 5
        %v1102 = vsel %vm879, %v1097, %v1101
        %v1103 = vshrl.u32 %v864, 16
        %v1105 = vrot.slane %v1103, 4
        %v1106 = vor.u32 %v1105, %v1101
        %v1107 = vrot.slane %v1106, 4
        %v1109 = vshrl.u32 %v865, 16
        %v1111 = vrot.slane %v1109, 4
        %v1112 = vshll.u32 %v865, 16
        %v1114 = vrot.slane %v1112, 5
        %v1115 = vor.u32 %v1111, %v1114
        %v1116 = vrot.slane %v1115, 4
        %v1118 = vshll.u32 %v866, 16
        %v1120 = vrot.slane %v1118, 5
        %v1121 = vsel %vm879, %v1116, %v1120
        %v1122 = vshrl.u32 %v866, 16
        %v1124 = vrot.slane %v1122, 4
        %v1125 = vor.u32 %v1124, %v1120
        %v1126 = vrot.slane %v1125, 4
        %v1128 = vshrl.u32 %v867, 16
        %v1130 = vrot.slane %v1128, 4
        %v1131 = vshll.u32 %v867, 16
        %v1133 = vrot.slane %v1131, 5
        %v1134 = vor.u32 %v1130, %v1133
        %v1135 = vrot.slane %v1134, 4
        %v1137 = vshll.u32 %v868, 16
        %v1139 = vrot.slane %v1137, 5
        %v1140 = vsel %vm879, %v1135, %v1139
        %v1141 = vshrl.u32 %v868, 16
        %v1143 = vrot.slane %v1141, 4
        %v1144 = vor.u32 %v1143, %v1139
        %v1145 = vrot.slane %v1144, 4
        %v1147 = vshrl.u32 %v869, 16
        %v1149 = vrot.slane %v1147, 4
        %v1150 = vshll.u32 %v869, 16
        %v1152 = vrot.slane %v1150, 5
        %v1153 = vor.u32 %v1149, %v1152
        %v1154 = vrot.slane %v1153, 4
        %v1156 = vshll.u32 %v870, 16
        %v1158 = vrot.slane %v1156, 5
        %v1159 = vsel %vm879, %v1154, %v1158
        %v1160 = vshrl.u32 %v870, 16
        %v1162 = vrot.slane %v1160, 4
        %v1163 = vor.u32 %v1162, %v1158
        %v1164 = vrot.slane %v1163, 4
        %v1166 = vshrl.u32 %v871, 16
        %v1168 = vrot.slane %v1166, 4
        %v1169 = vshll.u32 %v871, 16
        %v1171 = vrot.slane %v1169, 5
        %v1172 = vor.u32 %v1168, %v1171
        %v1173 = vrot.slane %v1172, 4
        %v1175 = vshll.u32 %v872, 16
        %v1177 = vrot.slane %v1175, 5
        %v1178 = vsel %vm879, %v1173, %v1177
        %v1179 = vshrl.u32 %v872, 16
        %v1181 = vrot.slane %v1179, 4
        %v1182 = vor.u32 %v1181, %v1177
        %v1183 = vrot.slane %v1182, 4
        %v1185 = vshrl.u32 %v873, 16
        %v1187 = vrot.slane %v1185, 4
        %v1188 = vshll.u32 %v873, 16
        %v1190 = vrot.slane %v1188, 5
        %v1191 = vor.u32 %v1187, %v1190
        %v1192 = vrot.slane %v1191, 4
        %v1194 = vshll.u32 %v874, 16
        %v1196 = vrot.slane %v1194, 5
        %v1197 = vsel %vm879, %v1192, %v1196
        %v1198 = vshrl.u32 %v874, 16
        %v1200 = vrot.slane %v1198, 4
        %v1201 = vor.u32 %v1200, %v1196
        %v1202 = vrot.slane %v1201, 4
        %v1204 = vshrl.u32 %v875, 16
        %v1206 = vrot.slane %v1204, 4
        %v1207 = vshll.u32 %v875, 16
        %v1209 = vrot.slane %v1207, 5
        %v1210 = vor.u32 %v1206, %v1209
        %v1211 = vrot.slane %v1210, 4
        %v1213 = vshll.u32 %v876, 16
        %v1215 = vrot.slane %v1213, 5
        %v1216 = vsel %vm879, %v1211, %v1215
        %v1217 = vshrl.u32 %v876, 16
        %v1219 = vrot.slane %v1217, 4
        %v1220 = vor.u32 %v1219, %v1215
        %v1221 = vrot.slane %v1220, 4
        %1258 = vst.msk [vmem:[#allocation3] sm:$0xf] %vm714, %v893
        %vm1259 = vmand %vm708, %vm877
        %v1260 = vld [vmem:[#allocation3 + $0x4] sm:$0xf]
        %v1261 = vsel %vm1259, %v898, %v1260
        %1262 = vst [vmem:[#allocation3 + $0x4] sm:$0xf] %v1261
        %1263 = vst.msk [vmem:[#allocation3 + $0x8] sm:$0xf] %vm714, %v912
        %v1264 = vld [vmem:[#allocation3 + $0xc] sm:$0xf]
        %v1265 = vsel %vm1259, %v917, %v1264
        %1266 = vst [vmem:[#allocation3 + $0xc] sm:$0xf] %v1265
        %1267 = vst.msk [vmem:[#allocation3 + $0x10] sm:$0xf] %vm714, %v931
        %v1268 = vld [vmem:[#allocation3 + $0x14] sm:$0xf]
        %v1269 = vsel %vm1259, %v936, %v1268
        %1270 = vst [vmem:[#allocation3 + $0x14] sm:$0xf] %v1269
        %1271 = vst.msk [vmem:[#allocation3 + $0x18] sm:$0xf] %vm714, %v950
        %v1272 = vld [vmem:[#allocation3 + $0x1c] sm:$0xf]
        %v1273 = vsel %vm1259, %v955, %v1272
        %1274 = vst [vmem:[#allocation3 + $0x1c] sm:$0xf] %v1273
        %1275 = vst.msk [vmem:[#allocation3 + $0x20] sm:$0xf] %vm714, %v969
        %v1276 = vld [vmem:[#allocation3 + $0x24] sm:$0xf]
        %v1277 = vsel %vm1259, %v974, %v1276
        %1278 = vst [vmem:[#allocation3 + $0x24] sm:$0xf] %v1277
        %1279 = vst.msk [vmem:[#allocation3 + $0x28] sm:$0xf] %vm714, %v988
        %v1280 = vld [vmem:[#allocation3 + $0x2c] sm:$0xf]
        %v1281 = vsel %vm1259, %v993, %v1280
        %1282 = vst [vmem:[#allocation3 + $0x2c] sm:$0xf] %v1281
        %1283 = vst.msk [vmem:[#allocation3 + $0x30] sm:$0xf] %vm714, %v1007
        %v1284 = vld [vmem:[#allocation3 + $0x34] sm:$0xf]
        %v1285 = vsel %vm1259, %v1012, %v1284
        %1286 = vst [vmem:[#allocation3 + $0x34] sm:$0xf] %v1285
        %1287 = vst.msk [vmem:[#allocation3 + $0x38] sm:$0xf] %vm714, %v1026
        %v1288 = vld [vmem:[#allocation3 + $0x3c] sm:$0xf]
        %v1289 = vsel %vm1259, %v1031, %v1288
        %1290 = vst [vmem:[#allocation3 + $0x3c] sm:$0xf] %v1289
        %1291 = vst.msk [vmem:[#allocation3 + $0x40] sm:$0xf] %vm714, %v1045
        %v1292 = vld [vmem:[#allocation3 + $0x44] sm:$0xf]
        %v1293 = vsel %vm1259, %v1050, %v1292
        %1294 = vst [vmem:[#allocation3 + $0x44] sm:$0xf] %v1293
        %1295 = vst.msk [vmem:[#allocation3 + $0x48] sm:$0xf] %vm714, %v1064
        %v1296 = vld [vmem:[#allocation3 + $0x4c] sm:$0xf]
        %v1297 = vsel %vm1259, %v1069, %v1296
        %1298 = vst [vmem:[#allocation3 + $0x4c] sm:$0xf] %v1297
        %1299 = vst.msk [vmem:[#allocation3 + $0x50] sm:$0xf] %vm714, %v1083
        %v1300 = vld [vmem:[#allocation3 + $0x54] sm:$0xf]
        %v1301 = vsel %vm1259, %v1088, %v1300
        %1302 = vst [vmem:[#allocation3 + $0x54] sm:$0xf] %v1301
        %1303 = vst.msk [vmem:[#allocation3 + $0x58] sm:$0xf] %vm714, %v1102
        %v1304 = vld [vmem:[#allocation3 + $0x5c] sm:$0xf]
        %v1305 = vsel %vm1259, %v1107, %v1304
        %1306 = vst [vmem:[#allocation3 + $0x5c] sm:$0xf] %v1305
        %1307 = vst.msk [vmem:[#allocation3 + $0x60] sm:$0xf] %vm714, %v1121
        %v1308 = vld [vmem:[#allocation3 + $0x64] sm:$0xf]
        %v1309 = vsel %vm1259, %v1126, %v1308
        %1310 = vst [vmem:[#allocation3 + $0x64] sm:$0xf] %v1309
        %1311 = vst.msk [vmem:[#allocation3 + $0x68] sm:$0xf] %vm714, %v1140
        %v1312 = vld [vmem:[#allocation3 + $0x6c] sm:$0xf]
        %v1313 = vsel %vm1259, %v1145, %v1312
        %1314 = vst [vmem:[#allocation3 + $0x6c] sm:$0xf] %v1313
        %1315 = vst.msk [vmem:[#allocation3 + $0x70] sm:$0xf] %vm714, %v1159
        %v1316 = vld [vmem:[#allocation3 + $0x74] sm:$0xf]
        %v1317 = vsel %vm1259, %v1164, %v1316
        %1318 = vst [vmem:[#allocation3 + $0x74] sm:$0xf] %v1317
        %1319 = vst.msk [vmem:[#allocation3 + $0x78] sm:$0xf] %vm714, %v1178
        %v1320 = vld [vmem:[#allocation3 + $0x7c] sm:$0xf]
        %v1321 = vsel %vm1259, %v1183, %v1320
        %1322 = vst [vmem:[#allocation3 + $0x7c] sm:$0xf] %v1321
        %1323 = vst.msk [vmem:[#allocation3 + $0x80] sm:$0xf] %vm714, %v1197
        %v1324 = vld [vmem:[#allocation3 + $0x84] sm:$0xf]
        %v1325 = vsel %vm1259, %v1202, %v1324
        %1326 = vst [vmem:[#allocation3 + $0x84] sm:$0xf] %v1325
        %1327 = vst.msk [vmem:[#allocation3 + $0x88] sm:$0xf] %vm714, %v1216
        %v1328 = vld [vmem:[#allocation3 + $0x8c] sm:$0xf]
        %v1329 = vsel %vm1259, %v1221, %v1328
        %1330 = vst [vmem:[#allocation3 + $0x8c] sm:$0xf] %v1329
        %v1331 = vld [vmem:[#allocation2] sm:$0xf]
        %v1332 = vld [vmem:[#allocation2 + $0x4] sm:$0xf]
        %v1333 = vld [vmem:[#allocation2 + $0x8] sm:$0xf]
        %v1334 = vld [vmem:[#allocation2 + $0xc] sm:$0xf]
        %v1335 = vld [vmem:[#allocation2 + $0x10] sm:$0xf]
        %v1336 = vld [vmem:[#allocation2 + $0x14] sm:$0xf]
        %v1337 = vld [vmem:[#allocation2 + $0x18] sm:$0xf]
        %v1338 = vld [vmem:[#allocation2 + $0x1c] sm:$0xf]
        %v1339 = vld [vmem:[#allocation2 + $0x20] sm:$0xf]
        %v1340 = vld [vmem:[#allocation2 + $0x24] sm:$0xf]
        %v1341 = vld [vmem:[#allocation2 + $0x28] sm:$0xf]
        %v1342 = vld [vmem:[#allocation2 + $0x2c] sm:$0xf]
        %v1343 = vld [vmem:[#allocation2 + $0x30] sm:$0xf]
        %v1344 = vld [vmem:[#allocation2 + $0x34] sm:$0xf]
        %v1345 = vld [vmem:[#allocation2 + $0x38] sm:$0xf]
        %v1346 = vld [vmem:[#allocation2 + $0x3c] sm:$0xf]
        %v1347 = vld [vmem:[#allocation2 + $0x40] sm:$0xf]
        %v1348 = vld [vmem:[#allocation2 + $0x44] sm:$0xf]
        %v1349 = vld [vmem:[#allocation2 + $0x48] sm:$0xf]
        %v1350 = vld [vmem:[#allocation2 + $0x4c] sm:$0xf]
        %v1351 = vld [vmem:[#allocation2 + $0x50] sm:$0xf]
        %v1352 = vld [vmem:[#allocation2 + $0x54] sm:$0xf]
        %v1353 = vld [vmem:[#allocation2 + $0x58] sm:$0xf]
        %v1354 = vld [vmem:[#allocation2 + $0x5c] sm:$0xf]
        %v1355 = vld [vmem:[#allocation2 + $0x60] sm:$0xf]
        %v1356 = vld [vmem:[#allocation2 + $0x64] sm:$0xf]
        %v1357 = vld [vmem:[#allocation2 + $0x68] sm:$0xf]
        %v1358 = vld [vmem:[#allocation2 + $0x6c] sm:$0xf]
        %v1359 = vld [vmem:[#allocation2 + $0x70] sm:$0xf]
        %v1360 = vld [vmem:[#allocation2 + $0x74] sm:$0xf]
        %v1361 = vld [vmem:[#allocation2 + $0x78] sm:$0xf]
        %v1362 = vld [vmem:[#allocation2 + $0x7c] sm:$0xf]
        %v1363 = vld [vmem:[#allocation4] sm:$0xf]
        %v1364 = vld [vmem:[#allocation4 + $0x4] sm:$0xf]
        %v1365 = vld [vmem:[%s282] sm:$0xf]
        %v1366 = vld [vmem:[%s282 + $0x4] sm:$0xf]
        %v1367 = vld [vmem:[%s282 + $0x8] sm:$0xf]
        %v1368 = vld [vmem:[%s282 + $0xc] sm:$0xf]
        %v1369 = vld [vmem:[%s282 + $0x10] sm:$0xf]
        %v1370 = vld [vmem:[%s282 + $0x14] sm:$0xf]
        %v1371 = vld [vmem:[%s282 + $0x18] sm:$0xf]
        %v1372 = vld [vmem:[%s282 + $0x1c] sm:$0xf]
        %v1373 = vld [vmem:[%s282 + $0x20] sm:$0xf]
        %v1374 = vld [vmem:[%s282 + $0x24] sm:$0xf]
        %v1375 = vld [vmem:[%s282 + $0x28] sm:$0xf]
        %v1376 = vld [vmem:[%s282 + $0x2c] sm:$0xf]
        %v1377 = vld [vmem:[%s282 + $0x30] sm:$0xf]
        %v1378 = vld [vmem:[%s282 + $0x34] sm:$0xf]
        %v1379 = vld [vmem:[%s282 + $0x38] sm:$0xf]
        %v1380 = vld [vmem:[%s282 + $0x3c] sm:$0xf]
        %v1381 = vld [vmem:[%s282 + $0x40] sm:$0xf]
        %v1382 = vld [vmem:[%s282 + $0x44] sm:$0xf]
        %v1383 = vld [vmem:[%s282 + $0x48] sm:$0xf]
        %v1384 = vld [vmem:[%s282 + $0x4c] sm:$0xf]
        %v1385 = vld [vmem:[%s282 + $0x50] sm:$0xf]
        %v1386 = vld [vmem:[%s282 + $0x54] sm:$0xf]
        %v1387 = vld [vmem:[%s282 + $0x58] sm:$0xf]
        %v1388 = vld [vmem:[%s282 + $0x5c] sm:$0xf]
        %v1389 = vld [vmem:[%s282 + $0x60] sm:$0xf]
        %v1390 = vld [vmem:[%s282 + $0x64] sm:$0xf]
        %v1391 = vld [vmem:[%s282 + $0x68] sm:$0xf]
        %v1392 = vld [vmem:[%s282 + $0x6c] sm:$0xf]
        %v1393 = vld [vmem:[%s282 + $0x70] sm:$0xf]
        %v1394 = vld [vmem:[%s282 + $0x74] sm:$0xf]
        %v1395 = vld [vmem:[%s282 + $0x78] sm:$0xf]
        %v1396 = vld [vmem:[%s282 + $0x7c] sm:$0xf]
        %s1397 = scalar_lea.vmem [#allocation4], 8
        %v1398 = vld [vmem:[%s1397] sm:$0xf]
        %v1399 = vld [vmem:[%s1397 + $0x4] sm:$0xf]
        %v1432 = vunpack.c.l.b16 %v1365
        %v1433 = vunpack.c.l.b16 %v1366
        %v1434 = vunpack.c.l.b16 %v1367
        %v1435 = vunpack.c.l.b16 %v1368
        %v1436 = vunpack.c.l.b16 %v1369
        %v1437 = vunpack.c.l.b16 %v1370
        %v1438 = vunpack.c.l.b16 %v1371
        %v1439 = vunpack.c.l.b16 %v1372
        %v1440 = vunpack.c.l.b16 %v1373
        %v1441 = vunpack.c.l.b16 %v1374
        %v1442 = vunpack.c.l.b16 %v1375
        %v1443 = vunpack.c.l.b16 %v1376
        %v1444 = vunpack.c.l.b16 %v1377
        %v1445 = vunpack.c.l.b16 %v1378
        %v1446 = vunpack.c.l.b16 %v1379
        %v1447 = vunpack.c.l.b16 %v1380
        %v1448 = vunpack.c.l.b16 %v1381
        %v1449 = vunpack.c.l.b16 %v1382
        %v1450 = vunpack.c.l.b16 %v1383
        %v1451 = vunpack.c.l.b16 %v1384
        %v1452 = vunpack.c.l.b16 %v1385
        %v1453 = vunpack.c.l.b16 %v1386
        %v1454 = vunpack.c.l.b16 %v1387
        %v1455 = vunpack.c.l.b16 %v1388
        %v1456 = vunpack.c.l.b16 %v1389
        %v1457 = vunpack.c.l.b16 %v1390
        %v1458 = vunpack.c.l.b16 %v1391
        %v1459 = vunpack.c.l.b16 %v1392
        %v1460 = vunpack.c.l.b16 %v1393
        %v1461 = vunpack.c.l.b16 %v1394
        %v1462 = vunpack.c.l.b16 %v1395
        %v1463 = vunpack.c.l.b16 %v1396
        %v1464 = vpack.c.b16 %v1433, %v1432
        %v1465 = vpack.c.b16 %v1435, %v1434
        %v1466 = vpack.c.b16 %v1437, %v1436
        %v1467 = vpack.c.b16 %v1439, %v1438
        %v1468 = vpack.c.b16 %v1441, %v1440
        %v1469 = vpack.c.b16 %v1443, %v1442
        %v1470 = vpack.c.b16 %v1445, %v1444
        %v1471 = vpack.c.b16 %v1447, %v1446
        %v1472 = vpack.c.b16 %v1449, %v1448
        %v1473 = vpack.c.b16 %v1451, %v1450
        %v1474 = vpack.c.b16 %v1453, %v1452
        %v1475 = vpack.c.b16 %v1455, %v1454
        %v1476 = vpack.c.b16 %v1457, %v1456
        %v1477 = vpack.c.b16 %v1459, %v1458
        %v1478 = vpack.c.b16 %v1461, %v1460
        %v1479 = vpack.c.b16 %v1463, %v1462
        %v1482 = vunpack.c.l.b16 %v1398
        %v1483 = vunpack.c.l.b16 %v1399
        %v1484 = vpack.c.b16 %v1483, %v1482
        %vm1486 = vcmask 130048
        %v1488 = vsel %vm1486, %v1464, 0
        %v1491 = vsel %vm1486, %v1465, 0
        %v1494 = vsel %vm1486, %v1466, 0
        %v1497 = vsel %vm1486, %v1467, 0
        %v1500 = vsel %vm1486, %v1468, 0
        %v1503 = vsel %vm1486, %v1469, 0
        %v1506 = vsel %vm1486, %v1470, 0
        %v1509 = vsel %vm1486, %v1471, 0
        %v1512 = vsel %vm1486, %v1472, 0
        %v1515 = vsel %vm1486, %v1473, 0
        %v1518 = vsel %vm1486, %v1474, 0
        %v1521 = vsel %vm1486, %v1475, 0
        %v1524 = vsel %vm1486, %v1476, 0
        %v1527 = vsel %vm1486, %v1477, 0
        %v1530 = vsel %vm1486, %v1478, 0
        %v1533 = vsel %vm1486, %v1479, 0
        %1535 = vmatpush.bf16.msra.mxu0 0
        %1536 = vmatpush.bf16.msra.mxu0 0
        %1537 = vmatpush.bf16.msra.mxu0 0
        %1538 = vmatpush.bf16.msra.mxu0 0
        %1539 = vmatpush.bf16.msra.mxu0 0
        %1540 = vmatpush.bf16.msra.mxu0 0
        %1541 = vmatpush.bf16.msra.mxu0 0
        %1542 = vmatpush.bf16.msra.mxu0 %v1484
        %1543 = vmatmul.bf16.gmra.mxu0 %v1488
        %v1544 = vpop.f32.mrf.mxu0
        %v1545 = vadd.f32 0.0, %v1544
        %v1546 = vpop.f32.mrf.mxu0
        %v1547 = vadd.f32 0.0, %v1546
        %1548 = vmatmul.bf16.gmra.mxu0 %v1491
        %v1549 = vpop.f32.mrf.mxu0
        %v1550 = vadd.f32 0.0, %v1549
        %v1551 = vpop.f32.mrf.mxu0
        %v1552 = vadd.f32 0.0, %v1551
        %1553 = vmatmul.bf16.gmra.mxu0 %v1494
        %v1554 = vpop.f32.mrf.mxu0
        %v1555 = vadd.f32 0.0, %v1554
        %v1556 = vpop.f32.mrf.mxu0
        %v1557 = vadd.f32 0.0, %v1556
        %1558 = vmatmul.bf16.gmra.mxu0 %v1497
        %v1559 = vpop.f32.mrf.mxu0
        %v1560 = vadd.f32 0.0, %v1559
        %v1561 = vpop.f32.mrf.mxu0
        %v1562 = vadd.f32 0.0, %v1561
        %1563 = vmatmul.bf16.gmra.mxu0 %v1500
        %v1564 = vpop.f32.mrf.mxu0
        %v1565 = vadd.f32 0.0, %v1564
        %v1566 = vpop.f32.mrf.mxu0
        %v1567 = vadd.f32 0.0, %v1566
        %1568 = vmatmul.bf16.gmra.mxu0 %v1503
        %v1569 = vpop.f32.mrf.mxu0
        %v1570 = vadd.f32 0.0, %v1569
        %v1571 = vpop.f32.mrf.mxu0
        %v1572 = vadd.f32 0.0, %v1571
        %1573 = vmatmul.bf16.gmra.mxu0 %v1506
        %v1574 = vpop.f32.mrf.mxu0
        %v1575 = vadd.f32 0.0, %v1574
        %v1576 = vpop.f32.mrf.mxu0
        %v1577 = vadd.f32 0.0, %v1576
        %1578 = vmatmul.bf16.gmra.mxu0 %v1509
        %v1579 = vpop.f32.mrf.mxu0
        %v1580 = vadd.f32 0.0, %v1579
        %v1581 = vpop.f32.mrf.mxu0
        %v1582 = vadd.f32 0.0, %v1581
        %1583 = vmatmul.bf16.gmra.mxu0 %v1512
        %v1584 = vpop.f32.mrf.mxu0
        %v1585 = vadd.f32 0.0, %v1584
        %v1586 = vpop.f32.mrf.mxu0
        %v1587 = vadd.f32 0.0, %v1586
        %1588 = vmatmul.bf16.gmra.mxu0 %v1515
        %v1589 = vpop.f32.mrf.mxu0
        %v1590 = vadd.f32 0.0, %v1589
        %v1591 = vpop.f32.mrf.mxu0
        %v1592 = vadd.f32 0.0, %v1591
        %1593 = vmatmul.bf16.gmra.mxu0 %v1518
        %v1594 = vpop.f32.mrf.mxu0
        %v1595 = vadd.f32 0.0, %v1594
        %v1596 = vpop.f32.mrf.mxu0
        %v1597 = vadd.f32 0.0, %v1596
        %1598 = vmatmul.bf16.gmra.mxu0 %v1521
        %v1599 = vpop.f32.mrf.mxu0
        %v1600 = vadd.f32 0.0, %v1599
        %v1601 = vpop.f32.mrf.mxu0
        %v1602 = vadd.f32 0.0, %v1601
        %1603 = vmatmul.bf16.gmra.mxu0 %v1524
        %v1604 = vpop.f32.mrf.mxu0
        %v1605 = vadd.f32 0.0, %v1604
        %v1606 = vpop.f32.mrf.mxu0
        %v1607 = vadd.f32 0.0, %v1606
        %1608 = vmatmul.bf16.gmra.mxu0 %v1527
        %v1609 = vpop.f32.mrf.mxu0
        %v1610 = vadd.f32 0.0, %v1609
        %v1611 = vpop.f32.mrf.mxu0
        %v1612 = vadd.f32 0.0, %v1611
        %1613 = vmatmul.bf16.gmra.mxu0 %v1530
        %v1614 = vpop.f32.mrf.mxu0
        %v1615 = vadd.f32 0.0, %v1614
        %v1616 = vpop.f32.mrf.mxu0
        %v1617 = vadd.f32 0.0, %v1616
        %1618 = vmatmul.bf16.gmra.mxu0 %v1533
        %v1619 = vpop.f32.mrf.mxu0
        %v1620 = vadd.f32 0.0, %v1619
        %v1621 = vpop.f32.mrf.mxu0
        %v1622 = vadd.f32 0.0, %v1621
        %1623 = vdwg.mxu0
        %v1656 = vunpack.c.l.b16 %v1331
        %v1657 = vunpack.c.l.b16 %v1332
        %v1658 = vunpack.c.l.b16 %v1333
        %v1659 = vunpack.c.l.b16 %v1334
        %v1660 = vunpack.c.l.b16 %v1335
        %v1661 = vunpack.c.l.b16 %v1336
        %v1662 = vunpack.c.l.b16 %v1337
        %v1663 = vunpack.c.l.b16 %v1338
        %v1664 = vunpack.c.l.b16 %v1339
        %v1665 = vunpack.c.l.b16 %v1340
        %v1666 = vunpack.c.l.b16 %v1341
        %v1667 = vunpack.c.l.b16 %v1342
        %v1668 = vunpack.c.l.b16 %v1343
        %v1669 = vunpack.c.l.b16 %v1344
        %v1670 = vunpack.c.l.b16 %v1345
        %v1671 = vunpack.c.l.b16 %v1346
        %v1672 = vunpack.c.l.b16 %v1347
        %v1673 = vunpack.c.l.b16 %v1348
        %v1674 = vunpack.c.l.b16 %v1349
        %v1675 = vunpack.c.l.b16 %v1350
        %v1676 = vunpack.c.l.b16 %v1351
        %v1677 = vunpack.c.l.b16 %v1352
        %v1678 = vunpack.c.l.b16 %v1353
        %v1679 = vunpack.c.l.b16 %v1354
        %v1680 = vunpack.c.l.b16 %v1355
        %v1681 = vunpack.c.l.b16 %v1356
        %v1682 = vunpack.c.l.b16 %v1357
        %v1683 = vunpack.c.l.b16 %v1358
        %v1684 = vunpack.c.l.b16 %v1359
        %v1685 = vunpack.c.l.b16 %v1360
        %v1686 = vunpack.c.l.b16 %v1361
        %v1687 = vunpack.c.l.b16 %v1362
        %v1688 = vpack.c.b16 %v1657, %v1656
        %v1689 = vpack.c.b16 %v1659, %v1658
        %v1690 = vpack.c.b16 %v1661, %v1660
        %v1691 = vpack.c.b16 %v1663, %v1662
        %v1692 = vpack.c.b16 %v1665, %v1664
        %v1693 = vpack.c.b16 %v1667, %v1666
        %v1694 = vpack.c.b16 %v1669, %v1668
        %v1695 = vpack.c.b16 %v1671, %v1670
        %v1696 = vpack.c.b16 %v1673, %v1672
        %v1697 = vpack.c.b16 %v1675, %v1674
        %v1698 = vpack.c.b16 %v1677, %v1676
        %v1699 = vpack.c.b16 %v1679, %v1678
        %v1700 = vpack.c.b16 %v1681, %v1680
        %v1701 = vpack.c.b16 %v1683, %v1682
        %v1702 = vpack.c.b16 %v1685, %v1684
        %v1703 = vpack.c.b16 %v1687, %v1686
        %v1706 = vunpack.c.l.b16 %v1363
        %v1707 = vunpack.c.l.b16 %v1364
        %v1708 = vpack.c.b16 %v1707, %v1706
        %v1711 = vsel %vm1486, %v1688, 0
        %v1714 = vsel %vm1486, %v1689, 0
        %v1717 = vsel %vm1486, %v1690, 0
        %v1720 = vsel %vm1486, %v1691, 0
        %v1723 = vsel %vm1486, %v1692, 0
        %v1726 = vsel %vm1486, %v1693, 0
        %v1729 = vsel %vm1486, %v1694, 0
        %v1732 = vsel %vm1486, %v1695, 0
        %v1735 = vsel %vm1486, %v1696, 0
        %v1738 = vsel %vm1486, %v1697, 0
        %v1741 = vsel %vm1486, %v1698, 0
        %v1744 = vsel %vm1486, %v1699, 0
        %v1747 = vsel %vm1486, %v1700, 0
        %v1750 = vsel %vm1486, %v1701, 0
        %v1753 = vsel %vm1486, %v1702, 0
        %v1756 = vsel %vm1486, %v1703, 0
        %1758 = vmatpush.bf16.msra.mxu0 0
        %1759 = vmatpush.bf16.msra.mxu0 0
        %1760 = vmatpush.bf16.msra.mxu0 0
        %1761 = vmatpush.bf16.msra.mxu0 0
        %1762 = vmatpush.bf16.msra.mxu0 0
        %1763 = vmatpush.bf16.msra.mxu0 0
        %1764 = vmatpush.bf16.msra.mxu0 0
        %1765 = vmatpush.bf16.msra.mxu0 %v1708
        %1766 = vmatmul.bf16.gmra.mxu0 %v1711
        %v1767 = vpop.f32.mrf.mxu0
        %v1768 = vadd.f32 %v1545, %v1767
        %v1769 = vpop.f32.mrf.mxu0
        %v1770 = vadd.f32 %v1547, %v1769
        %1771 = vmatmul.bf16.gmra.mxu0 %v1714
        %v1772 = vpop.f32.mrf.mxu0
        %v1773 = vadd.f32 %v1550, %v1772
        %v1774 = vpop.f32.mrf.mxu0
        %v1775 = vadd.f32 %v1552, %v1774
        %1776 = vmatmul.bf16.gmra.mxu0 %v1717
        %v1777 = vpop.f32.mrf.mxu0
        %v1778 = vadd.f32 %v1555, %v1777
        %v1779 = vpop.f32.mrf.mxu0
        %v1780 = vadd.f32 %v1557, %v1779
        %1781 = vmatmul.bf16.gmra.mxu0 %v1720
        %v1782 = vpop.f32.mrf.mxu0
        %v1783 = vadd.f32 %v1560, %v1782
        %v1784 = vpop.f32.mrf.mxu0
        %v1785 = vadd.f32 %v1562, %v1784
        %1786 = vmatmul.bf16.gmra.mxu0 %v1723
        %v1787 = vpop.f32.mrf.mxu0
        %v1788 = vadd.f32 %v1565, %v1787
        %v1789 = vpop.f32.mrf.mxu0
        %v1790 = vadd.f32 %v1567, %v1789
        %1791 = vmatmul.bf16.gmra.mxu0 %v1726
        %v1792 = vpop.f32.mrf.mxu0
        %v1793 = vadd.f32 %v1570, %v1792
        %v1794 = vpop.f32.mrf.mxu0
        %v1795 = vadd.f32 %v1572, %v1794
        %1796 = vmatmul.bf16.gmra.mxu0 %v1729
        %v1797 = vpop.f32.mrf.mxu0
        %v1798 = vadd.f32 %v1575, %v1797
        %v1799 = vpop.f32.mrf.mxu0
        %v1800 = vadd.f32 %v1577, %v1799
        %1801 = vmatmul.bf16.gmra.mxu0 %v1732
        %v1802 = vpop.f32.mrf.mxu0
        %v1803 = vadd.f32 %v1580, %v1802
        %v1804 = vpop.f32.mrf.mxu0
        %v1805 = vadd.f32 %v1582, %v1804
        %1806 = vmatmul.bf16.gmra.mxu0 %v1735
        %v1807 = vpop.f32.mrf.mxu0
        %v1808 = vadd.f32 %v1585, %v1807
        %v1809 = vpop.f32.mrf.mxu0
        %v1810 = vadd.f32 %v1587, %v1809
        %1811 = vmatmul.bf16.gmra.mxu0 %v1738
        %v1812 = vpop.f32.mrf.mxu0
        %v1813 = vadd.f32 %v1590, %v1812
        %v1814 = vpop.f32.mrf.mxu0
        %v1815 = vadd.f32 %v1592, %v1814
        %1816 = vmatmul.bf16.gmra.mxu0 %v1741
        %v1817 = vpop.f32.mrf.mxu0
        %v1818 = vadd.f32 %v1595, %v1817
        %v1819 = vpop.f32.mrf.mxu0
        %v1820 = vadd.f32 %v1597, %v1819
        %1821 = vmatmul.bf16.gmra.mxu0 %v1744
        %v1822 = vpop.f32.mrf.mxu0
        %v1823 = vadd.f32 %v1600, %v1822
        %v1824 = vpop.f32.mrf.mxu0
        %v1825 = vadd.f32 %v1602, %v1824
        %1826 = vmatmul.bf16.gmra.mxu0 %v1747
        %v1827 = vpop.f32.mrf.mxu0
        %v1828 = vadd.f32 %v1605, %v1827
        %v1829 = vpop.f32.mrf.mxu0
        %v1830 = vadd.f32 %v1607, %v1829
        %1831 = vmatmul.bf16.gmra.mxu0 %v1750
        %v1832 = vpop.f32.mrf.mxu0
        %v1833 = vadd.f32 %v1610, %v1832
        %v1834 = vpop.f32.mrf.mxu0
        %v1835 = vadd.f32 %v1612, %v1834
        %1836 = vmatmul.bf16.gmra.mxu0 %v1753
        %v1837 = vpop.f32.mrf.mxu0
        %v1838 = vadd.f32 %v1615, %v1837
        %v1839 = vpop.f32.mrf.mxu0
        %v1840 = vadd.f32 %v1617, %v1839
        %1841 = vmatmul.bf16.gmra.mxu0 %v1756
        %v1842 = vpop.f32.mrf.mxu0
        %v1843 = vadd.f32 %v1620, %v1842
        %v1844 = vpop.f32.mrf.mxu0
        %v1845 = vadd.f32 %v1622, %v1844
        %1846 = vdwg.mxu0
        %v1847 = vld [vmem:[#allocation3] sm:$0xf]
        %v1848 = vld [vmem:[#allocation3 + $0x4] sm:$0xf]
        %v1849 = vld [vmem:[#allocation3 + $0x8] sm:$0xf]
        %v1850 = vld [vmem:[#allocation3 + $0xc] sm:$0xf]
        %v1851 = vld [vmem:[#allocation3 + $0x10] sm:$0xf]
        %v1852 = vld [vmem:[#allocation3 + $0x14] sm:$0xf]
        %v1853 = vld [vmem:[#allocation3 + $0x18] sm:$0xf]
        %v1854 = vld [vmem:[#allocation3 + $0x1c] sm:$0xf]
        %v1855 = vld [vmem:[#allocation3 + $0x20] sm:$0xf]
        %v1856 = vld [vmem:[#allocation3 + $0x24] sm:$0xf]
        %v1857 = vld [vmem:[#allocation3 + $0x28] sm:$0xf]
        %v1858 = vld [vmem:[#allocation3 + $0x2c] sm:$0xf]
        %v1859 = vld [vmem:[#allocation3 + $0x30] sm:$0xf]
        %v1860 = vld [vmem:[#allocation3 + $0x34] sm:$0xf]
        %v1861 = vld [vmem:[#allocation3 + $0x38] sm:$0xf]
        %v1862 = vld [vmem:[#allocation3 + $0x3c] sm:$0xf]
        %v1863 = vld [vmem:[#allocation3 + $0x40] sm:$0xf]
        %v1864 = vld [vmem:[#allocation3 + $0x44] sm:$0xf]
        %v1865 = vld [vmem:[#allocation3 + $0x48] sm:$0xf]
        %v1866 = vld [vmem:[#allocation3 + $0x4c] sm:$0xf]
        %v1867 = vld [vmem:[#allocation3 + $0x50] sm:$0xf]
        %v1868 = vld [vmem:[#allocation3 + $0x54] sm:$0xf]
        %v1869 = vld [vmem:[#allocation3 + $0x58] sm:$0xf]
        %v1870 = vld [vmem:[#allocation3 + $0x5c] sm:$0xf]
        %v1871 = vld [vmem:[#allocation3 + $0x60] sm:$0xf]
        %v1872 = vld [vmem:[#allocation3 + $0x64] sm:$0xf]
        %v1873 = vld [vmem:[#allocation3 + $0x68] sm:$0xf]
        %v1874 = vld [vmem:[#allocation3 + $0x6c] sm:$0xf]
        %v1875 = vld [vmem:[#allocation3 + $0x70] sm:$0xf]
        %v1876 = vld [vmem:[#allocation3 + $0x74] sm:$0xf]
        %v1877 = vld [vmem:[#allocation3 + $0x78] sm:$0xf]
        %v1878 = vld [vmem:[#allocation3 + $0x7c] sm:$0xf]
        %s1879 = scalar_lea.vmem [#allocation4], 16
        %v1880 = vld [vmem:[%s1879] sm:$0xf]
        %v1881 = vld [vmem:[%s1879 + $0x4] sm:$0xf]
        %v1914 = vunpack.c.l.b16 %v1847
        %v1915 = vunpack.c.l.b16 %v1848
        %v1916 = vunpack.c.l.b16 %v1849
        %v1917 = vunpack.c.l.b16 %v1850
        %v1918 = vunpack.c.l.b16 %v1851
        %v1919 = vunpack.c.l.b16 %v1852
        %v1920 = vunpack.c.l.b16 %v1853
        %v1921 = vunpack.c.l.b16 %v1854
        %v1922 = vunpack.c.l.b16 %v1855
        %v1923 = vunpack.c.l.b16 %v1856
        %v1924 = vunpack.c.l.b16 %v1857
        %v1925 = vunpack.c.l.b16 %v1858
        %v1926 = vunpack.c.l.b16 %v1859
        %v1927 = vunpack.c.l.b16 %v1860
        %v1928 = vunpack.c.l.b16 %v1861
        %v1929 = vunpack.c.l.b16 %v1862
        %v1930 = vunpack.c.l.b16 %v1863
        %v1931 = vunpack.c.l.b16 %v1864
        %v1932 = vunpack.c.l.b16 %v1865
        %v1933 = vunpack.c.l.b16 %v1866
        %v1934 = vunpack.c.l.b16 %v1867
        %v1935 = vunpack.c.l.b16 %v1868
        %v1936 = vunpack.c.l.b16 %v1869
        %v1937 = vunpack.c.l.b16 %v1870
        %v1938 = vunpack.c.l.b16 %v1871
        %v1939 = vunpack.c.l.b16 %v1872
        %v1940 = vunpack.c.l.b16 %v1873
        %v1941 = vunpack.c.l.b16 %v1874
        %v1942 = vunpack.c.l.b16 %v1875
        %v1943 = vunpack.c.l.b16 %v1876
        %v1944 = vunpack.c.l.b16 %v1877
        %v1945 = vunpack.c.l.b16 %v1878
        %v1946 = vpack.c.b16 %v1915, %v1914
        %v1947 = vpack.c.b16 %v1917, %v1916
        %v1948 = vpack.c.b16 %v1919, %v1918
        %v1949 = vpack.c.b16 %v1921, %v1920
        %v1950 = vpack.c.b16 %v1923, %v1922
        %v1951 = vpack.c.b16 %v1925, %v1924
        %v1952 = vpack.c.b16 %v1927, %v1926
        %v1953 = vpack.c.b16 %v1929, %v1928
        %v1954 = vpack.c.b16 %v1931, %v1930
        %v1955 = vpack.c.b16 %v1933, %v1932
        %v1956 = vpack.c.b16 %v1935, %v1934
        %v1957 = vpack.c.b16 %v1937, %v1936
        %v1958 = vpack.c.b16 %v1939, %v1938
        %v1959 = vpack.c.b16 %v1941, %v1940
        %v1960 = vpack.c.b16 %v1943, %v1942
        %v1961 = vpack.c.b16 %v1945, %v1944
        %v1964 = vunpack.c.l.b16 %v1880
        %v1965 = vunpack.c.l.b16 %v1881
        %v1966 = vpack.c.b16 %v1965, %v1964
        %v1969 = vsel %vm1486, %v1946, 0
        %v1972 = vsel %vm1486, %v1947, 0
        %v1975 = vsel %vm1486, %v1948, 0
        %v1978 = vsel %vm1486, %v1949, 0
        %v1981 = vsel %vm1486, %v1950, 0
        %v1984 = vsel %vm1486, %v1951, 0
        %v1987 = vsel %vm1486, %v1952, 0
        %v1990 = vsel %vm1486, %v1953, 0
        %v1993 = vsel %vm1486, %v1954, 0
        %v1996 = vsel %vm1486, %v1955, 0
        %v1999 = vsel %vm1486, %v1956, 0
        %v2002 = vsel %vm1486, %v1957, 0
        %v2005 = vsel %vm1486, %v1958, 0
        %v2008 = vsel %vm1486, %v1959, 0
        %v2011 = vsel %vm1486, %v1960, 0
        %v2014 = vsel %vm1486, %v1961, 0
        %2016 = vmatpush.bf16.msra.mxu0 0
        %2017 = vmatpush.bf16.msra.mxu0 0
        %2018 = vmatpush.bf16.msra.mxu0 0
        %2019 = vmatpush.bf16.msra.mxu0 0
        %2020 = vmatpush.bf16.msra.mxu0 0
        %2021 = vmatpush.bf16.msra.mxu0 0
        %2022 = vmatpush.bf16.msra.mxu0 0
        %2023 = vmatpush.bf16.msra.mxu0 %v1966
        %2024 = vmatmul.bf16.gmra.mxu0 %v1969
        %v2025 = vpop.f32.mrf.mxu0
        %v2026 = vadd.f32 0.0, %v2025
        %v2027 = vpop.f32.mrf.mxu0
        %v2028 = vadd.f32 0.0, %v2027
        %2029 = vmatmul.bf16.gmra.mxu0 %v1972
        %v2030 = vpop.f32.mrf.mxu0
        %v2031 = vadd.f32 0.0, %v2030
        %v2032 = vpop.f32.mrf.mxu0
        %v2033 = vadd.f32 0.0, %v2032
        %2034 = vmatmul.bf16.gmra.mxu0 %v1975
        %v2035 = vpop.f32.mrf.mxu0
        %v2036 = vadd.f32 0.0, %v2035
        %v2037 = vpop.f32.mrf.mxu0
        %v2038 = vadd.f32 0.0, %v2037
        %2039 = vmatmul.bf16.gmra.mxu0 %v1978
        %v2040 = vpop.f32.mrf.mxu0
        %v2041 = vadd.f32 0.0, %v2040
        %v2042 = vpop.f32.mrf.mxu0
        %v2043 = vadd.f32 0.0, %v2042
        %2044 = vmatmul.bf16.gmra.mxu0 %v1981
        %v2045 = vpop.f32.mrf.mxu0
        %v2046 = vadd.f32 0.0, %v2045
        %v2047 = vpop.f32.mrf.mxu0
        %v2048 = vadd.f32 0.0, %v2047
        %2049 = vmatmul.bf16.gmra.mxu0 %v1984
        %v2050 = vpop.f32.mrf.mxu0
        %v2051 = vadd.f32 0.0, %v2050
        %v2052 = vpop.f32.mrf.mxu0
        %v2053 = vadd.f32 0.0, %v2052
        %2054 = vmatmul.bf16.gmra.mxu0 %v1987
        %v2055 = vpop.f32.mrf.mxu0
        %v2056 = vadd.f32 0.0, %v2055
        %v2057 = vpop.f32.mrf.mxu0
        %v2058 = vadd.f32 0.0, %v2057
        %2059 = vmatmul.bf16.gmra.mxu0 %v1990
        %v2060 = vpop.f32.mrf.mxu0
        %v2061 = vadd.f32 0.0, %v2060
        %v2062 = vpop.f32.mrf.mxu0
        %v2063 = vadd.f32 0.0, %v2062
        %2064 = vmatmul.bf16.gmra.mxu0 %v1993
        %v2065 = vpop.f32.mrf.mxu0
        %v2066 = vadd.f32 0.0, %v2065
        %v2067 = vpop.f32.mrf.mxu0
        %v2068 = vadd.f32 0.0, %v2067
        %2069 = vmatmul.bf16.gmra.mxu0 %v1996
        %v2070 = vpop.f32.mrf.mxu0
        %v2071 = vadd.f32 0.0, %v2070
        %v2072 = vpop.f32.mrf.mxu0
        %v2073 = vadd.f32 0.0, %v2072
        %2074 = vmatmul.bf16.gmra.mxu0 %v1999
        %v2075 = vpop.f32.mrf.mxu0
        %v2076 = vadd.f32 0.0, %v2075
        %v2077 = vpop.f32.mrf.mxu0
        %v2078 = vadd.f32 0.0, %v2077
        %2079 = vmatmul.bf16.gmra.mxu0 %v2002
        %v2080 = vpop.f32.mrf.mxu0
        %v2081 = vadd.f32 0.0, %v2080
        %v2082 = vpop.f32.mrf.mxu0
        %v2083 = vadd.f32 0.0, %v2082
        %2084 = vmatmul.bf16.gmra.mxu0 %v2005
        %v2085 = vpop.f32.mrf.mxu0
        %v2086 = vadd.f32 0.0, %v2085
        %v2087 = vpop.f32.mrf.mxu0
        %v2088 = vadd.f32 0.0, %v2087
        %2089 = vmatmul.bf16.gmra.mxu0 %v2008
        %v2090 = vpop.f32.mrf.mxu0
        %v2091 = vadd.f32 0.0, %v2090
        %v2092 = vpop.f32.mrf.mxu0
        %v2093 = vadd.f32 0.0, %v2092
        %2094 = vmatmul.bf16.gmra.mxu0 %v2011
        %v2095 = vpop.f32.mrf.mxu0
        %v2096 = vadd.f32 0.0, %v2095
        %v2097 = vpop.f32.mrf.mxu0
        %v2098 = vadd.f32 0.0, %v2097
        %2099 = vmatmul.bf16.gmra.mxu0 %v2014
        %v2100 = vpop.f32.mrf.mxu0
        %v2101 = vadd.f32 0.0, %v2100
        %v2102 = vpop.f32.mrf.mxu0
        %v2103 = vadd.f32 0.0, %v2102
        %2104 = vdwg.mxu0
        %v2105 = vadd.f32 %v1768, %v2026
        %v2106 = vadd.f32 %v1770, %v2028
        %v2107 = vadd.f32 %v1773, %v2031
        %v2108 = vadd.f32 %v1775, %v2033
        %v2109 = vadd.f32 %v1778, %v2036
        %v2110 = vadd.f32 %v1780, %v2038
        %v2111 = vadd.f32 %v1783, %v2041
        %v2112 = vadd.f32 %v1785, %v2043
        %v2113 = vadd.f32 %v1788, %v2046
        %v2114 = vadd.f32 %v1790, %v2048
        %v2115 = vadd.f32 %v1793, %v2051
        %v2116 = vadd.f32 %v1795, %v2053
        %v2117 = vadd.f32 %v1798, %v2056
        %v2118 = vadd.f32 %v1800, %v2058
        %v2119 = vadd.f32 %v1803, %v2061
        %v2120 = vadd.f32 %v1805, %v2063
        %v2121 = vadd.f32 %v1808, %v2066
        %v2122 = vadd.f32 %v1810, %v2068
        %v2123 = vadd.f32 %v1813, %v2071
        %v2124 = vadd.f32 %v1815, %v2073
        %v2125 = vadd.f32 %v1818, %v2076
        %v2126 = vadd.f32 %v1820, %v2078
        %v2127 = vadd.f32 %v1823, %v2081
        %v2128 = vadd.f32 %v1825, %v2083
        %v2129 = vadd.f32 %v1828, %v2086
        %v2130 = vadd.f32 %v1830, %v2088
        %v2131 = vadd.f32 %v1833, %v2091
        %v2132 = vadd.f32 %v1835, %v2093
        %v2133 = vadd.f32 %v1838, %v2096
        %v2134 = vadd.f32 %v1840, %v2098
        %v2135 = vadd.f32 %v1843, %v2101
        %v2136 = vadd.f32 %v1845, %v2103
        %s2137 = scalar_lea.vmem [#allocation2], 8
        %v2138 = vld [vmem:[%s2137] sm:$0xf]
        %v2139 = vld [vmem:[%s2137 + $0x4] sm:$0xf]
        %v2140 = vld [vmem:[%s2137 + $0x8] sm:$0xf]
        %v2141 = vld [vmem:[%s2137 + $0xc] sm:$0xf]
        %v2142 = vld [vmem:[%s2137 + $0x10] sm:$0xf]
        %v2143 = vld [vmem:[%s2137 + $0x14] sm:$0xf]
        %v2144 = vld [vmem:[%s2137 + $0x18] sm:$0xf]
        %v2145 = vld [vmem:[%s2137 + $0x1c] sm:$0xf]
        %v2146 = vld [vmem:[%s2137 + $0x20] sm:$0xf]
        %v2147 = vld [vmem:[%s2137 + $0x24] sm:$0xf]
        %v2148 = vld [vmem:[%s2137 + $0x28] sm:$0xf]
        %v2149 = vld [vmem:[%s2137 + $0x2c] sm:$0xf]
        %v2150 = vld [vmem:[%s2137 + $0x30] sm:$0xf]
        %v2151 = vld [vmem:[%s2137 + $0x34] sm:$0xf]
        %v2152 = vld [vmem:[%s2137 + $0x38] sm:$0xf]
        %v2153 = vld [vmem:[%s2137 + $0x3c] sm:$0xf]
        %v2154 = vld [vmem:[%s2137 + $0x40] sm:$0xf]
        %v2155 = vld [vmem:[%s2137 + $0x44] sm:$0xf]
        %v2156 = vld [vmem:[%s2137 + $0x48] sm:$0xf]
        %v2157 = vld [vmem:[%s2137 + $0x4c] sm:$0xf]
        %v2158 = vld [vmem:[%s2137 + $0x50] sm:$0xf]
        %v2159 = vld [vmem:[%s2137 + $0x54] sm:$0xf]
        %v2160 = vld [vmem:[%s2137 + $0x58] sm:$0xf]
        %v2161 = vld [vmem:[%s2137 + $0x5c] sm:$0xf]
        %v2162 = vld [vmem:[%s2137 + $0x60] sm:$0xf]
        %v2163 = vld [vmem:[%s2137 + $0x64] sm:$0xf]
        %v2164 = vld [vmem:[%s2137 + $0x68] sm:$0xf]
        %v2165 = vld [vmem:[%s2137 + $0x6c] sm:$0xf]
        %v2166 = vld [vmem:[%s2137 + $0x70] sm:$0xf]
        %v2167 = vld [vmem:[%s2137 + $0x74] sm:$0xf]
        %v2168 = vld [vmem:[%s2137 + $0x78] sm:$0xf]
        %v2169 = vld [vmem:[%s2137 + $0x7c] sm:$0xf]
        %s2170 = scalar_lea.vmem [#allocation4], 24
        %v2171 = vld [vmem:[%s2170] sm:$0xf]
        %v2172 = vld [vmem:[%s2170 + $0x4] sm:$0xf]
        %v2205 = vunpack.c.l.b16 %v2138
        %v2206 = vunpack.c.l.b16 %v2139
        %v2207 = vunpack.c.l.b16 %v2140
        %v2208 = vunpack.c.l.b16 %v2141
        %v2209 = vunpack.c.l.b16 %v2142
        %v2210 = vunpack.c.l.b16 %v2143
        %v2211 = vunpack.c.l.b16 %v2144
        %v2212 = vunpack.c.l.b16 %v2145
        %v2213 = vunpack.c.l.b16 %v2146
        %v2214 = vunpack.c.l.b16 %v2147
        %v2215 = vunpack.c.l.b16 %v2148
        %v2216 = vunpack.c.l.b16 %v2149
        %v2217 = vunpack.c.l.b16 %v2150
        %v2218 = vunpack.c.l.b16 %v2151
        %v2219 = vunpack.c.l.b16 %v2152
        %v2220 = vunpack.c.l.b16 %v2153
        %v2221 = vunpack.c.l.b16 %v2154
        %v2222 = vunpack.c.l.b16 %v2155
        %v2223 = vunpack.c.l.b16 %v2156
        %v2224 = vunpack.c.l.b16 %v2157
        %v2225 = vunpack.c.l.b16 %v2158
        %v2226 = vunpack.c.l.b16 %v2159
        %v2227 = vunpack.c.l.b16 %v2160
        %v2228 = vunpack.c.l.b16 %v2161
        %v2229 = vunpack.c.l.b16 %v2162
        %v2230 = vunpack.c.l.b16 %v2163
        %v2231 = vunpack.c.l.b16 %v2164
        %v2232 = vunpack.c.l.b16 %v2165
        %v2233 = vunpack.c.l.b16 %v2166
        %v2234 = vunpack.c.l.b16 %v2167
        %v2235 = vunpack.c.l.b16 %v2168
        %v2236 = vunpack.c.l.b16 %v2169
        %v2237 = vpack.c.b16 %v2206, %v2205
        %v2238 = vpack.c.b16 %v2208, %v2207
        %v2239 = vpack.c.b16 %v2210, %v2209
        %v2240 = vpack.c.b16 %v2212, %v2211
        %v2241 = vpack.c.b16 %v2214, %v2213
        %v2242 = vpack.c.b16 %v2216, %v2215
        %v2243 = vpack.c.b16 %v2218, %v2217
        %v2244 = vpack.c.b16 %v2220, %v2219
        %v2245 = vpack.c.b16 %v2222, %v2221
        %v2246 = vpack.c.b16 %v2224, %v2223
        %v2247 = vpack.c.b16 %v2226, %v2225
        %v2248 = vpack.c.b16 %v2228, %v2227
        %v2249 = vpack.c.b16 %v2230, %v2229
        %v2250 = vpack.c.b16 %v2232, %v2231
        %v2251 = vpack.c.b16 %v2234, %v2233
        %v2252 = vpack.c.b16 %v2236, %v2235
        %v2255 = vunpack.c.l.b16 %v2171
        %v2256 = vunpack.c.l.b16 %v2172
        %v2257 = vpack.c.b16 %v2256, %v2255
        %v2260 = vsel %vm1486, %v2237, 0
        %v2263 = vsel %vm1486, %v2238, 0
        %v2266 = vsel %vm1486, %v2239, 0
        %v2269 = vsel %vm1486, %v2240, 0
        %v2272 = vsel %vm1486, %v2241, 0
        %v2275 = vsel %vm1486, %v2242, 0
        %v2278 = vsel %vm1486, %v2243, 0
        %v2281 = vsel %vm1486, %v2244, 0
        %v2284 = vsel %vm1486, %v2245, 0
        %v2287 = vsel %vm1486, %v2246, 0
        %v2290 = vsel %vm1486, %v2247, 0
        %v2293 = vsel %vm1486, %v2248, 0
        %v2296 = vsel %vm1486, %v2249, 0
        %v2299 = vsel %vm1486, %v2250, 0
        %v2302 = vsel %vm1486, %v2251, 0
        %v2305 = vsel %vm1486, %v2252, 0
        %2307 = vmatpush.bf16.msra.mxu0 0
        %2308 = vmatpush.bf16.msra.mxu0 0
        %2309 = vmatpush.bf16.msra.mxu0 0
        %2310 = vmatpush.bf16.msra.mxu0 0
        %2311 = vmatpush.bf16.msra.mxu0 0
        %2312 = vmatpush.bf16.msra.mxu0 0
        %2313 = vmatpush.bf16.msra.mxu0 0
        %2314 = vmatpush.bf16.msra.mxu0 %v2257
        %2315 = vmatmul.bf16.gmra.mxu0 %v2260
        %v2316 = vpop.f32.mrf.mxu0
        %v2317 = vadd.f32 0.0, %v2316
        %v2318 = vpop.f32.mrf.mxu0
        %v2319 = vadd.f32 0.0, %v2318
        %2320 = vmatmul.bf16.gmra.mxu0 %v2263
        %v2321 = vpop.f32.mrf.mxu0
        %v2322 = vadd.f32 0.0, %v2321
        %v2323 = vpop.f32.mrf.mxu0
        %v2324 = vadd.f32 0.0, %v2323
        %2325 = vmatmul.bf16.gmra.mxu0 %v2266
        %v2326 = vpop.f32.mrf.mxu0
        %v2327 = vadd.f32 0.0, %v2326
        %v2328 = vpop.f32.mrf.mxu0
        %v2329 = vadd.f32 0.0, %v2328
        %2330 = vmatmul.bf16.gmra.mxu0 %v2269
        %v2331 = vpop.f32.mrf.mxu0
        %v2332 = vadd.f32 0.0, %v2331
        %v2333 = vpop.f32.mrf.mxu0
        %v2334 = vadd.f32 0.0, %v2333
        %2335 = vmatmul.bf16.gmra.mxu0 %v2272
        %v2336 = vpop.f32.mrf.mxu0
        %v2337 = vadd.f32 0.0, %v2336
        %v2338 = vpop.f32.mrf.mxu0
        %v2339 = vadd.f32 0.0, %v2338
        %2340 = vmatmul.bf16.gmra.mxu0 %v2275
        %v2341 = vpop.f32.mrf.mxu0
        %v2342 = vadd.f32 0.0, %v2341
        %v2343 = vpop.f32.mrf.mxu0
        %v2344 = vadd.f32 0.0, %v2343
        %2345 = vmatmul.bf16.gmra.mxu0 %v2278
        %v2346 = vpop.f32.mrf.mxu0
        %v2347 = vadd.f32 0.0, %v2346
        %v2348 = vpop.f32.mrf.mxu0
        %v2349 = vadd.f32 0.0, %v2348
        %2350 = vmatmul.bf16.gmra.mxu0 %v2281
        %v2351 = vpop.f32.mrf.mxu0
        %v2352 = vadd.f32 0.0, %v2351
        %v2353 = vpop.f32.mrf.mxu0
        %v2354 = vadd.f32 0.0, %v2353
        %2355 = vmatmul.bf16.gmra.mxu0 %v2284
        %v2356 = vpop.f32.mrf.mxu0
        %v2357 = vadd.f32 0.0, %v2356
        %v2358 = vpop.f32.mrf.mxu0
        %v2359 = vadd.f32 0.0, %v2358
        %2360 = vmatmul.bf16.gmra.mxu0 %v2287
        %v2361 = vpop.f32.mrf.mxu0
        %v2362 = vadd.f32 0.0, %v2361
        %v2363 = vpop.f32.mrf.mxu0
        %v2364 = vadd.f32 0.0, %v2363
        %2365 = vmatmul.bf16.gmra.mxu0 %v2290
        %v2366 = vpop.f32.mrf.mxu0
        %v2367 = vadd.f32 0.0, %v2366
        %v2368 = vpop.f32.mrf.mxu0
        %v2369 = vadd.f32 0.0, %v2368
        %2370 = vmatmul.bf16.gmra.mxu0 %v2293
        %v2371 = vpop.f32.mrf.mxu0
        %v2372 = vadd.f32 0.0, %v2371
        %v2373 = vpop.f32.mrf.mxu0
        %v2374 = vadd.f32 0.0, %v2373
        %2375 = vmatmul.bf16.gmra.mxu0 %v2296
        %v2376 = vpop.f32.mrf.mxu0
        %v2377 = vadd.f32 0.0, %v2376
        %v2378 = vpop.f32.mrf.mxu0
        %v2379 = vadd.f32 0.0, %v2378
        %2380 = vmatmul.bf16.gmra.mxu0 %v2299
        %v2381 = vpop.f32.mrf.mxu0
        %v2382 = vadd.f32 0.0, %v2381
        %v2383 = vpop.f32.mrf.mxu0
        %v2384 = vadd.f32 0.0, %v2383
        %2385 = vmatmul.bf16.gmra.mxu0 %v2302
        %v2386 = vpop.f32.mrf.mxu0
        %v2387 = vadd.f32 0.0, %v2386
        %v2388 = vpop.f32.mrf.mxu0
        %v2389 = vadd.f32 0.0, %v2388
        %2390 = vmatmul.bf16.gmra.mxu0 %v2305
        %v2391 = vpop.f32.mrf.mxu0
        %v2392 = vadd.f32 0.0, %v2391
        %v2393 = vpop.f32.mrf.mxu0
        %v2394 = vadd.f32 0.0, %v2393
        %2395 = vdwg.mxu0
        %v2396 = vadd.f32 %v2105, %v2317
        %v2397 = vadd.f32 %v2106, %v2319
        %v2398 = vadd.f32 %v2107, %v2322
        %v2399 = vadd.f32 %v2108, %v2324
        %v2400 = vadd.f32 %v2109, %v2327
        %v2401 = vadd.f32 %v2110, %v2329
        %v2402 = vadd.f32 %v2111, %v2332
        %v2403 = vadd.f32 %v2112, %v2334
        %v2404 = vadd.f32 %v2113, %v2337
        %v2405 = vadd.f32 %v2114, %v2339
        %v2406 = vadd.f32 %v2115, %v2342
        %v2407 = vadd.f32 %v2116, %v2344
        %v2408 = vadd.f32 %v2117, %v2347
        %v2409 = vadd.f32 %v2118, %v2349
        %v2410 = vadd.f32 %v2119, %v2352
        %v2411 = vadd.f32 %v2120, %v2354
        %v2412 = vadd.f32 %v2121, %v2357
        %v2413 = vadd.f32 %v2122, %v2359
        %v2414 = vadd.f32 %v2123, %v2362
        %v2415 = vadd.f32 %v2124, %v2364
        %v2416 = vadd.f32 %v2125, %v2367
        %v2417 = vadd.f32 %v2126, %v2369
        %v2418 = vadd.f32 %v2127, %v2372
        %v2419 = vadd.f32 %v2128, %v2374
        %v2420 = vadd.f32 %v2129, %v2377
        %v2421 = vadd.f32 %v2130, %v2379
        %v2422 = vadd.f32 %v2131, %v2382
        %v2423 = vadd.f32 %v2132, %v2384
        %v2424 = vadd.f32 %v2133, %v2387
        %v2425 = vadd.f32 %v2134, %v2389
        %v2426 = vadd.f32 %v2135, %v2392
        %v2427 = vadd.f32 %v2136, %v2394
        %s2428 = scalar_lea.vmem %s282, 8
        %v2429 = vld [vmem:[%s2428] sm:$0xf]
        %v2430 = vld [vmem:[%s2428 + $0x4] sm:$0xf]
        %v2431 = vld [vmem:[%s2428 + $0x8] sm:$0xf]
        %v2432 = vld [vmem:[%s2428 + $0xc] sm:$0xf]
        %v2433 = vld [vmem:[%s2428 + $0x10] sm:$0xf]
        %v2434 = vld [vmem:[%s2428 + $0x14] sm:$0xf]
        %v2435 = vld [vmem:[%s2428 + $0x18] sm:$0xf]
        %v2436 = vld [vmem:[%s2428 + $0x1c] sm:$0xf]
        %v2437 = vld [vmem:[%s2428 + $0x20] sm:$0xf]
        %v2438 = vld [vmem:[%s2428 + $0x24] sm:$0xf]
        %v2439 = vld [vmem:[%s2428 + $0x28] sm:$0xf]
        %v2440 = vld [vmem:[%s2428 + $0x2c] sm:$0xf]
        %v2441 = vld [vmem:[%s2428 + $0x30] sm:$0xf]
        %v2442 = vld [vmem:[%s2428 + $0x34] sm:$0xf]
        %v2443 = vld [vmem:[%s2428 + $0x38] sm:$0xf]
        %v2444 = vld [vmem:[%s2428 + $0x3c] sm:$0xf]
        %v2445 = vld [vmem:[%s2428 + $0x40] sm:$0xf]
        %v2446 = vld [vmem:[%s2428 + $0x44] sm:$0xf]
        %v2447 = vld [vmem:[%s2428 + $0x48] sm:$0xf]
        %v2448 = vld [vmem:[%s2428 + $0x4c] sm:$0xf]
        %v2449 = vld [vmem:[%s2428 + $0x50] sm:$0xf]
        %v2450 = vld [vmem:[%s2428 + $0x54] sm:$0xf]
        %v2451 = vld [vmem:[%s2428 + $0x58] sm:$0xf]
        %v2452 = vld [vmem:[%s2428 + $0x5c] sm:$0xf]
        %v2453 = vld [vmem:[%s2428 + $0x60] sm:$0xf]
        %v2454 = vld [vmem:[%s2428 + $0x64] sm:$0xf]
        %v2455 = vld [vmem:[%s2428 + $0x68] sm:$0xf]
        %v2456 = vld [vmem:[%s2428 + $0x6c] sm:$0xf]
        %v2457 = vld [vmem:[%s2428 + $0x70] sm:$0xf]
        %v2458 = vld [vmem:[%s2428 + $0x74] sm:$0xf]
        %v2459 = vld [vmem:[%s2428 + $0x78] sm:$0xf]
        %v2460 = vld [vmem:[%s2428 + $0x7c] sm:$0xf]
        %s2461 = scalar_lea.vmem [#allocation4], 32
        %v2462 = vld [vmem:[%s2461] sm:$0xf]
        %v2463 = vld [vmem:[%s2461 + $0x4] sm:$0xf]
        %v2496 = vunpack.c.l.b16 %v2429
        %v2497 = vunpack.c.l.b16 %v2430
        %v2498 = vunpack.c.l.b16 %v2431
        %v2499 = vunpack.c.l.b16 %v2432
        %v2500 = vunpack.c.l.b16 %v2433
        %v2501 = vunpack.c.l.b16 %v2434
        %v2502 = vunpack.c.l.b16 %v2435
        %v2503 = vunpack.c.l.b16 %v2436
        %v2504 = vunpack.c.l.b16 %v2437
        %v2505 = vunpack.c.l.b16 %v2438
        %v2506 = vunpack.c.l.b16 %v2439
        %v2507 = vunpack.c.l.b16 %v2440
        %v2508 = vunpack.c.l.b16 %v2441
        %v2509 = vunpack.c.l.b16 %v2442
        %v2510 = vunpack.c.l.b16 %v2443
        %v2511 = vunpack.c.l.b16 %v2444
        %v2512 = vunpack.c.l.b16 %v2445
        %v2513 = vunpack.c.l.b16 %v2446
        %v2514 = vunpack.c.l.b16 %v2447
        %v2515 = vunpack.c.l.b16 %v2448
        %v2516 = vunpack.c.l.b16 %v2449
        %v2517 = vunpack.c.l.b16 %v2450
        %v2518 = vunpack.c.l.b16 %v2451
        %v2519 = vunpack.c.l.b16 %v2452
        %v2520 = vunpack.c.l.b16 %v2453
        %v2521 = vunpack.c.l.b16 %v2454
        %v2522 = vunpack.c.l.b16 %v2455
        %v2523 = vunpack.c.l.b16 %v2456
        %v2524 = vunpack.c.l.b16 %v2457
        %v2525 = vunpack.c.l.b16 %v2458
        %v2526 = vunpack.c.l.b16 %v2459
        %v2527 = vunpack.c.l.b16 %v2460
        %v2528 = vpack.c.b16 %v2497, %v2496
        %v2529 = vpack.c.b16 %v2499, %v2498
        %v2530 = vpack.c.b16 %v2501, %v2500
        %v2531 = vpack.c.b16 %v2503, %v2502
        %v2532 = vpack.c.b16 %v2505, %v2504
        %v2533 = vpack.c.b16 %v2507, %v2506
        %v2534 = vpack.c.b16 %v2509, %v2508
        %v2535 = vpack.c.b16 %v2511, %v2510
        %v2536 = vpack.c.b16 %v2513, %v2512
        %v2537 = vpack.c.b16 %v2515, %v2514
        %v2538 = vpack.c.b16 %v2517, %v2516
        %v2539 = vpack.c.b16 %v2519, %v2518
        %v2540 = vpack.c.b16 %v2521, %v2520
        %v2541 = vpack.c.b16 %v2523, %v2522
        %v2542 = vpack.c.b16 %v2525, %v2524
        %v2543 = vpack.c.b16 %v2527, %v2526
        %v2546 = vunpack.c.l.b16 %v2462
        %v2547 = vunpack.c.l.b16 %v2463
        %v2548 = vpack.c.b16 %v2547, %v2546
        %v2551 = vsel %vm1486, %v2528, 0
        %v2554 = vsel %vm1486, %v2529, 0
        %v2557 = vsel %vm1486, %v2530, 0
        %v2560 = vsel %vm1486, %v2531, 0
        %v2563 = vsel %vm1486, %v2532, 0
        %v2566 = vsel %vm1486, %v2533, 0
        %v2569 = vsel %vm1486, %v2534, 0
        %v2572 = vsel %vm1486, %v2535, 0
        %v2575 = vsel %vm1486, %v2536, 0
        %v2578 = vsel %vm1486, %v2537, 0
        %v2581 = vsel %vm1486, %v2538, 0
        %v2584 = vsel %vm1486, %v2539, 0
        %v2587 = vsel %vm1486, %v2540, 0
        %v2590 = vsel %vm1486, %v2541, 0
        %v2593 = vsel %vm1486, %v2542, 0
        %v2596 = vsel %vm1486, %v2543, 0
        %2598 = vmatpush.bf16.msra.mxu0 0
        %2599 = vmatpush.bf16.msra.mxu0 0
        %2600 = vmatpush.bf16.msra.mxu0 0
        %2601 = vmatpush.bf16.msra.mxu0 0
        %2602 = vmatpush.bf16.msra.mxu0 0
        %2603 = vmatpush.bf16.msra.mxu0 0
        %2604 = vmatpush.bf16.msra.mxu0 0
        %2605 = vmatpush.bf16.msra.mxu0 %v2548
        %2606 = vmatmul.bf16.gmra.mxu0 %v2551
        %v2607 = vpop.f32.mrf.mxu0
        %v2608 = vadd.f32 0.0, %v2607
        %v2609 = vpop.f32.mrf.mxu0
        %v2610 = vadd.f32 0.0, %v2609
        %2611 = vmatmul.bf16.gmra.mxu0 %v2554
        %v2612 = vpop.f32.mrf.mxu0
        %v2613 = vadd.f32 0.0, %v2612
        %v2614 = vpop.f32.mrf.mxu0
        %v2615 = vadd.f32 0.0, %v2614
        %2616 = vmatmul.bf16.gmra.mxu0 %v2557
        %v2617 = vpop.f32.mrf.mxu0
        %v2618 = vadd.f32 0.0, %v2617
        %v2619 = vpop.f32.mrf.mxu0
        %v2620 = vadd.f32 0.0, %v2619
        %2621 = vmatmul.bf16.gmra.mxu0 %v2560
        %v2622 = vpop.f32.mrf.mxu0
        %v2623 = vadd.f32 0.0, %v2622
        %v2624 = vpop.f32.mrf.mxu0
        %v2625 = vadd.f32 0.0, %v2624
        %2626 = vmatmul.bf16.gmra.mxu0 %v2563
        %v2627 = vpop.f32.mrf.mxu0
        %v2628 = vadd.f32 0.0, %v2627
        %v2629 = vpop.f32.mrf.mxu0
        %v2630 = vadd.f32 0.0, %v2629
        %2631 = vmatmul.bf16.gmra.mxu0 %v2566
        %v2632 = vpop.f32.mrf.mxu0
        %v2633 = vadd.f32 0.0, %v2632
        %v2634 = vpop.f32.mrf.mxu0
        %v2635 = vadd.f32 0.0, %v2634
        %2636 = vmatmul.bf16.gmra.mxu0 %v2569
        %v2637 = vpop.f32.mrf.mxu0
        %v2638 = vadd.f32 0.0, %v2637
        %v2639 = vpop.f32.mrf.mxu0
        %v2640 = vadd.f32 0.0, %v2639
        %2641 = vmatmul.bf16.gmra.mxu0 %v2572
        %v2642 = vpop.f32.mrf.mxu0
        %v2643 = vadd.f32 0.0, %v2642
        %v2644 = vpop.f32.mrf.mxu0
        %v2645 = vadd.f32 0.0, %v2644
        %2646 = vmatmul.bf16.gmra.mxu0 %v2575
        %v2647 = vpop.f32.mrf.mxu0
        %v2648 = vadd.f32 0.0, %v2647
        %v2649 = vpop.f32.mrf.mxu0
        %v2650 = vadd.f32 0.0, %v2649
        %2651 = vmatmul.bf16.gmra.mxu0 %v2578
        %v2652 = vpop.f32.mrf.mxu0
        %v2653 = vadd.f32 0.0, %v2652
        %v2654 = vpop.f32.mrf.mxu0
        %v2655 = vadd.f32 0.0, %v2654
        %2656 = vmatmul.bf16.gmra.mxu0 %v2581
        %v2657 = vpop.f32.mrf.mxu0
        %v2658 = vadd.f32 0.0, %v2657
        %v2659 = vpop.f32.mrf.mxu0
        %v2660 = vadd.f32 0.0, %v2659
        %2661 = vmatmul.bf16.gmra.mxu0 %v2584
        %v2662 = vpop.f32.mrf.mxu0
        %v2663 = vadd.f32 0.0, %v2662
        %v2664 = vpop.f32.mrf.mxu0
        %v2665 = vadd.f32 0.0, %v2664
        %2666 = vmatmul.bf16.gmra.mxu0 %v2587
        %v2667 = vpop.f32.mrf.mxu0
        %v2668 = vadd.f32 0.0, %v2667
        %v2669 = vpop.f32.mrf.mxu0
        %v2670 = vadd.f32 0.0, %v2669
        %2671 = vmatmul.bf16.gmra.mxu0 %v2590
        %v2672 = vpop.f32.mrf.mxu0
        %v2673 = vadd.f32 0.0, %v2672
        %v2674 = vpop.f32.mrf.mxu0
        %v2675 = vadd.f32 0.0, %v2674
        %2676 = vmatmul.bf16.gmra.mxu0 %v2593
        %v2677 = vpop.f32.mrf.mxu0
        %v2678 = vadd.f32 0.0, %v2677
        %v2679 = vpop.f32.mrf.mxu0
        %v2680 = vadd.f32 0.0, %v2679
        %2681 = vmatmul.bf16.gmra.mxu0 %v2596
        %v2682 = vpop.f32.mrf.mxu0
        %v2683 = vadd.f32 0.0, %v2682
        %v2684 = vpop.f32.mrf.mxu0
        %v2685 = vadd.f32 0.0, %v2684
        %2686 = vdwg.mxu0
        %v2687 = vadd.f32 %v2396, %v2608
        %v2688 = vadd.f32 %v2397, %v2610
        %v2689 = vadd.f32 %v2398, %v2613
        %v2690 = vadd.f32 %v2399, %v2615
        %v2691 = vadd.f32 %v2400, %v2618
        %v2692 = vadd.f32 %v2401, %v2620
        %v2693 = vadd.f32 %v2402, %v2623
        %v2694 = vadd.f32 %v2403, %v2625
        %v2695 = vadd.f32 %v2404, %v2628
        %v2696 = vadd.f32 %v2405, %v2630
        %v2697 = vadd.f32 %v2406, %v2633
        %v2698 = vadd.f32 %v2407, %v2635
        %v2699 = vadd.f32 %v2408, %v2638
        %v2700 = vadd.f32 %v2409, %v2640
        %v2701 = vadd.f32 %v2410, %v2643
        %v2702 = vadd.f32 %v2411, %v2645
        %v2703 = vadd.f32 %v2412, %v2648
        %v2704 = vadd.f32 %v2413, %v2650
        %v2705 = vadd.f32 %v2414, %v2653
        %v2706 = vadd.f32 %v2415, %v2655
        %v2707 = vadd.f32 %v2416, %v2658
        %v2708 = vadd.f32 %v2417, %v2660
        %v2709 = vadd.f32 %v2418, %v2663
        %v2710 = vadd.f32 %v2419, %v2665
        %v2711 = vadd.f32 %v2420, %v2668
        %v2712 = vadd.f32 %v2421, %v2670
        %v2713 = vadd.f32 %v2422, %v2673
        %v2714 = vadd.f32 %v2423, %v2675
        %v2715 = vadd.f32 %v2424, %v2678
        %v2716 = vadd.f32 %v2425, %v2680
        %v2717 = vadd.f32 %v2426, %v2683
        %v2718 = vadd.f32 %v2427, %v2685
        %s2719 = scalar_lea.vmem [#allocation3], 8
        %v2720 = vld [vmem:[%s2719] sm:$0xf]
        %v2721 = vld [vmem:[%s2719 + $0x4] sm:$0xf]
        %v2722 = vld [vmem:[%s2719 + $0x8] sm:$0xf]
        %v2723 = vld [vmem:[%s2719 + $0xc] sm:$0xf]
        %v2724 = vld [vmem:[%s2719 + $0x10] sm:$0xf]
        %v2725 = vld [vmem:[%s2719 + $0x14] sm:$0xf]
        %v2726 = vld [vmem:[%s2719 + $0x18] sm:$0xf]
        %v2727 = vld [vmem:[%s2719 + $0x1c] sm:$0xf]
        %v2728 = vld [vmem:[%s2719 + $0x20] sm:$0xf]
        %v2729 = vld [vmem:[%s2719 + $0x24] sm:$0xf]
        %v2730 = vld [vmem:[%s2719 + $0x28] sm:$0xf]
        %v2731 = vld [vmem:[%s2719 + $0x2c] sm:$0xf]
        %v2732 = vld [vmem:[%s2719 + $0x30] sm:$0xf]
        %v2733 = vld [vmem:[%s2719 + $0x34] sm:$0xf]
        %v2734 = vld [vmem:[%s2719 + $0x38] sm:$0xf]
        %v2735 = vld [vmem:[%s2719 + $0x3c] sm:$0xf]
        %v2736 = vld [vmem:[%s2719 + $0x40] sm:$0xf]
        %v2737 = vld [vmem:[%s2719 + $0x44] sm:$0xf]
        %v2738 = vld [vmem:[%s2719 + $0x48] sm:$0xf]
        %v2739 = vld [vmem:[%s2719 + $0x4c] sm:$0xf]
        %v2740 = vld [vmem:[%s2719 + $0x50] sm:$0xf]
        %v2741 = vld [vmem:[%s2719 + $0x54] sm:$0xf]
        %v2742 = vld [vmem:[%s2719 + $0x58] sm:$0xf]
        %v2743 = vld [vmem:[%s2719 + $0x5c] sm:$0xf]
        %v2744 = vld [vmem:[%s2719 + $0x60] sm:$0xf]
        %v2745 = vld [vmem:[%s2719 + $0x64] sm:$0xf]
        %v2746 = vld [vmem:[%s2719 + $0x68] sm:$0xf]
        %v2747 = vld [vmem:[%s2719 + $0x6c] sm:$0xf]
        %v2748 = vld [vmem:[%s2719 + $0x70] sm:$0xf]
        %v2749 = vld [vmem:[%s2719 + $0x74] sm:$0xf]
        %v2750 = vld [vmem:[%s2719 + $0x78] sm:$0xf]
        %v2751 = vld [vmem:[%s2719 + $0x7c] sm:$0xf]
        %s2752 = scalar_lea.vmem [#allocation4], 40
        %v2753 = vld [vmem:[%s2752] sm:$0xf]
        %v2754 = vld [vmem:[%s2752 + $0x4] sm:$0xf]
        %v2787 = vunpack.c.l.b16 %v2720
        %v2788 = vunpack.c.l.b16 %v2721
        %v2789 = vunpack.c.l.b16 %v2722
        %v2790 = vunpack.c.l.b16 %v2723
        %v2791 = vunpack.c.l.b16 %v2724
        %v2792 = vunpack.c.l.b16 %v2725
        %v2793 = vunpack.c.l.b16 %v2726
        %v2794 = vunpack.c.l.b16 %v2727
        %v2795 = vunpack.c.l.b16 %v2728
        %v2796 = vunpack.c.l.b16 %v2729
        %v2797 = vunpack.c.l.b16 %v2730
        %v2798 = vunpack.c.l.b16 %v2731
        %v2799 = vunpack.c.l.b16 %v2732
        %v2800 = vunpack.c.l.b16 %v2733
        %v2801 = vunpack.c.l.b16 %v2734
        %v2802 = vunpack.c.l.b16 %v2735
        %v2803 = vunpack.c.l.b16 %v2736
        %v2804 = vunpack.c.l.b16 %v2737
        %v2805 = vunpack.c.l.b16 %v2738
        %v2806 = vunpack.c.l.b16 %v2739
        %v2807 = vunpack.c.l.b16 %v2740
        %v2808 = vunpack.c.l.b16 %v2741
        %v2809 = vunpack.c.l.b16 %v2742
        %v2810 = vunpack.c.l.b16 %v2743
        %v2811 = vunpack.c.l.b16 %v2744
        %v2812 = vunpack.c.l.b16 %v2745
        %v2813 = vunpack.c.l.b16 %v2746
        %v2814 = vunpack.c.l.b16 %v2747
        %v2815 = vunpack.c.l.b16 %v2748
        %v2816 = vunpack.c.l.b16 %v2749
        %v2817 = vunpack.c.l.b16 %v2750
        %v2818 = vunpack.c.l.b16 %v2751
        %v2819 = vpack.c.b16 %v2788, %v2787
        %v2820 = vpack.c.b16 %v2790, %v2789
        %v2821 = vpack.c.b16 %v2792, %v2791
        %v2822 = vpack.c.b16 %v2794, %v2793
        %v2823 = vpack.c.b16 %v2796, %v2795
        %v2824 = vpack.c.b16 %v2798, %v2797
        %v2825 = vpack.c.b16 %v2800, %v2799
        %v2826 = vpack.c.b16 %v2802, %v2801
        %v2827 = vpack.c.b16 %v2804, %v2803
        %v2828 = vpack.c.b16 %v2806, %v2805
        %v2829 = vpack.c.b16 %v2808, %v2807
        %v2830 = vpack.c.b16 %v2810, %v2809
        %v2831 = vpack.c.b16 %v2812, %v2811
        %v2832 = vpack.c.b16 %v2814, %v2813
        %v2833 = vpack.c.b16 %v2816, %v2815
        %v2834 = vpack.c.b16 %v2818, %v2817
        %v2837 = vunpack.c.l.b16 %v2753
        %v2838 = vunpack.c.l.b16 %v2754
        %v2839 = vpack.c.b16 %v2838, %v2837
        %v2842 = vsel %vm1486, %v2819, 0
        %v2845 = vsel %vm1486, %v2820, 0
        %v2848 = vsel %vm1486, %v2821, 0
        %v2851 = vsel %vm1486, %v2822, 0
        %v2854 = vsel %vm1486, %v2823, 0
        %v2857 = vsel %vm1486, %v2824, 0
        %v2860 = vsel %vm1486, %v2825, 0
        %v2863 = vsel %vm1486, %v2826, 0
        %v2866 = vsel %vm1486, %v2827, 0
        %v2869 = vsel %vm1486, %v2828, 0
        %v2872 = vsel %vm1486, %v2829, 0
        %v2875 = vsel %vm1486, %v2830, 0
        %v2878 = vsel %vm1486, %v2831, 0
        %v2881 = vsel %vm1486, %v2832, 0
        %v2884 = vsel %vm1486, %v2833, 0
        %v2887 = vsel %vm1486, %v2834, 0
        %2889 = vmatpush.bf16.msra.mxu0 0
        %2890 = vmatpush.bf16.msra.mxu0 0
        %2891 = vmatpush.bf16.msra.mxu0 0
        %2892 = vmatpush.bf16.msra.mxu0 0
        %2893 = vmatpush.bf16.msra.mxu0 0
        %2894 = vmatpush.bf16.msra.mxu0 0
        %2895 = vmatpush.bf16.msra.mxu0 0
        %2896 = vmatpush.bf16.msra.mxu0 %v2839
        %2897 = vmatmul.bf16.gmra.mxu0 %v2842
        %v2898 = vpop.f32.mrf.mxu0
        %v2899 = vadd.f32 0.0, %v2898
        %v2900 = vpop.f32.mrf.mxu0
        %v2901 = vadd.f32 0.0, %v2900
        %2902 = vmatmul.bf16.gmra.mxu0 %v2845
        %v2903 = vpop.f32.mrf.mxu0
        %v2904 = vadd.f32 0.0, %v2903
        %v2905 = vpop.f32.mrf.mxu0
        %v2906 = vadd.f32 0.0, %v2905
        %2907 = vmatmul.bf16.gmra.mxu0 %v2848
        %v2908 = vpop.f32.mrf.mxu0
        %v2909 = vadd.f32 0.0, %v2908
        %v2910 = vpop.f32.mrf.mxu0
        %v2911 = vadd.f32 0.0, %v2910
        %2912 = vmatmul.bf16.gmra.mxu0 %v2851
        %v2913 = vpop.f32.mrf.mxu0
        %v2914 = vadd.f32 0.0, %v2913
        %v2915 = vpop.f32.mrf.mxu0
        %v2916 = vadd.f32 0.0, %v2915
        %2917 = vmatmul.bf16.gmra.mxu0 %v2854
        %v2918 = vpop.f32.mrf.mxu0
        %v2919 = vadd.f32 0.0, %v2918
        %v2920 = vpop.f32.mrf.mxu0
        %v2921 = vadd.f32 0.0, %v2920
        %2922 = vmatmul.bf16.gmra.mxu0 %v2857
        %v2923 = vpop.f32.mrf.mxu0
        %v2924 = vadd.f32 0.0, %v2923
        %v2925 = vpop.f32.mrf.mxu0
        %v2926 = vadd.f32 0.0, %v2925
        %2927 = vmatmul.bf16.gmra.mxu0 %v2860
        %v2928 = vpop.f32.mrf.mxu0
        %v2929 = vadd.f32 0.0, %v2928
        %v2930 = vpop.f32.mrf.mxu0
        %v2931 = vadd.f32 0.0, %v2930
        %2932 = vmatmul.bf16.gmra.mxu0 %v2863
        %v2933 = vpop.f32.mrf.mxu0
        %v2934 = vadd.f32 0.0, %v2933
        %v2935 = vpop.f32.mrf.mxu0
        %v2936 = vadd.f32 0.0, %v2935
        %2937 = vmatmul.bf16.gmra.mxu0 %v2866
        %v2938 = vpop.f32.mrf.mxu0
        %v2939 = vadd.f32 0.0, %v2938
        %v2940 = vpop.f32.mrf.mxu0
        %v2941 = vadd.f32 0.0, %v2940
        %2942 = vmatmul.bf16.gmra.mxu0 %v2869
        %v2943 = vpop.f32.mrf.mxu0
        %v2944 = vadd.f32 0.0, %v2943
        %v2945 = vpop.f32.mrf.mxu0
        %v2946 = vadd.f32 0.0, %v2945
        %2947 = vmatmul.bf16.gmra.mxu0 %v2872
        %v2948 = vpop.f32.mrf.mxu0
        %v2949 = vadd.f32 0.0, %v2948
        %v2950 = vpop.f32.mrf.mxu0
        %v2951 = vadd.f32 0.0, %v2950
        %2952 = vmatmul.bf16.gmra.mxu0 %v2875
        %v2953 = vpop.f32.mrf.mxu0
        %v2954 = vadd.f32 0.0, %v2953
        %v2955 = vpop.f32.mrf.mxu0
        %v2956 = vadd.f32 0.0, %v2955
        %2957 = vmatmul.bf16.gmra.mxu0 %v2878
        %v2958 = vpop.f32.mrf.mxu0
        %v2959 = vadd.f32 0.0, %v2958
        %v2960 = vpop.f32.mrf.mxu0
        %v2961 = vadd.f32 0.0, %v2960
        %2962 = vmatmul.bf16.gmra.mxu0 %v2881
        %v2963 = vpop.f32.mrf.mxu0
        %v2964 = vadd.f32 0.0, %v2963
        %v2965 = vpop.f32.mrf.mxu0
        %v2966 = vadd.f32 0.0, %v2965
        %2967 = vmatmul.bf16.gmra.mxu0 %v2884
        %v2968 = vpop.f32.mrf.mxu0
        %v2969 = vadd.f32 0.0, %v2968
        %v2970 = vpop.f32.mrf.mxu0
        %v2971 = vadd.f32 0.0, %v2970
        %2972 = vmatmul.bf16.gmra.mxu0 %v2887
        %v2973 = vpop.f32.mrf.mxu0
        %v2974 = vadd.f32 0.0, %v2973
        %v2975 = vpop.f32.mrf.mxu0
        %v2976 = vadd.f32 0.0, %v2975
        %2977 = vdwg.mxu0
        %v2978 = vadd.f32 %v2687, %v2899
        %v2979 = vadd.f32 %v2688, %v2901
        %v2980 = vadd.f32 %v2689, %v2904
        %v2981 = vadd.f32 %v2690, %v2906
        %v2982 = vadd.f32 %v2691, %v2909
        %v2983 = vadd.f32 %v2692, %v2911
        %v2984 = vadd.f32 %v2693, %v2914
        %v2985 = vadd.f32 %v2694, %v2916
        %v2986 = vadd.f32 %v2695, %v2919
        %v2987 = vadd.f32 %v2696, %v2921
        %v2988 = vadd.f32 %v2697, %v2924
        %v2989 = vadd.f32 %v2698, %v2926
        %v2990 = vadd.f32 %v2699, %v2929
        %v2991 = vadd.f32 %v2700, %v2931
        %v2992 = vadd.f32 %v2701, %v2934
        %v2993 = vadd.f32 %v2702, %v2936
        %v2994 = vadd.f32 %v2703, %v2939
        %v2995 = vadd.f32 %v2704, %v2941
        %v2996 = vadd.f32 %v2705, %v2944
        %v2997 = vadd.f32 %v2706, %v2946
        %v2998 = vadd.f32 %v2707, %v2949
        %v2999 = vadd.f32 %v2708, %v2951
        %v3000 = vadd.f32 %v2709, %v2954
        %v3001 = vadd.f32 %v2710, %v2956
        %v3002 = vadd.f32 %v2711, %v2959
        %v3003 = vadd.f32 %v2712, %v2961
        %v3004 = vadd.f32 %v2713, %v2964
        %v3005 = vadd.f32 %v2714, %v2966
        %v3006 = vadd.f32 %v2715, %v2969
        %v3007 = vadd.f32 %v2716, %v2971
        %v3008 = vadd.f32 %v2717, %v2974
        %v3009 = vadd.f32 %v2718, %v2976
        %s3010 = scalar_lea.vmem [#allocation2], 16
        %v3011 = vld [vmem:[%s3010] sm:$0xf]
        %v3012 = vld [vmem:[%s3010 + $0x4] sm:$0xf]
        %v3013 = vld [vmem:[%s3010 + $0x8] sm:$0xf]
        %v3014 = vld [vmem:[%s3010 + $0xc] sm:$0xf]
        %v3015 = vld [vmem:[%s3010 + $0x10] sm:$0xf]
        %v3016 = vld [vmem:[%s3010 + $0x14] sm:$0xf]
        %v3017 = vld [vmem:[%s3010 + $0x18] sm:$0xf]
        %v3018 = vld [vmem:[%s3010 + $0x1c] sm:$0xf]
        %v3019 = vld [vmem:[%s3010 + $0x20] sm:$0xf]
        %v3020 = vld [vmem:[%s3010 + $0x24] sm:$0xf]
        %v3021 = vld [vmem:[%s3010 + $0x28] sm:$0xf]
        %v3022 = vld [vmem:[%s3010 + $0x2c] sm:$0xf]
        %v3023 = vld [vmem:[%s3010 + $0x30] sm:$0xf]
        %v3024 = vld [vmem:[%s3010 + $0x34] sm:$0xf]
        %v3025 = vld [vmem:[%s3010 + $0x38] sm:$0xf]
        %v3026 = vld [vmem:[%s3010 + $0x3c] sm:$0xf]
        %v3027 = vld [vmem:[%s3010 + $0x40] sm:$0xf]
        %v3028 = vld [vmem:[%s3010 + $0x44] sm:$0xf]
        %v3029 = vld [vmem:[%s3010 + $0x48] sm:$0xf]
        %v3030 = vld [vmem:[%s3010 + $0x4c] sm:$0xf]
        %v3031 = vld [vmem:[%s3010 + $0x50] sm:$0xf]
        %v3032 = vld [vmem:[%s3010 + $0x54] sm:$0xf]
        %v3033 = vld [vmem:[%s3010 + $0x58] sm:$0xf]
        %v3034 = vld [vmem:[%s3010 + $0x5c] sm:$0xf]
        %v3035 = vld [vmem:[%s3010 + $0x60] sm:$0xf]
        %v3036 = vld [vmem:[%s3010 + $0x64] sm:$0xf]
        %v3037 = vld [vmem:[%s3010 + $0x68] sm:$0xf]
        %v3038 = vld [vmem:[%s3010 + $0x6c] sm:$0xf]
        %v3039 = vld [vmem:[%s3010 + $0x70] sm:$0xf]
        %v3040 = vld [vmem:[%s3010 + $0x74] sm:$0xf]
        %v3041 = vld [vmem:[%s3010 + $0x78] sm:$0xf]
        %v3042 = vld [vmem:[%s3010 + $0x7c] sm:$0xf]
        %s3043 = scalar_lea.vmem [#allocation4], 48
        %v3044 = vld [vmem:[%s3043] sm:$0xf]
        %v3045 = vld [vmem:[%s3043 + $0x4] sm:$0xf]
        %v3078 = vunpack.c.l.b16 %v3011
        %v3079 = vunpack.c.l.b16 %v3012
        %v3080 = vunpack.c.l.b16 %v3013
        %v3081 = vunpack.c.l.b16 %v3014
        %v3082 = vunpack.c.l.b16 %v3015
        %v3083 = vunpack.c.l.b16 %v3016
        %v3084 = vunpack.c.l.b16 %v3017
        %v3085 = vunpack.c.l.b16 %v3018
        %v3086 = vunpack.c.l.b16 %v3019
        %v3087 = vunpack.c.l.b16 %v3020
        %v3088 = vunpack.c.l.b16 %v3021
        %v3089 = vunpack.c.l.b16 %v3022
        %v3090 = vunpack.c.l.b16 %v3023
        %v3091 = vunpack.c.l.b16 %v3024
        %v3092 = vunpack.c.l.b16 %v3025
        %v3093 = vunpack.c.l.b16 %v3026
        %v3094 = vunpack.c.l.b16 %v3027
        %v3095 = vunpack.c.l.b16 %v3028
        %v3096 = vunpack.c.l.b16 %v3029
        %v3097 = vunpack.c.l.b16 %v3030
        %v3098 = vunpack.c.l.b16 %v3031
        %v3099 = vunpack.c.l.b16 %v3032
        %v3100 = vunpack.c.l.b16 %v3033
        %v3101 = vunpack.c.l.b16 %v3034
        %v3102 = vunpack.c.l.b16 %v3035
        %v3103 = vunpack.c.l.b16 %v3036
        %v3104 = vunpack.c.l.b16 %v3037
        %v3105 = vunpack.c.l.b16 %v3038
        %v3106 = vunpack.c.l.b16 %v3039
        %v3107 = vunpack.c.l.b16 %v3040
        %v3108 = vunpack.c.l.b16 %v3041
        %v3109 = vunpack.c.l.b16 %v3042
        %v3110 = vpack.c.b16 %v3079, %v3078
        %v3111 = vpack.c.b16 %v3081, %v3080
        %v3112 = vpack.c.b16 %v3083, %v3082
        %v3113 = vpack.c.b16 %v3085, %v3084
        %v3114 = vpack.c.b16 %v3087, %v3086
        %v3115 = vpack.c.b16 %v3089, %v3088
        %v3116 = vpack.c.b16 %v3091, %v3090
        %v3117 = vpack.c.b16 %v3093, %v3092
        %v3118 = vpack.c.b16 %v3095, %v3094
        %v3119 = vpack.c.b16 %v3097, %v3096
        %v3120 = vpack.c.b16 %v3099, %v3098
        %v3121 = vpack.c.b16 %v3101, %v3100
        %v3122 = vpack.c.b16 %v3103, %v3102
        %v3123 = vpack.c.b16 %v3105, %v3104
        %v3124 = vpack.c.b16 %v3107, %v3106
        %v3125 = vpack.c.b16 %v3109, %v3108
        %v3128 = vunpack.c.l.b16 %v3044
        %v3129 = vunpack.c.l.b16 %v3045
        %v3130 = vpack.c.b16 %v3129, %v3128
        %v3133 = vsel %vm1486, %v3110, 0
        %v3136 = vsel %vm1486, %v3111, 0
        %v3139 = vsel %vm1486, %v3112, 0
        %v3142 = vsel %vm1486, %v3113, 0
        %v3145 = vsel %vm1486, %v3114, 0
        %v3148 = vsel %vm1486, %v3115, 0
        %v3151 = vsel %vm1486, %v3116, 0
        %v3154 = vsel %vm1486, %v3117, 0
        %v3157 = vsel %vm1486, %v3118, 0
        %v3160 = vsel %vm1486, %v3119, 0
        %v3163 = vsel %vm1486, %v3120, 0
        %v3166 = vsel %vm1486, %v3121, 0
        %v3169 = vsel %vm1486, %v3122, 0
        %v3172 = vsel %vm1486, %v3123, 0
        %v3175 = vsel %vm1486, %v3124, 0
        %v3178 = vsel %vm1486, %v3125, 0
        %3180 = vmatpush.bf16.msra.mxu0 0
        %3181 = vmatpush.bf16.msra.mxu0 0
        %3182 = vmatpush.bf16.msra.mxu0 0
        %3183 = vmatpush.bf16.msra.mxu0 0
        %3184 = vmatpush.bf16.msra.mxu0 0
        %3185 = vmatpush.bf16.msra.mxu0 0
        %3186 = vmatpush.bf16.msra.mxu0 0
        %3187 = vmatpush.bf16.msra.mxu0 %v3130
        %3188 = vmatmul.bf16.gmra.mxu0 %v3133
        %v3189 = vpop.f32.mrf.mxu0
        %v3190 = vadd.f32 0.0, %v3189
        %v3191 = vpop.f32.mrf.mxu0
        %v3192 = vadd.f32 0.0, %v3191
        %3193 = vmatmul.bf16.gmra.mxu0 %v3136
        %v3194 = vpop.f32.mrf.mxu0
        %v3195 = vadd.f32 0.0, %v3194
        %v3196 = vpop.f32.mrf.mxu0
        %v3197 = vadd.f32 0.0, %v3196
        %3198 = vmatmul.bf16.gmra.mxu0 %v3139
        %v3199 = vpop.f32.mrf.mxu0
        %v3200 = vadd.f32 0.0, %v3199
        %v3201 = vpop.f32.mrf.mxu0
        %v3202 = vadd.f32 0.0, %v3201
        %3203 = vmatmul.bf16.gmra.mxu0 %v3142
        %v3204 = vpop.f32.mrf.mxu0
        %v3205 = vadd.f32 0.0, %v3204
        %v3206 = vpop.f32.mrf.mxu0
        %v3207 = vadd.f32 0.0, %v3206
        %3208 = vmatmul.bf16.gmra.mxu0 %v3145
        %v3209 = vpop.f32.mrf.mxu0
        %v3210 = vadd.f32 0.0, %v3209
        %v3211 = vpop.f32.mrf.mxu0
        %v3212 = vadd.f32 0.0, %v3211
        %3213 = vmatmul.bf16.gmra.mxu0 %v3148
        %v3214 = vpop.f32.mrf.mxu0
        %v3215 = vadd.f32 0.0, %v3214
        %v3216 = vpop.f32.mrf.mxu0
        %v3217 = vadd.f32 0.0, %v3216
        %3218 = vmatmul.bf16.gmra.mxu0 %v3151
        %v3219 = vpop.f32.mrf.mxu0
        %v3220 = vadd.f32 0.0, %v3219
        %v3221 = vpop.f32.mrf.mxu0
        %v3222 = vadd.f32 0.0, %v3221
        %3223 = vmatmul.bf16.gmra.mxu0 %v3154
        %v3224 = vpop.f32.mrf.mxu0
        %v3225 = vadd.f32 0.0, %v3224
        %v3226 = vpop.f32.mrf.mxu0
        %v3227 = vadd.f32 0.0, %v3226
        %3228 = vmatmul.bf16.gmra.mxu0 %v3157
        %v3229 = vpop.f32.mrf.mxu0
        %v3230 = vadd.f32 0.0, %v3229
        %v3231 = vpop.f32.mrf.mxu0
        %v3232 = vadd.f32 0.0, %v3231
        %3233 = vmatmul.bf16.gmra.mxu0 %v3160
        %v3234 = vpop.f32.mrf.mxu0
        %v3235 = vadd.f32 0.0, %v3234
        %v3236 = vpop.f32.mrf.mxu0
        %v3237 = vadd.f32 0.0, %v3236
        %3238 = vmatmul.bf16.gmra.mxu0 %v3163
        %v3239 = vpop.f32.mrf.mxu0
        %v3240 = vadd.f32 0.0, %v3239
        %v3241 = vpop.f32.mrf.mxu0
        %v3242 = vadd.f32 0.0, %v3241
        %3243 = vmatmul.bf16.gmra.mxu0 %v3166
        %v3244 = vpop.f32.mrf.mxu0
        %v3245 = vadd.f32 0.0, %v3244
        %v3246 = vpop.f32.mrf.mxu0
        %v3247 = vadd.f32 0.0, %v3246
        %3248 = vmatmul.bf16.gmra.mxu0 %v3169
        %v3249 = vpop.f32.mrf.mxu0
        %v3250 = vadd.f32 0.0, %v3249
        %v3251 = vpop.f32.mrf.mxu0
        %v3252 = vadd.f32 0.0, %v3251
        %3253 = vmatmul.bf16.gmra.mxu0 %v3172
        %v3254 = vpop.f32.mrf.mxu0
        %v3255 = vadd.f32 0.0, %v3254
        %v3256 = vpop.f32.mrf.mxu0
        %v3257 = vadd.f32 0.0, %v3256
        %3258 = vmatmul.bf16.gmra.mxu0 %v3175
        %v3259 = vpop.f32.mrf.mxu0
        %v3260 = vadd.f32 0.0, %v3259
        %v3261 = vpop.f32.mrf.mxu0
        %v3262 = vadd.f32 0.0, %v3261
        %3263 = vmatmul.bf16.gmra.mxu0 %v3178
        %v3264 = vpop.f32.mrf.mxu0
        %v3265 = vadd.f32 0.0, %v3264
        %v3266 = vpop.f32.mrf.mxu0
        %v3267 = vadd.f32 0.0, %v3266
        %3268 = vdwg.mxu0
        %v3269 = vadd.f32 %v2978, %v3190
        %v3270 = vadd.f32 %v2979, %v3192
        %v3271 = vadd.f32 %v2980, %v3195
        %v3272 = vadd.f32 %v2981, %v3197
        %v3273 = vadd.f32 %v2982, %v3200
        %v3274 = vadd.f32 %v2983, %v3202
        %v3275 = vadd.f32 %v2984, %v3205
        %v3276 = vadd.f32 %v2985, %v3207
        %v3277 = vadd.f32 %v2986, %v3210
        %v3278 = vadd.f32 %v2987, %v3212
        %v3279 = vadd.f32 %v2988, %v3215
        %v3280 = vadd.f32 %v2989, %v3217
        %v3281 = vadd.f32 %v2990, %v3220
        %v3282 = vadd.f32 %v2991, %v3222
        %v3283 = vadd.f32 %v2992, %v3225
        %v3284 = vadd.f32 %v2993, %v3227
        %v3285 = vadd.f32 %v2994, %v3230
        %v3286 = vadd.f32 %v2995, %v3232
        %v3287 = vadd.f32 %v2996, %v3235
        %v3288 = vadd.f32 %v2997, %v3237
        %v3289 = vadd.f32 %v2998, %v3240
        %v3290 = vadd.f32 %v2999, %v3242
        %v3291 = vadd.f32 %v3000, %v3245
        %v3292 = vadd.f32 %v3001, %v3247
        %v3293 = vadd.f32 %v3002, %v3250
        %v3294 = vadd.f32 %v3003, %v3252
        %v3295 = vadd.f32 %v3004, %v3255
        %v3296 = vadd.f32 %v3005, %v3257
        %v3297 = vadd.f32 %v3006, %v3260
        %v3298 = vadd.f32 %v3007, %v3262
        %v3299 = vadd.f32 %v3008, %v3265
        %v3300 = vadd.f32 %v3009, %v3267
        %s3301 = scalar_lea.vmem %s282, 16
        %v3302 = vld [vmem:[%s3301] sm:$0xf]
        %v3303 = vld [vmem:[%s3301 + $0x4] sm:$0xf]
        %v3304 = vld [vmem:[%s3301 + $0x8] sm:$0xf]
        %v3305 = vld [vmem:[%s3301 + $0xc] sm:$0xf]
        %v3306 = vld [vmem:[%s3301 + $0x10] sm:$0xf]
        %v3307 = vld [vmem:[%s3301 + $0x14] sm:$0xf]
        %v3308 = vld [vmem:[%s3301 + $0x18] sm:$0xf]
        %v3309 = vld [vmem:[%s3301 + $0x1c] sm:$0xf]
        %v3310 = vld [vmem:[%s3301 + $0x20] sm:$0xf]
        %v3311 = vld [vmem:[%s3301 + $0x24] sm:$0xf]
        %v3312 = vld [vmem:[%s3301 + $0x28] sm:$0xf]
        %v3313 = vld [vmem:[%s3301 + $0x2c] sm:$0xf]
        %v3314 = vld [vmem:[%s3301 + $0x30] sm:$0xf]
        %v3315 = vld [vmem:[%s3301 + $0x34] sm:$0xf]
        %v3316 = vld [vmem:[%s3301 + $0x38] sm:$0xf]
        %v3317 = vld [vmem:[%s3301 + $0x3c] sm:$0xf]
        %v3318 = vld [vmem:[%s3301 + $0x40] sm:$0xf]
        %v3319 = vld [vmem:[%s3301 + $0x44] sm:$0xf]
        %v3320 = vld [vmem:[%s3301 + $0x48] sm:$0xf]
        %v3321 = vld [vmem:[%s3301 + $0x4c] sm:$0xf]
        %v3322 = vld [vmem:[%s3301 + $0x50] sm:$0xf]
        %v3323 = vld [vmem:[%s3301 + $0x54] sm:$0xf]
        %v3324 = vld [vmem:[%s3301 + $0x58] sm:$0xf]
        %v3325 = vld [vmem:[%s3301 + $0x5c] sm:$0xf]
        %v3326 = vld [vmem:[%s3301 + $0x60] sm:$0xf]
        %v3327 = vld [vmem:[%s3301 + $0x64] sm:$0xf]
        %v3328 = vld [vmem:[%s3301 + $0x68] sm:$0xf]
        %v3329 = vld [vmem:[%s3301 + $0x6c] sm:$0xf]
        %v3330 = vld [vmem:[%s3301 + $0x70] sm:$0xf]
        %v3331 = vld [vmem:[%s3301 + $0x74] sm:$0xf]
        %v3332 = vld [vmem:[%s3301 + $0x78] sm:$0xf]
        %v3333 = vld [vmem:[%s3301 + $0x7c] sm:$0xf]
        %s3334 = scalar_lea.vmem [#allocation4], 56
        %v3335 = vld [vmem:[%s3334] sm:$0xf]
        %v3336 = vld [vmem:[%s3334 + $0x4] sm:$0xf]
        %v3369 = vunpack.c.l.b16 %v3302
        %v3370 = vunpack.c.l.b16 %v3303
        %v3371 = vunpack.c.l.b16 %v3304
        %v3372 = vunpack.c.l.b16 %v3305
        %v3373 = vunpack.c.l.b16 %v3306
        %v3374 = vunpack.c.l.b16 %v3307
        %v3375 = vunpack.c.l.b16 %v3308
        %v3376 = vunpack.c.l.b16 %v3309
        %v3377 = vunpack.c.l.b16 %v3310
        %v3378 = vunpack.c.l.b16 %v3311
        %v3379 = vunpack.c.l.b16 %v3312
        %v3380 = vunpack.c.l.b16 %v3313
        %v3381 = vunpack.c.l.b16 %v3314
        %v3382 = vunpack.c.l.b16 %v3315
        %v3383 = vunpack.c.l.b16 %v3316
        %v3384 = vunpack.c.l.b16 %v3317
        %v3385 = vunpack.c.l.b16 %v3318
        %v3386 = vunpack.c.l.b16 %v3319
        %v3387 = vunpack.c.l.b16 %v3320
        %v3388 = vunpack.c.l.b16 %v3321
        %v3389 = vunpack.c.l.b16 %v3322
        %v3390 = vunpack.c.l.b16 %v3323
        %v3391 = vunpack.c.l.b16 %v3324
        %v3392 = vunpack.c.l.b16 %v3325
        %v3393 = vunpack.c.l.b16 %v3326
        %v3394 = vunpack.c.l.b16 %v3327
        %v3395 = vunpack.c.l.b16 %v3328
        %v3396 = vunpack.c.l.b16 %v3329
        %v3397 = vunpack.c.l.b16 %v3330
        %v3398 = vunpack.c.l.b16 %v3331
        %v3399 = vunpack.c.l.b16 %v3332
        %v3400 = vunpack.c.l.b16 %v3333
        %v3401 = vpack.c.b16 %v3370, %v3369
        %v3402 = vpack.c.b16 %v3372, %v3371
        %v3403 = vpack.c.b16 %v3374, %v3373
        %v3404 = vpack.c.b16 %v3376, %v3375
        %v3405 = vpack.c.b16 %v3378, %v3377
        %v3406 = vpack.c.b16 %v3380, %v3379
        %v3407 = vpack.c.b16 %v3382, %v3381
        %v3408 = vpack.c.b16 %v3384, %v3383
        %v3409 = vpack.c.b16 %v3386, %v3385
        %v3410 = vpack.c.b16 %v3388, %v3387
        %v3411 = vpack.c.b16 %v3390, %v3389
        %v3412 = vpack.c.b16 %v3392, %v3391
        %v3413 = vpack.c.b16 %v3394, %v3393
        %v3414 = vpack.c.b16 %v3396, %v3395
        %v3415 = vpack.c.b16 %v3398, %v3397
        %v3416 = vpack.c.b16 %v3400, %v3399
        %v3419 = vunpack.c.l.b16 %v3335
        %v3420 = vunpack.c.l.b16 %v3336
        %v3421 = vpack.c.b16 %v3420, %v3419
        %v3424 = vsel %vm1486, %v3401, 0
        %v3427 = vsel %vm1486, %v3402, 0
        %v3430 = vsel %vm1486, %v3403, 0
        %v3433 = vsel %vm1486, %v3404, 0
        %v3436 = vsel %vm1486, %v3405, 0
        %v3439 = vsel %vm1486, %v3406, 0
        %v3442 = vsel %vm1486, %v3407, 0
        %v3445 = vsel %vm1486, %v3408, 0
        %v3448 = vsel %vm1486, %v3409, 0
        %v3451 = vsel %vm1486, %v3410, 0
        %v3454 = vsel %vm1486, %v3411, 0
        %v3457 = vsel %vm1486, %v3412, 0
        %v3460 = vsel %vm1486, %v3413, 0
        %v3463 = vsel %vm1486, %v3414, 0
        %v3466 = vsel %vm1486, %v3415, 0
        %v3469 = vsel %vm1486, %v3416, 0
        %3471 = vmatpush.bf16.msra.mxu0 0
        %3472 = vmatpush.bf16.msra.mxu0 0
        %3473 = vmatpush.bf16.msra.mxu0 0
        %3474 = vmatpush.bf16.msra.mxu0 0
        %3475 = vmatpush.bf16.msra.mxu0 0
        %3476 = vmatpush.bf16.msra.mxu0 0
        %3477 = vmatpush.bf16.msra.mxu0 0
        %3478 = vmatpush.bf16.msra.mxu0 %v3421
        %3479 = vmatmul.bf16.gmra.mxu0 %v3424
        %v3480 = vpop.f32.mrf.mxu0
        %v3481 = vadd.f32 0.0, %v3480
        %v3482 = vpop.f32.mrf.mxu0
        %v3483 = vadd.f32 0.0, %v3482
        %3484 = vmatmul.bf16.gmra.mxu0 %v3427
        %v3485 = vpop.f32.mrf.mxu0
        %v3486 = vadd.f32 0.0, %v3485
        %v3487 = vpop.f32.mrf.mxu0
        %v3488 = vadd.f32 0.0, %v3487
        %3489 = vmatmul.bf16.gmra.mxu0 %v3430
        %v3490 = vpop.f32.mrf.mxu0
        %v3491 = vadd.f32 0.0, %v3490
        %v3492 = vpop.f32.mrf.mxu0
        %v3493 = vadd.f32 0.0, %v3492
        %3494 = vmatmul.bf16.gmra.mxu0 %v3433
        %v3495 = vpop.f32.mrf.mxu0
        %v3496 = vadd.f32 0.0, %v3495
        %v3497 = vpop.f32.mrf.mxu0
        %v3498 = vadd.f32 0.0, %v3497
        %3499 = vmatmul.bf16.gmra.mxu0 %v3436
        %v3500 = vpop.f32.mrf.mxu0
        %v3501 = vadd.f32 0.0, %v3500
        %v3502 = vpop.f32.mrf.mxu0
        %v3503 = vadd.f32 0.0, %v3502
        %3504 = vmatmul.bf16.gmra.mxu0 %v3439
        %v3505 = vpop.f32.mrf.mxu0
        %v3506 = vadd.f32 0.0, %v3505
        %v3507 = vpop.f32.mrf.mxu0
        %v3508 = vadd.f32 0.0, %v3507
        %3509 = vmatmul.bf16.gmra.mxu0 %v3442
        %v3510 = vpop.f32.mrf.mxu0
        %v3511 = vadd.f32 0.0, %v3510
        %v3512 = vpop.f32.mrf.mxu0
        %v3513 = vadd.f32 0.0, %v3512
        %3514 = vmatmul.bf16.gmra.mxu0 %v3445
        %v3515 = vpop.f32.mrf.mxu0
        %v3516 = vadd.f32 0.0, %v3515
        %v3517 = vpop.f32.mrf.mxu0
        %v3518 = vadd.f32 0.0, %v3517
        %3519 = vmatmul.bf16.gmra.mxu0 %v3448
        %v3520 = vpop.f32.mrf.mxu0
        %v3521 = vadd.f32 0.0, %v3520
        %v3522 = vpop.f32.mrf.mxu0
        %v3523 = vadd.f32 0.0, %v3522
        %3524 = vmatmul.bf16.gmra.mxu0 %v3451
        %v3525 = vpop.f32.mrf.mxu0
        %v3526 = vadd.f32 0.0, %v3525
        %v3527 = vpop.f32.mrf.mxu0
        %v3528 = vadd.f32 0.0, %v3527
        %3529 = vmatmul.bf16.gmra.mxu0 %v3454
        %v3530 = vpop.f32.mrf.mxu0
        %v3531 = vadd.f32 0.0, %v3530
        %v3532 = vpop.f32.mrf.mxu0
        %v3533 = vadd.f32 0.0, %v3532
        %3534 = vmatmul.bf16.gmra.mxu0 %v3457
        %v3535 = vpop.f32.mrf.mxu0
        %v3536 = vadd.f32 0.0, %v3535
        %v3537 = vpop.f32.mrf.mxu0
        %v3538 = vadd.f32 0.0, %v3537
        %3539 = vmatmul.bf16.gmra.mxu0 %v3460
        %v3540 = vpop.f32.mrf.mxu0
        %v3541 = vadd.f32 0.0, %v3540
        %v3542 = vpop.f32.mrf.mxu0
        %v3543 = vadd.f32 0.0, %v3542
        %3544 = vmatmul.bf16.gmra.mxu0 %v3463
        %v3545 = vpop.f32.mrf.mxu0
        %v3546 = vadd.f32 0.0, %v3545
        %v3547 = vpop.f32.mrf.mxu0
        %v3548 = vadd.f32 0.0, %v3547
        %3549 = vmatmul.bf16.gmra.mxu0 %v3466
        %v3550 = vpop.f32.mrf.mxu0
        %v3551 = vadd.f32 0.0, %v3550
        %v3552 = vpop.f32.mrf.mxu0
        %v3553 = vadd.f32 0.0, %v3552
        %3554 = vmatmul.bf16.gmra.mxu0 %v3469
        %v3555 = vpop.f32.mrf.mxu0
        %v3556 = vadd.f32 0.0, %v3555
        %v3557 = vpop.f32.mrf.mxu0
        %v3558 = vadd.f32 0.0, %v3557
        %3559 = vdwg.mxu0
        %v3560 = vadd.f32 %v3269, %v3481
        %v3561 = vadd.f32 %v3270, %v3483
        %v3562 = vadd.f32 %v3271, %v3486
        %v3563 = vadd.f32 %v3272, %v3488
        %v3564 = vadd.f32 %v3273, %v3491
        %v3565 = vadd.f32 %v3274, %v3493
        %v3566 = vadd.f32 %v3275, %v3496
        %v3567 = vadd.f32 %v3276, %v3498
        %v3568 = vadd.f32 %v3277, %v3501
        %v3569 = vadd.f32 %v3278, %v3503
        %v3570 = vadd.f32 %v3279, %v3506
        %v3571 = vadd.f32 %v3280, %v3508
        %v3572 = vadd.f32 %v3281, %v3511
        %v3573 = vadd.f32 %v3282, %v3513
        %v3574 = vadd.f32 %v3283, %v3516
        %v3575 = vadd.f32 %v3284, %v3518
        %v3576 = vadd.f32 %v3285, %v3521
        %v3577 = vadd.f32 %v3286, %v3523
        %v3578 = vadd.f32 %v3287, %v3526
        %v3579 = vadd.f32 %v3288, %v3528
        %v3580 = vadd.f32 %v3289, %v3531
        %v3581 = vadd.f32 %v3290, %v3533
        %v3582 = vadd.f32 %v3291, %v3536
        %v3583 = vadd.f32 %v3292, %v3538
        %v3584 = vadd.f32 %v3293, %v3541
        %v3585 = vadd.f32 %v3294, %v3543
        %v3586 = vadd.f32 %v3295, %v3546
        %v3587 = vadd.f32 %v3296, %v3548
        %v3588 = vadd.f32 %v3297, %v3551
        %v3589 = vadd.f32 %v3298, %v3553
        %v3590 = vadd.f32 %v3299, %v3556
        %v3591 = vadd.f32 %v3300, %v3558
        %s3592 = scalar_lea.vmem [#allocation3], 16
        %v3593 = vld [vmem:[%s3592] sm:$0xf]
        %v3594 = vld [vmem:[%s3592 + $0x4] sm:$0xf]
        %v3595 = vld [vmem:[%s3592 + $0x8] sm:$0xf]
        %v3596 = vld [vmem:[%s3592 + $0xc] sm:$0xf]
        %v3597 = vld [vmem:[%s3592 + $0x10] sm:$0xf]
        %v3598 = vld [vmem:[%s3592 + $0x14] sm:$0xf]
        %v3599 = vld [vmem:[%s3592 + $0x18] sm:$0xf]
        %v3600 = vld [vmem:[%s3592 + $0x1c] sm:$0xf]
        %v3601 = vld [vmem:[%s3592 + $0x20] sm:$0xf]
        %v3602 = vld [vmem:[%s3592 + $0x24] sm:$0xf]
        %v3603 = vld [vmem:[%s3592 + $0x28] sm:$0xf]
        %v3604 = vld [vmem:[%s3592 + $0x2c] sm:$0xf]
        %v3605 = vld [vmem:[%s3592 + $0x30] sm:$0xf]
        %v3606 = vld [vmem:[%s3592 + $0x34] sm:$0xf]
        %v3607 = vld [vmem:[%s3592 + $0x38] sm:$0xf]
        %v3608 = vld [vmem:[%s3592 + $0x3c] sm:$0xf]
        %v3609 = vld [vmem:[%s3592 + $0x40] sm:$0xf]
        %v3610 = vld [vmem:[%s3592 + $0x44] sm:$0xf]
        %v3611 = vld [vmem:[%s3592 + $0x48] sm:$0xf]
        %v3612 = vld [vmem:[%s3592 + $0x4c] sm:$0xf]
        %v3613 = vld [vmem:[%s3592 + $0x50] sm:$0xf]
        %v3614 = vld [vmem:[%s3592 + $0x54] sm:$0xf]
        %v3615 = vld [vmem:[%s3592 + $0x58] sm:$0xf]
        %v3616 = vld [vmem:[%s3592 + $0x5c] sm:$0xf]
        %v3617 = vld [vmem:[%s3592 + $0x60] sm:$0xf]
        %v3618 = vld [vmem:[%s3592 + $0x64] sm:$0xf]
        %v3619 = vld [vmem:[%s3592 + $0x68] sm:$0xf]
        %v3620 = vld [vmem:[%s3592 + $0x6c] sm:$0xf]
        %v3621 = vld [vmem:[%s3592 + $0x70] sm:$0xf]
        %v3622 = vld [vmem:[%s3592 + $0x74] sm:$0xf]
        %v3623 = vld [vmem:[%s3592 + $0x78] sm:$0xf]
        %v3624 = vld [vmem:[%s3592 + $0x7c] sm:$0xf]
        %s3625 = scalar_lea.vmem [#allocation4], 64
        %v3626 = vld [vmem:[%s3625] sm:$0xf]
        %v3627 = vld [vmem:[%s3625 + $0x4] sm:$0xf]
        %v3660 = vunpack.c.l.b16 %v3593
        %v3661 = vunpack.c.l.b16 %v3594
        %v3662 = vunpack.c.l.b16 %v3595
        %v3663 = vunpack.c.l.b16 %v3596
        %v3664 = vunpack.c.l.b16 %v3597
        %v3665 = vunpack.c.l.b16 %v3598
        %v3666 = vunpack.c.l.b16 %v3599
        %v3667 = vunpack.c.l.b16 %v3600
        %v3668 = vunpack.c.l.b16 %v3601
        %v3669 = vunpack.c.l.b16 %v3602
        %v3670 = vunpack.c.l.b16 %v3603
        %v3671 = vunpack.c.l.b16 %v3604
        %v3672 = vunpack.c.l.b16 %v3605
        %v3673 = vunpack.c.l.b16 %v3606
        %v3674 = vunpack.c.l.b16 %v3607
        %v3675 = vunpack.c.l.b16 %v3608
        %v3676 = vunpack.c.l.b16 %v3609
        %v3677 = vunpack.c.l.b16 %v3610
        %v3678 = vunpack.c.l.b16 %v3611
        %v3679 = vunpack.c.l.b16 %v3612
        %v3680 = vunpack.c.l.b16 %v3613
        %v3681 = vunpack.c.l.b16 %v3614
        %v3682 = vunpack.c.l.b16 %v3615
        %v3683 = vunpack.c.l.b16 %v3616
        %v3684 = vunpack.c.l.b16 %v3617
        %v3685 = vunpack.c.l.b16 %v3618
        %v3686 = vunpack.c.l.b16 %v3619
        %v3687 = vunpack.c.l.b16 %v3620
        %v3688 = vunpack.c.l.b16 %v3621
        %v3689 = vunpack.c.l.b16 %v3622
        %v3690 = vunpack.c.l.b16 %v3623
        %v3691 = vunpack.c.l.b16 %v3624
        %v3692 = vpack.c.b16 %v3661, %v3660
        %v3693 = vpack.c.b16 %v3663, %v3662
        %v3694 = vpack.c.b16 %v3665, %v3664
        %v3695 = vpack.c.b16 %v3667, %v3666
        %v3696 = vpack.c.b16 %v3669, %v3668
        %v3697 = vpack.c.b16 %v3671, %v3670
        %v3698 = vpack.c.b16 %v3673, %v3672
        %v3699 = vpack.c.b16 %v3675, %v3674
        %v3700 = vpack.c.b16 %v3677, %v3676
        %v3701 = vpack.c.b16 %v3679, %v3678
        %v3702 = vpack.c.b16 %v3681, %v3680
        %v3703 = vpack.c.b16 %v3683, %v3682
        %v3704 = vpack.c.b16 %v3685, %v3684
        %v3705 = vpack.c.b16 %v3687, %v3686
        %v3706 = vpack.c.b16 %v3689, %v3688
        %v3707 = vpack.c.b16 %v3691, %v3690
        %v3710 = vunpack.c.l.b16 %v3626
        %v3711 = vunpack.c.l.b16 %v3627
        %v3712 = vpack.c.b16 %v3711, %v3710
        %v3715 = vsel %vm1486, %v3692, 0
        %v3718 = vsel %vm1486, %v3693, 0
        %v3721 = vsel %vm1486, %v3694, 0
        %v3724 = vsel %vm1486, %v3695, 0
        %v3727 = vsel %vm1486, %v3696, 0
        %v3730 = vsel %vm1486, %v3697, 0
        %v3733 = vsel %vm1486, %v3698, 0
        %v3736 = vsel %vm1486, %v3699, 0
        %v3739 = vsel %vm1486, %v3700, 0
        %v3742 = vsel %vm1486, %v3701, 0
        %v3745 = vsel %vm1486, %v3702, 0
        %v3748 = vsel %vm1486, %v3703, 0
        %v3751 = vsel %vm1486, %v3704, 0
        %v3754 = vsel %vm1486, %v3705, 0
        %v3757 = vsel %vm1486, %v3706, 0
        %v3760 = vsel %vm1486, %v3707, 0
        %3762 = vmatpush.bf16.msra.mxu0 0
        %3763 = vmatpush.bf16.msra.mxu0 0
        %3764 = vmatpush.bf16.msra.mxu0 0
        %3765 = vmatpush.bf16.msra.mxu0 0
        %3766 = vmatpush.bf16.msra.mxu0 0
        %3767 = vmatpush.bf16.msra.mxu0 0
        %3768 = vmatpush.bf16.msra.mxu0 0
        %3769 = vmatpush.bf16.msra.mxu0 %v3712
        %3770 = vmatmul.bf16.gmra.mxu0 %v3715
        %v3771 = vpop.f32.mrf.mxu0
        %v3772 = vadd.f32 0.0, %v3771
        %v3773 = vpop.f32.mrf.mxu0
        %v3774 = vadd.f32 0.0, %v3773
        %3775 = vmatmul.bf16.gmra.mxu0 %v3718
        %v3776 = vpop.f32.mrf.mxu0
        %v3777 = vadd.f32 0.0, %v3776
        %v3778 = vpop.f32.mrf.mxu0
        %v3779 = vadd.f32 0.0, %v3778
        %3780 = vmatmul.bf16.gmra.mxu0 %v3721
        %v3781 = vpop.f32.mrf.mxu0
        %v3782 = vadd.f32 0.0, %v3781
        %v3783 = vpop.f32.mrf.mxu0
        %v3784 = vadd.f32 0.0, %v3783
        %3785 = vmatmul.bf16.gmra.mxu0 %v3724
        %v3786 = vpop.f32.mrf.mxu0
        %v3787 = vadd.f32 0.0, %v3786
        %v3788 = vpop.f32.mrf.mxu0
        %v3789 = vadd.f32 0.0, %v3788
        %3790 = vmatmul.bf16.gmra.mxu0 %v3727
        %v3791 = vpop.f32.mrf.mxu0
        %v3792 = vadd.f32 0.0, %v3791
        %v3793 = vpop.f32.mrf.mxu0
        %v3794 = vadd.f32 0.0, %v3793
        %3795 = vmatmul.bf16.gmra.mxu0 %v3730
        %v3796 = vpop.f32.mrf.mxu0
        %v3797 = vadd.f32 0.0, %v3796
        %v3798 = vpop.f32.mrf.mxu0
        %v3799 = vadd.f32 0.0, %v3798
        %3800 = vmatmul.bf16.gmra.mxu0 %v3733
        %v3801 = vpop.f32.mrf.mxu0
        %v3802 = vadd.f32 0.0, %v3801
        %v3803 = vpop.f32.mrf.mxu0
        %v3804 = vadd.f32 0.0, %v3803
        %3805 = vmatmul.bf16.gmra.mxu0 %v3736
        %v3806 = vpop.f32.mrf.mxu0
        %v3807 = vadd.f32 0.0, %v3806
        %v3808 = vpop.f32.mrf.mxu0
        %v3809 = vadd.f32 0.0, %v3808
        %3810 = vmatmul.bf16.gmra.mxu0 %v3739
        %v3811 = vpop.f32.mrf.mxu0
        %v3812 = vadd.f32 0.0, %v3811
        %v3813 = vpop.f32.mrf.mxu0
        %v3814 = vadd.f32 0.0, %v3813
        %3815 = vmatmul.bf16.gmra.mxu0 %v3742
        %v3816 = vpop.f32.mrf.mxu0
        %v3817 = vadd.f32 0.0, %v3816
        %v3818 = vpop.f32.mrf.mxu0
        %v3819 = vadd.f32 0.0, %v3818
        %3820 = vmatmul.bf16.gmra.mxu0 %v3745
        %v3821 = vpop.f32.mrf.mxu0
        %v3822 = vadd.f32 0.0, %v3821
        %v3823 = vpop.f32.mrf.mxu0
        %v3824 = vadd.f32 0.0, %v3823
        %3825 = vmatmul.bf16.gmra.mxu0 %v3748
        %v3826 = vpop.f32.mrf.mxu0
        %v3827 = vadd.f32 0.0, %v3826
        %v3828 = vpop.f32.mrf.mxu0
        %v3829 = vadd.f32 0.0, %v3828
        %3830 = vmatmul.bf16.gmra.mxu0 %v3751
        %v3831 = vpop.f32.mrf.mxu0
        %v3832 = vadd.f32 0.0, %v3831
        %v3833 = vpop.f32.mrf.mxu0
        %v3834 = vadd.f32 0.0, %v3833
        %3835 = vmatmul.bf16.gmra.mxu0 %v3754
        %v3836 = vpop.f32.mrf.mxu0
        %v3837 = vadd.f32 0.0, %v3836
        %v3838 = vpop.f32.mrf.mxu0
        %v3839 = vadd.f32 0.0, %v3838
        %3840 = vmatmul.bf16.gmra.mxu0 %v3757
        %v3841 = vpop.f32.mrf.mxu0
        %v3842 = vadd.f32 0.0, %v3841
        %v3843 = vpop.f32.mrf.mxu0
        %v3844 = vadd.f32 0.0, %v3843
        %3845 = vmatmul.bf16.gmra.mxu0 %v3760
        %v3846 = vpop.f32.mrf.mxu0
        %v3847 = vadd.f32 0.0, %v3846
        %v3848 = vpop.f32.mrf.mxu0
        %v3849 = vadd.f32 0.0, %v3848
        %3850 = vdwg.mxu0
        %v3851 = vadd.f32 %v3560, %v3772
        %v3852 = vadd.f32 %v3561, %v3774
        %v3853 = vadd.f32 %v3562, %v3777
        %v3854 = vadd.f32 %v3563, %v3779
        %v3855 = vadd.f32 %v3564, %v3782
        %v3856 = vadd.f32 %v3565, %v3784
        %v3857 = vadd.f32 %v3566, %v3787
        %v3858 = vadd.f32 %v3567, %v3789
        %v3859 = vadd.f32 %v3568, %v3792
        %v3860 = vadd.f32 %v3569, %v3794
        %v3861 = vadd.f32 %v3570, %v3797
        %v3862 = vadd.f32 %v3571, %v3799
        %v3863 = vadd.f32 %v3572, %v3802
        %v3864 = vadd.f32 %v3573, %v3804
        %v3865 = vadd.f32 %v3574, %v3807
        %v3866 = vadd.f32 %v3575, %v3809
        %v3867 = vadd.f32 %v3576, %v3812
        %v3868 = vadd.f32 %v3577, %v3814
        %v3869 = vadd.f32 %v3578, %v3817
        %v3870 = vadd.f32 %v3579, %v3819
        %v3871 = vadd.f32 %v3580, %v3822
        %v3872 = vadd.f32 %v3581, %v3824
        %v3873 = vadd.f32 %v3582, %v3827
        %v3874 = vadd.f32 %v3583, %v3829
        %v3875 = vadd.f32 %v3584, %v3832
        %v3876 = vadd.f32 %v3585, %v3834
        %v3877 = vadd.f32 %v3586, %v3837
        %v3878 = vadd.f32 %v3587, %v3839
        %v3879 = vadd.f32 %v3588, %v3842
        %v3880 = vadd.f32 %v3589, %v3844
        %v3881 = vadd.f32 %v3590, %v3847
        %v3882 = vadd.f32 %v3591, %v3849
        %v3883 = vld [vmem:[#allocation6] sm:$0x1]
        %v3885 = vperm.slane %v3883, 0
        %v3887 = vadd.f32 %v3851, %v3885
        %v3888 = vadd.f32 %v3852, %v3885
        %v3889 = vadd.f32 %v3853, %v3885
        %v3890 = vadd.f32 %v3854, %v3885
        %v3891 = vadd.f32 %v3855, %v3885
        %v3892 = vadd.f32 %v3856, %v3885
        %v3893 = vadd.f32 %v3857, %v3885
        %v3894 = vadd.f32 %v3858, %v3885
        %v3895 = vadd.f32 %v3859, %v3885
        %v3896 = vadd.f32 %v3860, %v3885
        %v3897 = vadd.f32 %v3861, %v3885
        %v3898 = vadd.f32 %v3862, %v3885
        %v3899 = vadd.f32 %v3863, %v3885
        %v3900 = vadd.f32 %v3864, %v3885
        %v3901 = vadd.f32 %v3865, %v3885
        %v3902 = vadd.f32 %v3866, %v3885
        %v3903 = vadd.f32 %v3867, %v3885
        %v3904 = vadd.f32 %v3868, %v3885
        %v3905 = vadd.f32 %v3869, %v3885
        %v3906 = vadd.f32 %v3870, %v3885
        %v3907 = vadd.f32 %v3871, %v3885
        %v3908 = vadd.f32 %v3872, %v3885
        %v3909 = vadd.f32 %v3873, %v3885
        %v3910 = vadd.f32 %v3874, %v3885
        %v3911 = vadd.f32 %v3875, %v3885
        %v3912 = vadd.f32 %v3876, %v3885
        %v3913 = vadd.f32 %v3877, %v3885
        %v3914 = vadd.f32 %v3878, %v3885
        %v3915 = vadd.f32 %v3879, %v3885
        %v3916 = vadd.f32 %v3880, %v3885
        %v3917 = vadd.f32 %v3881, %v3885
        %v3918 = vadd.f32 %v3882, %v3885
        %v3919 = vmax.f32 %v3887, 0.0
        %v3920 = vmax.f32 %v3888, 0.0
        %v3921 = vmax.f32 %v3889, 0.0
        %v3922 = vmax.f32 %v3890, 0.0
        %v3923 = vmax.f32 %v3891, 0.0
        %v3924 = vmax.f32 %v3892, 0.0
        %v3925 = vmax.f32 %v3893, 0.0
        %v3926 = vmax.f32 %v3894, 0.0
        %v3927 = vmax.f32 %v3895, 0.0
        %v3928 = vmax.f32 %v3896, 0.0
        %v3929 = vmax.f32 %v3897, 0.0
        %v3930 = vmax.f32 %v3898, 0.0
        %v3931 = vmax.f32 %v3899, 0.0
        %v3932 = vmax.f32 %v3900, 0.0
        %v3933 = vmax.f32 %v3901, 0.0
        %v3934 = vmax.f32 %v3902, 0.0
        %v3935 = vmax.f32 %v3903, 0.0
        %v3936 = vmax.f32 %v3904, 0.0
        %v3937 = vmax.f32 %v3905, 0.0
        %v3938 = vmax.f32 %v3906, 0.0
        %v3939 = vmax.f32 %v3907, 0.0
        %v3940 = vmax.f32 %v3908, 0.0
        %v3941 = vmax.f32 %v3909, 0.0
        %v3942 = vmax.f32 %v3910, 0.0
        %v3943 = vmax.f32 %v3911, 0.0
        %v3944 = vmax.f32 %v3912, 0.0
        %v3945 = vmax.f32 %v3913, 0.0
        %v3946 = vmax.f32 %v3914, 0.0
        %v3947 = vmax.f32 %v3915, 0.0
        %v3948 = vmax.f32 %v3916, 0.0
        %v3949 = vmax.f32 %v3917, 0.0
        %v3950 = vmax.f32 %v3918, 0.0
        %v3951 = vpack.c.bf16 %v3920, %v3919
        %v3952 = vpack.c.bf16 %v3922, %v3921
        %v3953 = vpack.c.bf16 %v3924, %v3923
        %v3954 = vpack.c.bf16 %v3926, %v3925
        %v3955 = vpack.c.bf16 %v3928, %v3927
        %v3956 = vpack.c.bf16 %v3930, %v3929
        %v3957 = vpack.c.bf16 %v3932, %v3931
        %v3958 = vpack.c.bf16 %v3934, %v3933
        %v3959 = vpack.c.bf16 %v3936, %v3935
        %v3960 = vpack.c.bf16 %v3938, %v3937
        %v3961 = vpack.c.bf16 %v3940, %v3939
        %v3962 = vpack.c.bf16 %v3942, %v3941
        %v3963 = vpack.c.bf16 %v3944, %v3943
        %v3964 = vpack.c.bf16 %v3946, %v3945
        %v3965 = vpack.c.bf16 %v3948, %v3947
        %v3966 = vpack.c.bf16 %v3950, %v3949
        %v3967 = vld [vmem:[#allocation8] sm:$0xf]
        %v3968 = vld [vmem:[#allocation8 + $0x4] sm:$0xf]
        %v3969 = vld [vmem:[#allocation8 + $0x8] sm:$0xf]
        %v3970 = vld [vmem:[#allocation8 + $0xc] sm:$0xf]
        %v3971 = vld [vmem:[#allocation9] sm:$0x1]
        %v3973 = vperm.slane %v3971, 0
        %v3979 = vunpack.c.l.b16 %v3967
        %v3980 = vunpack.c.l.b16 %v3968
        %v3981 = vunpack.c.l.b16 %v3969
        %v3982 = vunpack.c.l.b16 %v3970
        %v3983 = vpack.c.b16 %v3980, %v3979
        %v3984 = vpack.c.b16 %v3982, %v3981
        %vm3987 = vcmask 261120
        %v3989 = vsel %vm3987, %v3951, 0
        %v3992 = vsel %vm3987, %v3952, 0
        %v3995 = vsel %vm3987, %v3953, 0
        %v3998 = vsel %vm3987, %v3954, 0
        %v4001 = vsel %vm3987, %v3955, 0
        %v4004 = vsel %vm3987, %v3956, 0
        %v4007 = vsel %vm3987, %v3957, 0
        %v4010 = vsel %vm3987, %v3958, 0
        %v4013 = vsel %vm3987, %v3959, 0
        %v4016 = vsel %vm3987, %v3960, 0
        %v4019 = vsel %vm3987, %v3961, 0
        %v4022 = vsel %vm3987, %v3962, 0
        %v4025 = vsel %vm3987, %v3963, 0
        %v4028 = vsel %vm3987, %v3964, 0
        %v4031 = vsel %vm3987, %v3965, 0
        %v4034 = vsel %vm3987, %v3966, 0
        %4036 = vmatpush.bf16.msra.mxu0 0
        %4037 = vmatpush.bf16.msra.mxu0 0
        %4038 = vmatpush.bf16.msra.mxu0 0
        %4039 = vmatpush.bf16.msra.mxu0 0
        %4040 = vmatpush.bf16.msra.mxu0 0
        %4041 = vmatpush.bf16.msra.mxu0 0
        %4042 = vmatpush.bf16.msra.mxu0 %v3984
        %4043 = vmatpush.bf16.msra.mxu0 %v3983
        %4044 = vmatmul.bf16.gmra.mxu0 %v3989
        %v4045 = vpop.f32.mrf.mxu0
        %v4046 = vadd.f32 %v3973, %v4045
        %v4047 = vpop.f32.mrf.mxu0
        %v4048 = vadd.f32 %v3973, %v4047
        %4049 = vmatmul.bf16.gmra.mxu0 %v3992
        %v4050 = vpop.f32.mrf.mxu0
        %v4051 = vadd.f32 %v3973, %v4050
        %v4052 = vpop.f32.mrf.mxu0
        %v4053 = vadd.f32 %v3973, %v4052
        %4054 = vmatmul.bf16.gmra.mxu0 %v3995
        %v4055 = vpop.f32.mrf.mxu0
        %v4056 = vadd.f32 %v3973, %v4055
        %v4057 = vpop.f32.mrf.mxu0
        %v4058 = vadd.f32 %v3973, %v4057
        %4059 = vmatmul.bf16.gmra.mxu0 %v3998
        %v4060 = vpop.f32.mrf.mxu0
        %v4061 = vadd.f32 %v3973, %v4060
        %v4062 = vpop.f32.mrf.mxu0
        %v4063 = vadd.f32 %v3973, %v4062
        %4064 = vmatmul.bf16.gmra.mxu0 %v4001
        %v4065 = vpop.f32.mrf.mxu0
        %v4066 = vadd.f32 %v3973, %v4065
        %v4067 = vpop.f32.mrf.mxu0
        %v4068 = vadd.f32 %v3973, %v4067
        %4069 = vmatmul.bf16.gmra.mxu0 %v4004
        %v4070 = vpop.f32.mrf.mxu0
        %v4071 = vadd.f32 %v3973, %v4070
        %v4072 = vpop.f32.mrf.mxu0
        %v4073 = vadd.f32 %v3973, %v4072
        %4074 = vmatmul.bf16.gmra.mxu0 %v4007
        %v4075 = vpop.f32.mrf.mxu0
        %v4076 = vadd.f32 %v3973, %v4075
        %v4077 = vpop.f32.mrf.mxu0
        %v4078 = vadd.f32 %v3973, %v4077
        %4079 = vmatmul.bf16.gmra.mxu0 %v4010
        %v4080 = vpop.f32.mrf.mxu0
        %v4081 = vadd.f32 %v3973, %v4080
        %v4082 = vpop.f32.mrf.mxu0
        %v4083 = vadd.f32 %v3973, %v4082
        %4084 = vmatmul.bf16.gmra.mxu0 %v4013
        %v4085 = vpop.f32.mrf.mxu0
        %v4086 = vadd.f32 %v3973, %v4085
        %v4087 = vpop.f32.mrf.mxu0
        %v4088 = vadd.f32 %v3973, %v4087
        %4089 = vmatmul.bf16.gmra.mxu0 %v4016
        %v4090 = vpop.f32.mrf.mxu0
        %v4091 = vadd.f32 %v3973, %v4090
        %v4092 = vpop.f32.mrf.mxu0
        %v4093 = vadd.f32 %v3973, %v4092
        %4094 = vmatmul.bf16.gmra.mxu0 %v4019
        %v4095 = vpop.f32.mrf.mxu0
        %v4096 = vadd.f32 %v3973, %v4095
        %v4097 = vpop.f32.mrf.mxu0
        %v4098 = vadd.f32 %v3973, %v4097
        %4099 = vmatmul.bf16.gmra.mxu0 %v4022
        %v4100 = vpop.f32.mrf.mxu0
        %v4101 = vadd.f32 %v3973, %v4100
        %v4102 = vpop.f32.mrf.mxu0
        %v4103 = vadd.f32 %v3973, %v4102
        %4104 = vmatmul.bf16.gmra.mxu0 %v4025
        %v4105 = vpop.f32.mrf.mxu0
        %v4106 = vadd.f32 %v3973, %v4105
        %v4107 = vpop.f32.mrf.mxu0
        %v4108 = vadd.f32 %v3973, %v4107
        %4109 = vmatmul.bf16.gmra.mxu0 %v4028
        %v4110 = vpop.f32.mrf.mxu0
        %v4111 = vadd.f32 %v3973, %v4110
        %v4112 = vpop.f32.mrf.mxu0
        %v4113 = vadd.f32 %v3973, %v4112
        %4114 = vmatmul.bf16.gmra.mxu0 %v4031
        %v4115 = vpop.f32.mrf.mxu0
        %v4116 = vadd.f32 %v3973, %v4115
        %v4117 = vpop.f32.mrf.mxu0
        %v4118 = vadd.f32 %v3973, %v4117
        %4119 = vmatmul.bf16.gmra.mxu0 %v4034
        %v4120 = vpop.f32.mrf.mxu0
        %v4121 = vadd.f32 %v3973, %v4120
        %v4122 = vpop.f32.mrf.mxu0
        %v4123 = vadd.f32 %v3973, %v4122
        %4124 = vdwg.mxu0
        %v4125 = vlaneseq
        %v4126 = vand.u32 %v4125, 127
        %vm4127 = vcmp.ge.s32.totalorder %v4126, 45
        %vm4128 = vcmp.lt.s32.totalorder %v4126, 54
        %vm4129 = vmand %vm4127, %vm4128
        %v4130 = vxor.u32 %v4046, 2147483648
        %v4131 = vxor.u32 %v4048, 2147483648
        %v4132 = vxor.u32 %v4051, 2147483648
        %v4133 = vxor.u32 %v4053, 2147483648
        %v4134 = vxor.u32 %v4056, 2147483648
        %v4135 = vxor.u32 %v4058, 2147483648
        %v4136 = vxor.u32 %v4061, 2147483648
        %v4137 = vxor.u32 %v4063, 2147483648
        %v4138 = vxor.u32 %v4066, 2147483648
        %v4139 = vxor.u32 %v4068, 2147483648
        %v4140 = vxor.u32 %v4071, 2147483648
        %v4141 = vxor.u32 %v4073, 2147483648
        %v4142 = vxor.u32 %v4076, 2147483648
        %v4143 = vxor.u32 %v4078, 2147483648
        %v4144 = vxor.u32 %v4081, 2147483648
        %v4145 = vxor.u32 %v4083, 2147483648
        %v4146 = vxor.u32 %v4086, 2147483648
        %v4147 = vxor.u32 %v4088, 2147483648
        %v4148 = vxor.u32 %v4091, 2147483648
        %v4149 = vxor.u32 %v4093, 2147483648
        %v4150 = vxor.u32 %v4096, 2147483648
        %v4151 = vxor.u32 %v4098, 2147483648
        %v4152 = vxor.u32 %v4101, 2147483648
        %v4153 = vxor.u32 %v4103, 2147483648
        %v4154 = vxor.u32 %v4106, 2147483648
        %v4155 = vxor.u32 %v4108, 2147483648
        %v4156 = vxor.u32 %v4111, 2147483648
        %v4157 = vxor.u32 %v4113, 2147483648
        %v4158 = vxor.u32 %v4116, 2147483648
        %v4159 = vxor.u32 %v4118, 2147483648
        %v4160 = vxor.u32 %v4121, 2147483648
        %v4161 = vxor.u32 %v4123, 2147483648
        %v4162 = vmul.f32 %v4130, 1.442695
        %v4163 = vpow.pop %v4162
        %v4164 = vmul.f32 %v4131, 1.442695
        %v4165 = vpow.pop %v4164
        %v4166 = vmul.f32 %v4132, 1.442695
        %v4167 = vpow.pop %v4166
        %v4168 = vmul.f32 %v4133, 1.442695
        %v4169 = vpow.pop %v4168
        %v4170 = vmul.f32 %v4134, 1.442695
        %v4171 = vpow.pop %v4170
        %v4172 = vmul.f32 %v4135, 1.442695
        %v4173 = vpow.pop %v4172
        %v4174 = vmul.f32 %v4136, 1.442695
        %v4175 = vpow.pop %v4174
        %v4176 = vmul.f32 %v4137, 1.442695
        %v4177 = vpow.pop %v4176
        %v4178 = vmul.f32 %v4138, 1.442695
        %v4179 = vpow.pop %v4178
        %v4180 = vmul.f32 %v4139, 1.442695
        %v4181 = vpow.pop %v4180
        %v4182 = vmul.f32 %v4140, 1.442695
        %v4183 = vpow.pop %v4182
        %v4184 = vmul.f32 %v4141, 1.442695
        %v4185 = vpow.pop %v4184
        %v4186 = vmul.f32 %v4142, 1.442695
        %v4187 = vpow.pop %v4186
        %v4188 = vmul.f32 %v4143, 1.442695
        %v4189 = vpow.pop %v4188
        %v4190 = vmul.f32 %v4144, 1.442695
        %v4191 = vpow.pop %v4190
        %v4192 = vmul.f32 %v4145, 1.442695
        %v4193 = vpow.pop %v4192
        %v4194 = vmul.f32 %v4146, 1.442695
        %v4195 = vpow.pop %v4194
        %v4196 = vmul.f32 %v4147, 1.442695
        %v4197 = vpow.pop %v4196
        %v4198 = vmul.f32 %v4148, 1.442695
        %v4199 = vpow.pop %v4198
        %v4200 = vmul.f32 %v4149, 1.442695
        %v4201 = vpow.pop %v4200
        %v4202 = vmul.f32 %v4150, 1.442695
        %v4203 = vpow.pop %v4202
        %v4204 = vmul.f32 %v4151, 1.442695
        %v4205 = vpow.pop %v4204
        %v4206 = vmul.f32 %v4152, 1.442695
        %v4207 = vpow.pop %v4206
        %v4208 = vmul.f32 %v4153, 1.442695
        %v4209 = vpow.pop %v4208
        %v4210 = vmul.f32 %v4154, 1.442695
        %v4211 = vpow.pop %v4210
        %v4212 = vmul.f32 %v4155, 1.442695
        %v4213 = vpow.pop %v4212
        %v4214 = vmul.f32 %v4156, 1.442695
        %v4215 = vpow.pop %v4214
        %v4216 = vmul.f32 %v4157, 1.442695
        %v4217 = vpow.pop %v4216
        %v4218 = vmul.f32 %v4158, 1.442695
        %v4219 = vpow.pop %v4218
        %v4220 = vmul.f32 %v4159, 1.442695
        %v4221 = vpow.pop %v4220
        %v4222 = vmul.f32 %v4160, 1.442695
        %v4223 = vpow.pop %v4222
        %v4224 = vmul.f32 %v4161, 1.442695
        %v4225 = vpow.pop %v4224
        %v4226 = vadd.f32 %v4163, 1.0
        %v4227 = vadd.f32 %v4165, 1.0
        %v4228 = vadd.f32 %v4167, 1.0
        %v4229 = vadd.f32 %v4169, 1.0
        %v4230 = vadd.f32 %v4171, 1.0
        %v4231 = vadd.f32 %v4173, 1.0
        %v4232 = vadd.f32 %v4175, 1.0
        %v4233 = vadd.f32 %v4177, 1.0
        %v4234 = vadd.f32 %v4179, 1.0
        %v4235 = vadd.f32 %v4181, 1.0
        %v4236 = vadd.f32 %v4183, 1.0
        %v4237 = vadd.f32 %v4185, 1.0
        %v4238 = vadd.f32 %v4187, 1.0
        %v4239 = vadd.f32 %v4189, 1.0
        %v4240 = vadd.f32 %v4191, 1.0
        %v4241 = vadd.f32 %v4193, 1.0
        %v4242 = vadd.f32 %v4195, 1.0
        %v4243 = vadd.f32 %v4197, 1.0
        %v4244 = vadd.f32 %v4199, 1.0
        %v4245 = vadd.f32 %v4201, 1.0
        %v4246 = vadd.f32 %v4203, 1.0
        %v4247 = vadd.f32 %v4205, 1.0
        %v4248 = vadd.f32 %v4207, 1.0
        %v4249 = vadd.f32 %v4209, 1.0
        %v4250 = vadd.f32 %v4211, 1.0
        %v4251 = vadd.f32 %v4213, 1.0
        %v4252 = vadd.f32 %v4215, 1.0
        %v4253 = vadd.f32 %v4217, 1.0
        %v4254 = vadd.f32 %v4219, 1.0
        %v4255 = vadd.f32 %v4221, 1.0
        %v4256 = vadd.f32 %v4223, 1.0
        %v4257 = vadd.f32 %v4225, 1.0
        %v4258 = vrcp.pop %v4226
        %v4259 = vmul.f32 %v4226, %v4258
        %v4260 = vsub.f32 1.0, %v4259
        %v4261 = vmul.f32 %v4258, %v4260
        %v4262 = vadd.f32 %v4258, %v4261
        %vm4263 = vweird.f32 %v4226
        %vm4264 = vweird.f32 %v4258
        %vm4265 = vmor %vm4263, %vm4264
        %v4266 = vsel %vm4265, %v4258, %v4262
        %v4267 = vand.u32 2147483647, %v4226
        %vm4268 = vcmp.eq.f32.partialorder %v4267, 8.507059e+37
        %v4269 = vand.u32 %v4226, 2147483648
        %v4270 = vor.u32 1.1754944e-38, %v4269
        %v4271 = vsel %vm4268, %v4270, %v4266
        %v4272 = vmul.f32 1.0, %v4271
        %v4273 = vrcp.pop %v4227
        %v4274 = vmul.f32 %v4227, %v4273
        %v4275 = vsub.f32 1.0, %v4274
        %v4276 = vmul.f32 %v4273, %v4275
        %v4277 = vadd.f32 %v4273, %v4276
        %vm4278 = vweird.f32 %v4227
        %vm4279 = vweird.f32 %v4273
        %vm4280 = vmor %vm4278, %vm4279
        %v4281 = vsel %vm4280, %v4273, %v4277
        %v4282 = vand.u32 2147483647, %v4227
        %vm4283 = vcmp.eq.f32.partialorder %v4282, 8.507059e+37
        %v4284 = vand.u32 %v4227, 2147483648
        %v4285 = vor.u32 1.1754944e-38, %v4284
        %v4286 = vsel %vm4283, %v4285, %v4281
        %v4287 = vmul.f32 1.0, %v4286
        %v4288 = vrcp.pop %v4228
        %v4289 = vmul.f32 %v4228, %v4288
        %v4290 = vsub.f32 1.0, %v4289
        %v4291 = vmul.f32 %v4288, %v4290
        %v4292 = vadd.f32 %v4288, %v4291
        %vm4293 = vweird.f32 %v4228
        %vm4294 = vweird.f32 %v4288
        %vm4295 = vmor %vm4293, %vm4294
        %v4296 = vsel %vm4295, %v4288, %v4292
        %v4297 = vand.u32 2147483647, %v4228
        %vm4298 = vcmp.eq.f32.partialorder %v4297, 8.507059e+37
        %v4299 = vand.u32 %v4228, 2147483648
        %v4300 = vor.u32 1.1754944e-38, %v4299
        %v4301 = vsel %vm4298, %v4300, %v4296
        %v4302 = vmul.f32 1.0, %v4301
        %v4303 = vrcp.pop %v4229
        %v4304 = vmul.f32 %v4229, %v4303
        %v4305 = vsub.f32 1.0, %v4304
        %v4306 = vmul.f32 %v4303, %v4305
        %v4307 = vadd.f32 %v4303, %v4306
        %vm4308 = vweird.f32 %v4229
        %vm4309 = vweird.f32 %v4303
        %vm4310 = vmor %vm4308, %vm4309
        %v4311 = vsel %vm4310, %v4303, %v4307
        %v4312 = vand.u32 2147483647, %v4229
        %vm4313 = vcmp.eq.f32.partialorder %v4312, 8.507059e+37
        %v4314 = vand.u32 %v4229, 2147483648
        %v4315 = vor.u32 1.1754944e-38, %v4314
        %v4316 = vsel %vm4313, %v4315, %v4311
        %v4317 = vmul.f32 1.0, %v4316
        %v4318 = vrcp.pop %v4230
        %v4319 = vmul.f32 %v4230, %v4318
        %v4320 = vsub.f32 1.0, %v4319
        %v4321 = vmul.f32 %v4318, %v4320
        %v4322 = vadd.f32 %v4318, %v4321
        %vm4323 = vweird.f32 %v4230
        %vm4324 = vweird.f32 %v4318
        %vm4325 = vmor %vm4323, %vm4324
        %v4326 = vsel %vm4325, %v4318, %v4322
        %v4327 = vand.u32 2147483647, %v4230
        %vm4328 = vcmp.eq.f32.partialorder %v4327, 8.507059e+37
        %v4329 = vand.u32 %v4230, 2147483648
        %v4330 = vor.u32 1.1754944e-38, %v4329
        %v4331 = vsel %vm4328, %v4330, %v4326
        %v4332 = vmul.f32 1.0, %v4331
        %v4333 = vrcp.pop %v4231
        %v4334 = vmul.f32 %v4231, %v4333
        %v4335 = vsub.f32 1.0, %v4334
        %v4336 = vmul.f32 %v4333, %v4335
        %v4337 = vadd.f32 %v4333, %v4336
        %vm4338 = vweird.f32 %v4231
        %vm4339 = vweird.f32 %v4333
        %vm4340 = vmor %vm4338, %vm4339
        %v4341 = vsel %vm4340, %v4333, %v4337
        %v4342 = vand.u32 2147483647, %v4231
        %vm4343 = vcmp.eq.f32.partialorder %v4342, 8.507059e+37
        %v4344 = vand.u32 %v4231, 2147483648
        %v4345 = vor.u32 1.1754944e-38, %v4344
        %v4346 = vsel %vm4343, %v4345, %v4341
        %v4347 = vmul.f32 1.0, %v4346
        %v4348 = vrcp.pop %v4232
        %v4349 = vmul.f32 %v4232, %v4348
        %v4350 = vsub.f32 1.0, %v4349
        %v4351 = vmul.f32 %v4348, %v4350
        %v4352 = vadd.f32 %v4348, %v4351
        %vm4353 = vweird.f32 %v4232
        %vm4354 = vweird.f32 %v4348
        %vm4355 = vmor %vm4353, %vm4354
        %v4356 = vsel %vm4355, %v4348, %v4352
        %v4357 = vand.u32 2147483647, %v4232
        %vm4358 = vcmp.eq.f32.partialorder %v4357, 8.507059e+37
        %v4359 = vand.u32 %v4232, 2147483648
        %v4360 = vor.u32 1.1754944e-38, %v4359
        %v4361 = vsel %vm4358, %v4360, %v4356
        %v4362 = vmul.f32 1.0, %v4361
        %v4363 = vrcp.pop %v4233
        %v4364 = vmul.f32 %v4233, %v4363
        %v4365 = vsub.f32 1.0, %v4364
        %v4366 = vmul.f32 %v4363, %v4365
        %v4367 = vadd.f32 %v4363, %v4366
        %vm4368 = vweird.f32 %v4233
        %vm4369 = vweird.f32 %v4363
        %vm4370 = vmor %vm4368, %vm4369
        %v4371 = vsel %vm4370, %v4363, %v4367
        %v4372 = vand.u32 2147483647, %v4233
        %vm4373 = vcmp.eq.f32.partialorder %v4372, 8.507059e+37
        %v4374 = vand.u32 %v4233, 2147483648
        %v4375 = vor.u32 1.1754944e-38, %v4374
        %v4376 = vsel %vm4373, %v4375, %v4371
        %v4377 = vmul.f32 1.0, %v4376
        %v4378 = vrcp.pop %v4234
        %v4379 = vmul.f32 %v4234, %v4378
        %v4380 = vsub.f32 1.0, %v4379
        %v4381 = vmul.f32 %v4378, %v4380
        %v4382 = vadd.f32 %v4378, %v4381
        %vm4383 = vweird.f32 %v4234
        %vm4384 = vweird.f32 %v4378
        %vm4385 = vmor %vm4383, %vm4384
        %v4386 = vsel %vm4385, %v4378, %v4382
        %v4387 = vand.u32 2147483647, %v4234
        %vm4388 = vcmp.eq.f32.partialorder %v4387, 8.507059e+37
        %v4389 = vand.u32 %v4234, 2147483648
        %v4390 = vor.u32 1.1754944e-38, %v4389
        %v4391 = vsel %vm4388, %v4390, %v4386
        %v4392 = vmul.f32 1.0, %v4391
        %v4393 = vrcp.pop %v4235
        %v4394 = vmul.f32 %v4235, %v4393
        %v4395 = vsub.f32 1.0, %v4394
        %v4396 = vmul.f32 %v4393, %v4395
        %v4397 = vadd.f32 %v4393, %v4396
        %vm4398 = vweird.f32 %v4235
        %vm4399 = vweird.f32 %v4393
        %vm4400 = vmor %vm4398, %vm4399
        %v4401 = vsel %vm4400, %v4393, %v4397
        %v4402 = vand.u32 2147483647, %v4235
        %vm4403 = vcmp.eq.f32.partialorder %v4402, 8.507059e+37
        %v4404 = vand.u32 %v4235, 2147483648
        %v4405 = vor.u32 1.1754944e-38, %v4404
        %v4406 = vsel %vm4403, %v4405, %v4401
        %v4407 = vmul.f32 1.0, %v4406
        %v4408 = vrcp.pop %v4236
        %v4409 = vmul.f32 %v4236, %v4408
        %v4410 = vsub.f32 1.0, %v4409
        %v4411 = vmul.f32 %v4408, %v4410
        %v4412 = vadd.f32 %v4408, %v4411
        %vm4413 = vweird.f32 %v4236
        %vm4414 = vweird.f32 %v4408
        %vm4415 = vmor %vm4413, %vm4414
        %v4416 = vsel %vm4415, %v4408, %v4412
        %v4417 = vand.u32 2147483647, %v4236
        %vm4418 = vcmp.eq.f32.partialorder %v4417, 8.507059e+37
        %v4419 = vand.u32 %v4236, 2147483648
        %v4420 = vor.u32 1.1754944e-38, %v4419
        %v4421 = vsel %vm4418, %v4420, %v4416
        %v4422 = vmul.f32 1.0, %v4421
        %v4423 = vrcp.pop %v4237
        %v4424 = vmul.f32 %v4237, %v4423
        %v4425 = vsub.f32 1.0, %v4424
        %v4426 = vmul.f32 %v4423, %v4425
        %v4427 = vadd.f32 %v4423, %v4426
        %vm4428 = vweird.f32 %v4237
        %vm4429 = vweird.f32 %v4423
        %vm4430 = vmor %vm4428, %vm4429
        %v4431 = vsel %vm4430, %v4423, %v4427
        %v4432 = vand.u32 2147483647, %v4237
        %vm4433 = vcmp.eq.f32.partialorder %v4432, 8.507059e+37
        %v4434 = vand.u32 %v4237, 2147483648
        %v4435 = vor.u32 1.1754944e-38, %v4434
        %v4436 = vsel %vm4433, %v4435, %v4431
        %v4437 = vmul.f32 1.0, %v4436
        %v4438 = vrcp.pop %v4238
        %v4439 = vmul.f32 %v4238, %v4438
        %v4440 = vsub.f32 1.0, %v4439
        %v4441 = vmul.f32 %v4438, %v4440
        %v4442 = vadd.f32 %v4438, %v4441
        %vm4443 = vweird.f32 %v4238
        %vm4444 = vweird.f32 %v4438
        %vm4445 = vmor %vm4443, %vm4444
        %v4446 = vsel %vm4445, %v4438, %v4442
        %v4447 = vand.u32 2147483647, %v4238
        %vm4448 = vcmp.eq.f32.partialorder %v4447, 8.507059e+37
        %v4449 = vand.u32 %v4238, 2147483648
        %v4450 = vor.u32 1.1754944e-38, %v4449
        %v4451 = vsel %vm4448, %v4450, %v4446
        %v4452 = vmul.f32 1.0, %v4451
        %v4453 = vrcp.pop %v4239
        %v4454 = vmul.f32 %v4239, %v4453
        %v4455 = vsub.f32 1.0, %v4454
        %v4456 = vmul.f32 %v4453, %v4455
        %v4457 = vadd.f32 %v4453, %v4456
        %vm4458 = vweird.f32 %v4239
        %vm4459 = vweird.f32 %v4453
        %vm4460 = vmor %vm4458, %vm4459
        %v4461 = vsel %vm4460, %v4453, %v4457
        %v4462 = vand.u32 2147483647, %v4239
        %vm4463 = vcmp.eq.f32.partialorder %v4462, 8.507059e+37
        %v4464 = vand.u32 %v4239, 2147483648
        %v4465 = vor.u32 1.1754944e-38, %v4464
        %v4466 = vsel %vm4463, %v4465, %v4461
        %v4467 = vmul.f32 1.0, %v4466
        %v4468 = vrcp.pop %v4240
        %v4469 = vmul.f32 %v4240, %v4468
        %v4470 = vsub.f32 1.0, %v4469
        %v4471 = vmul.f32 %v4468, %v4470
        %v4472 = vadd.f32 %v4468, %v4471
        %vm4473 = vweird.f32 %v4240
        %vm4474 = vweird.f32 %v4468
        %vm4475 = vmor %vm4473, %vm4474
        %v4476 = vsel %vm4475, %v4468, %v4472
        %v4477 = vand.u32 2147483647, %v4240
        %vm4478 = vcmp.eq.f32.partialorder %v4477, 8.507059e+37
        %v4479 = vand.u32 %v4240, 2147483648
        %v4480 = vor.u32 1.1754944e-38, %v4479
        %v4481 = vsel %vm4478, %v4480, %v4476
        %v4482 = vmul.f32 1.0, %v4481
        %v4483 = vrcp.pop %v4241
        %v4484 = vmul.f32 %v4241, %v4483
        %v4485 = vsub.f32 1.0, %v4484
        %v4486 = vmul.f32 %v4483, %v4485
        %v4487 = vadd.f32 %v4483, %v4486
        %vm4488 = vweird.f32 %v4241
        %vm4489 = vweird.f32 %v4483
        %vm4490 = vmor %vm4488, %vm4489
        %v4491 = vsel %vm4490, %v4483, %v4487
        %v4492 = vand.u32 2147483647, %v4241
        %vm4493 = vcmp.eq.f32.partialorder %v4492, 8.507059e+37
        %v4494 = vand.u32 %v4241, 2147483648
        %v4495 = vor.u32 1.1754944e-38, %v4494
        %v4496 = vsel %vm4493, %v4495, %v4491
        %v4497 = vmul.f32 1.0, %v4496
        %v4498 = vrcp.pop %v4242
        %v4499 = vmul.f32 %v4242, %v4498
        %v4500 = vsub.f32 1.0, %v4499
        %v4501 = vmul.f32 %v4498, %v4500
        %v4502 = vadd.f32 %v4498, %v4501
        %vm4503 = vweird.f32 %v4242
        %vm4504 = vweird.f32 %v4498
        %vm4505 = vmor %vm4503, %vm4504
        %v4506 = vsel %vm4505, %v4498, %v4502
        %v4507 = vand.u32 2147483647, %v4242
        %vm4508 = vcmp.eq.f32.partialorder %v4507, 8.507059e+37
        %v4509 = vand.u32 %v4242, 2147483648
        %v4510 = vor.u32 1.1754944e-38, %v4509
        %v4511 = vsel %vm4508, %v4510, %v4506
        %v4512 = vmul.f32 1.0, %v4511
        %v4513 = vrcp.pop %v4243
        %v4514 = vmul.f32 %v4243, %v4513
        %v4515 = vsub.f32 1.0, %v4514
        %v4516 = vmul.f32 %v4513, %v4515
        %v4517 = vadd.f32 %v4513, %v4516
        %vm4518 = vweird.f32 %v4243
        %vm4519 = vweird.f32 %v4513
        %vm4520 = vmor %vm4518, %vm4519
        %v4521 = vsel %vm4520, %v4513, %v4517
        %v4522 = vand.u32 2147483647, %v4243
        %vm4523 = vcmp.eq.f32.partialorder %v4522, 8.507059e+37
        %v4524 = vand.u32 %v4243, 2147483648
        %v4525 = vor.u32 1.1754944e-38, %v4524
        %v4526 = vsel %vm4523, %v4525, %v4521
        %v4527 = vmul.f32 1.0, %v4526
        %v4528 = vrcp.pop %v4244
        %v4529 = vmul.f32 %v4244, %v4528
        %v4530 = vsub.f32 1.0, %v4529
        %v4531 = vmul.f32 %v4528, %v4530
        %v4532 = vadd.f32 %v4528, %v4531
        %vm4533 = vweird.f32 %v4244
        %vm4534 = vweird.f32 %v4528
        %vm4535 = vmor %vm4533, %vm4534
        %v4536 = vsel %vm4535, %v4528, %v4532
        %v4537 = vand.u32 2147483647, %v4244
        %vm4538 = vcmp.eq.f32.partialorder %v4537, 8.507059e+37
        %v4539 = vand.u32 %v4244, 2147483648
        %v4540 = vor.u32 1.1754944e-38, %v4539
        %v4541 = vsel %vm4538, %v4540, %v4536
        %v4542 = vmul.f32 1.0, %v4541
        %v4543 = vrcp.pop %v4245
        %v4544 = vmul.f32 %v4245, %v4543
        %v4545 = vsub.f32 1.0, %v4544
        %v4546 = vmul.f32 %v4543, %v4545
        %v4547 = vadd.f32 %v4543, %v4546
        %vm4548 = vweird.f32 %v4245
        %vm4549 = vweird.f32 %v4543
        %vm4550 = vmor %vm4548, %vm4549
        %v4551 = vsel %vm4550, %v4543, %v4547
        %v4552 = vand.u32 2147483647, %v4245
        %vm4553 = vcmp.eq.f32.partialorder %v4552, 8.507059e+37
        %v4554 = vand.u32 %v4245, 2147483648
        %v4555 = vor.u32 1.1754944e-38, %v4554
        %v4556 = vsel %vm4553, %v4555, %v4551
        %v4557 = vmul.f32 1.0, %v4556
        %v4558 = vrcp.pop %v4246
        %v4559 = vmul.f32 %v4246, %v4558
        %v4560 = vsub.f32 1.0, %v4559
        %v4561 = vmul.f32 %v4558, %v4560
        %v4562 = vadd.f32 %v4558, %v4561
        %vm4563 = vweird.f32 %v4246
        %vm4564 = vweird.f32 %v4558
        %vm4565 = vmor %vm4563, %vm4564
        %v4566 = vsel %vm4565, %v4558, %v4562
        %v4567 = vand.u32 2147483647, %v4246
        %vm4568 = vcmp.eq.f32.partialorder %v4567, 8.507059e+37
        %v4569 = vand.u32 %v4246, 2147483648
        %v4570 = vor.u32 1.1754944e-38, %v4569
        %v4571 = vsel %vm4568, %v4570, %v4566
        %v4572 = vmul.f32 1.0, %v4571
        %v4573 = vrcp.pop %v4247
        %v4574 = vmul.f32 %v4247, %v4573
        %v4575 = vsub.f32 1.0, %v4574
        %v4576 = vmul.f32 %v4573, %v4575
        %v4577 = vadd.f32 %v4573, %v4576
        %vm4578 = vweird.f32 %v4247
        %vm4579 = vweird.f32 %v4573
        %vm4580 = vmor %vm4578, %vm4579
        %v4581 = vsel %vm4580, %v4573, %v4577
        %v4582 = vand.u32 2147483647, %v4247
        %vm4583 = vcmp.eq.f32.partialorder %v4582, 8.507059e+37
        %v4584 = vand.u32 %v4247, 2147483648
        %v4585 = vor.u32 1.1754944e-38, %v4584
        %v4586 = vsel %vm4583, %v4585, %v4581
        %v4587 = vmul.f32 1.0, %v4586
        %v4588 = vrcp.pop %v4248
        %v4589 = vmul.f32 %v4248, %v4588
        %v4590 = vsub.f32 1.0, %v4589
        %v4591 = vmul.f32 %v4588, %v4590
        %v4592 = vadd.f32 %v4588, %v4591
        %vm4593 = vweird.f32 %v4248
        %vm4594 = vweird.f32 %v4588
        %vm4595 = vmor %vm4593, %vm4594
        %v4596 = vsel %vm4595, %v4588, %v4592
        %v4597 = vand.u32 2147483647, %v4248
        %vm4598 = vcmp.eq.f32.partialorder %v4597, 8.507059e+37
        %v4599 = vand.u32 %v4248, 2147483648
        %v4600 = vor.u32 1.1754944e-38, %v4599
        %v4601 = vsel %vm4598, %v4600, %v4596
        %v4602 = vmul.f32 1.0, %v4601
        %v4603 = vrcp.pop %v4249
        %v4604 = vmul.f32 %v4249, %v4603
        %v4605 = vsub.f32 1.0, %v4604
        %v4606 = vmul.f32 %v4603, %v4605
        %v4607 = vadd.f32 %v4603, %v4606
        %vm4608 = vweird.f32 %v4249
        %vm4609 = vweird.f32 %v4603
        %vm4610 = vmor %vm4608, %vm4609
        %v4611 = vsel %vm4610, %v4603, %v4607
        %v4612 = vand.u32 2147483647, %v4249
        %vm4613 = vcmp.eq.f32.partialorder %v4612, 8.507059e+37
        %v4614 = vand.u32 %v4249, 2147483648
        %v4615 = vor.u32 1.1754944e-38, %v4614
        %v4616 = vsel %vm4613, %v4615, %v4611
        %v4617 = vmul.f32 1.0, %v4616
        %v4618 = vrcp.pop %v4250
        %v4619 = vmul.f32 %v4250, %v4618
        %v4620 = vsub.f32 1.0, %v4619
        %v4621 = vmul.f32 %v4618, %v4620
        %v4622 = vadd.f32 %v4618, %v4621
        %vm4623 = vweird.f32 %v4250
        %vm4624 = vweird.f32 %v4618
        %vm4625 = vmor %vm4623, %vm4624
        %v4626 = vsel %vm4625, %v4618, %v4622
        %v4627 = vand.u32 2147483647, %v4250
        %vm4628 = vcmp.eq.f32.partialorder %v4627, 8.507059e+37
        %v4629 = vand.u32 %v4250, 2147483648
        %v4630 = vor.u32 1.1754944e-38, %v4629
        %v4631 = vsel %vm4628, %v4630, %v4626
        %v4632 = vmul.f32 1.0, %v4631
        %v4633 = vrcp.pop %v4251
        %v4634 = vmul.f32 %v4251, %v4633
        %v4635 = vsub.f32 1.0, %v4634
        %v4636 = vmul.f32 %v4633, %v4635
        %v4637 = vadd.f32 %v4633, %v4636
        %vm4638 = vweird.f32 %v4251
        %vm4639 = vweird.f32 %v4633
        %vm4640 = vmor %vm4638, %vm4639
        %v4641 = vsel %vm4640, %v4633, %v4637
        %v4642 = vand.u32 2147483647, %v4251
        %vm4643 = vcmp.eq.f32.partialorder %v4642, 8.507059e+37
        %v4644 = vand.u32 %v4251, 2147483648
        %v4645 = vor.u32 1.1754944e-38, %v4644
        %v4646 = vsel %vm4643, %v4645, %v4641
        %v4647 = vmul.f32 1.0, %v4646
        %v4648 = vrcp.pop %v4252
        %v4649 = vmul.f32 %v4252, %v4648
        %v4650 = vsub.f32 1.0, %v4649
        %v4651 = vmul.f32 %v4648, %v4650
        %v4652 = vadd.f32 %v4648, %v4651
        %vm4653 = vweird.f32 %v4252
        %vm4654 = vweird.f32 %v4648
        %vm4655 = vmor %vm4653, %vm4654
        %v4656 = vsel %vm4655, %v4648, %v4652
        %v4657 = vand.u32 2147483647, %v4252
        %vm4658 = vcmp.eq.f32.partialorder %v4657, 8.507059e+37
        %v4659 = vand.u32 %v4252, 2147483648
        %v4660 = vor.u32 1.1754944e-38, %v4659
        %v4661 = vsel %vm4658, %v4660, %v4656
        %v4662 = vmul.f32 1.0, %v4661
        %v4663 = vrcp.pop %v4253
        %v4664 = vmul.f32 %v4253, %v4663
        %v4665 = vsub.f32 1.0, %v4664
        %v4666 = vmul.f32 %v4663, %v4665
        %v4667 = vadd.f32 %v4663, %v4666
        %vm4668 = vweird.f32 %v4253
        %vm4669 = vweird.f32 %v4663
        %vm4670 = vmor %vm4668, %vm4669
        %v4671 = vsel %vm4670, %v4663, %v4667
        %v4672 = vand.u32 2147483647, %v4253
        %vm4673 = vcmp.eq.f32.partialorder %v4672, 8.507059e+37
        %v4674 = vand.u32 %v4253, 2147483648
        %v4675 = vor.u32 1.1754944e-38, %v4674
        %v4676 = vsel %vm4673, %v4675, %v4671
        %v4677 = vmul.f32 1.0, %v4676
        %v4678 = vrcp.pop %v4254
        %v4679 = vmul.f32 %v4254, %v4678
        %v4680 = vsub.f32 1.0, %v4679
        %v4681 = vmul.f32 %v4678, %v4680
        %v4682 = vadd.f32 %v4678, %v4681
        %vm4683 = vweird.f32 %v4254
        %vm4684 = vweird.f32 %v4678
        %vm4685 = vmor %vm4683, %vm4684
        %v4686 = vsel %vm4685, %v4678, %v4682
        %v4687 = vand.u32 2147483647, %v4254
        %vm4688 = vcmp.eq.f32.partialorder %v4687, 8.507059e+37
        %v4689 = vand.u32 %v4254, 2147483648
        %v4690 = vor.u32 1.1754944e-38, %v4689
        %v4691 = vsel %vm4688, %v4690, %v4686
        %v4692 = vmul.f32 1.0, %v4691
        %v4693 = vrcp.pop %v4255
        %v4694 = vmul.f32 %v4255, %v4693
        %v4695 = vsub.f32 1.0, %v4694
        %v4696 = vmul.f32 %v4693, %v4695
        %v4697 = vadd.f32 %v4693, %v4696
        %vm4698 = vweird.f32 %v4255
        %vm4699 = vweird.f32 %v4693
        %vm4700 = vmor %vm4698, %vm4699
        %v4701 = vsel %vm4700, %v4693, %v4697
        %v4702 = vand.u32 2147483647, %v4255
        %vm4703 = vcmp.eq.f32.partialorder %v4702, 8.507059e+37
        %v4704 = vand.u32 %v4255, 2147483648
        %v4705 = vor.u32 1.1754944e-38, %v4704
        %v4706 = vsel %vm4703, %v4705, %v4701
        %v4707 = vmul.f32 1.0, %v4706
        %v4708 = vrcp.pop %v4256
        %v4709 = vmul.f32 %v4256, %v4708
        %v4710 = vsub.f32 1.0, %v4709
        %v4711 = vmul.f32 %v4708, %v4710
        %v4712 = vadd.f32 %v4708, %v4711
        %vm4713 = vweird.f32 %v4256
        %vm4714 = vweird.f32 %v4708
        %vm4715 = vmor %vm4713, %vm4714
        %v4716 = vsel %vm4715, %v4708, %v4712
        %v4717 = vand.u32 2147483647, %v4256
        %vm4718 = vcmp.eq.f32.partialorder %v4717, 8.507059e+37
        %v4719 = vand.u32 %v4256, 2147483648
        %v4720 = vor.u32 1.1754944e-38, %v4719
        %v4721 = vsel %vm4718, %v4720, %v4716
        %v4722 = vmul.f32 1.0, %v4721
        %v4723 = vrcp.pop %v4257
        %v4724 = vmul.f32 %v4257, %v4723
        %v4725 = vsub.f32 1.0, %v4724
        %v4726 = vmul.f32 %v4723, %v4725
        %v4727 = vadd.f32 %v4723, %v4726
        %vm4728 = vweird.f32 %v4257
        %vm4729 = vweird.f32 %v4723
        %vm4730 = vmor %vm4728, %vm4729
        %v4731 = vsel %vm4730, %v4723, %v4727
        %v4732 = vand.u32 2147483647, %v4257
        %vm4733 = vcmp.eq.f32.partialorder %v4732, 8.507059e+37
        %v4734 = vand.u32 %v4257, 2147483648
        %v4735 = vor.u32 1.1754944e-38, %v4734
        %v4736 = vsel %vm4733, %v4735, %v4731
        %v4737 = vmul.f32 1.0, %v4736
        %v4738 = vsel %vm4129, %v4272, %v4046
        %v4739 = vsel %vm4129, %v4287, %v4048
        %v4740 = vsel %vm4129, %v4302, %v4051
        %v4741 = vsel %vm4129, %v4317, %v4053
        %v4742 = vsel %vm4129, %v4332, %v4056
        %v4743 = vsel %vm4129, %v4347, %v4058
        %v4744 = vsel %vm4129, %v4362, %v4061
        %v4745 = vsel %vm4129, %v4377, %v4063
        %v4746 = vsel %vm4129, %v4392, %v4066
        %v4747 = vsel %vm4129, %v4407, %v4068
        %v4748 = vsel %vm4129, %v4422, %v4071
        %v4749 = vsel %vm4129, %v4437, %v4073
        %v4750 = vsel %vm4129, %v4452, %v4076
        %v4751 = vsel %vm4129, %v4467, %v4078
        %v4752 = vsel %vm4129, %v4482, %v4081
        %v4753 = vsel %vm4129, %v4497, %v4083
        %v4754 = vsel %vm4129, %v4512, %v4086
        %v4755 = vsel %vm4129, %v4527, %v4088
        %v4756 = vsel %vm4129, %v4542, %v4091
        %v4757 = vsel %vm4129, %v4557, %v4093
        %v4758 = vsel %vm4129, %v4572, %v4096
        %v4759 = vsel %vm4129, %v4587, %v4098
        %v4760 = vsel %vm4129, %v4602, %v4101
        %v4761 = vsel %vm4129, %v4617, %v4103
        %v4762 = vsel %vm4129, %v4632, %v4106
        %v4763 = vsel %vm4129, %v4647, %v4108
        %v4764 = vsel %vm4129, %v4662, %v4111
        %v4765 = vsel %vm4129, %v4677, %v4113
        %v4766 = vsel %vm4129, %v4692, %v4116
        %v4767 = vsel %vm4129, %v4707, %v4118
        %v4768 = vsel %vm4129, %v4722, %v4121
        %v4769 = vsel %vm4129, %v4737, %v4123
        %4770 = vst [vmem:[%s287] sm:$0xff] %v4738
        %4771 = vst [vmem:[%s287 + $0x8] sm:$0xff] %v4739
        %4772 = vst [vmem:[%s287 + $0x10] sm:$0xff] %v4740
        %4773 = vst [vmem:[%s287 + $0x18] sm:$0xff] %v4741
        %4774 = vst [vmem:[%s287 + $0x20] sm:$0xff] %v4742
        %4775 = vst [vmem:[%s287 + $0x28] sm:$0xff] %v4743
        %4776 = vst [vmem:[%s287 + $0x30] sm:$0xff] %v4744
        %4777 = vst [vmem:[%s287 + $0x38] sm:$0xff] %v4745
        %4778 = vst [vmem:[%s287 + $0x40] sm:$0xff] %v4746
        %4779 = vst [vmem:[%s287 + $0x48] sm:$0xff] %v4747
        %4780 = vst [vmem:[%s287 + $0x50] sm:$0xff] %v4748
        %4781 = vst [vmem:[%s287 + $0x58] sm:$0xff] %v4749
        %4782 = vst [vmem:[%s287 + $0x60] sm:$0xff] %v4750
        %4783 = vst [vmem:[%s287 + $0x68] sm:$0xff] %v4751
        %4784 = vst [vmem:[%s287 + $0x70] sm:$0xff] %v4752
        %4785 = vst [vmem:[%s287 + $0x78] sm:$0xff] %v4753
        %4786 = vst [vmem:[%s287 + $0x80] sm:$0xff] %v4754
        %4787 = vst [vmem:[%s287 + $0x88] sm:$0xff] %v4755
        %4788 = vst [vmem:[%s287 + $0x90] sm:$0xff] %v4756
        %4789 = vst [vmem:[%s287 + $0x98] sm:$0xff] %v4757
        %4790 = vst [vmem:[%s287 + $0xa0] sm:$0xff] %v4758
        %4791 = vst [vmem:[%s287 + $0xa8] sm:$0xff] %v4759
        %4792 = vst [vmem:[%s287 + $0xb0] sm:$0xff] %v4760
        %4793 = vst [vmem:[%s287 + $0xb8] sm:$0xff] %v4761
        %4794 = vst [vmem:[%s287 + $0xc0] sm:$0xff] %v4762
        %4795 = vst [vmem:[%s287 + $0xc8] sm:$0xff] %v4763
        %4796 = vst [vmem:[%s287 + $0xd0] sm:$0xff] %v4764
        %4797 = vst [vmem:[%s287 + $0xd8] sm:$0xff] %v4765
        %4798 = vst [vmem:[%s287 + $0xe0] sm:$0xff] %v4766
        %4799 = vst [vmem:[%s287 + $0xe8] sm:$0xff] %v4767
        %4800 = vst [vmem:[%s287 + $0xf0] sm:$0xff] %v4768
        %4801 = vst [vmem:[%s287 + $0xf8] sm:$0xff] %v4769
        %p4802 = scmp.lt.s32.totalorder %s19, 1
        %s4803 = scalar_select %p4802, %s19, 1
        %s4804 = smul.addr %s4803, 32
        %s4805 = smul.addr %s4804, 8
        %s4806 = scalar_lea.vmem %s5, %s4805
        // Predicated region
        $region57: #{rpn_head_forward.1} parent=39 // pred_check
          %p4807 = pneg %p147
        $region58: #{rpn_head_forward.1} parent=39 // pred_check_branch
          %4809 = sbr.rel (%p4807) target = $region60
        $region59: #{rpn_head_forward.1} parent=39 // pred_region
          _
        $region60: #{rpn_head_forward.1} parent=39 // pred_fallthru
          _
      $region40: #{rpn_head_forward.1} parent=5 // pred_fallthru
        _
      %p4810 = scmp.le.s32.totalorder 2, %s14
      // Predicated region
      $region61: #{rpn_head_forward.1} parent=5 // pred_check
        %p4811 = pneg %p4810
      $region62: #{rpn_head_forward.1} parent=5 // pred_check_branch
        %4813 = sbr.rel (%p4811) target = $region64
      $region63: #{rpn_head_forward.1} parent=5 // pred_region
        %s4814 = ssub.s32 %s14, 2
        // Predicated region
        $region65: #{rpn_head_forward.1} parent=63 // pred_check
          %p4815 = pneg %p153
        $region66: #{rpn_head_forward.1} parent=63 // pred_check_branch
          %4817 = sbr.rel (%p4815) target = $region68
        $region67: #{rpn_head_forward.1} parent=63 // pred_region
          %p4818 = scmp.lt.s32.totalorder %s20, 1
          %s4819 = scalar_select %p4818, %s20, 1
          %s4820 = smul.addr %s4819, 32
          %s4821 = smul.addr %s4820, 8
          %s4822 = scalar_lea.vmem %s5, %s4821
        $region68: #{rpn_head_forward.1} parent=63 // pred_fallthru
          _
      $region64: #{rpn_head_forward.1} parent=5 // pred_fallthru
        _
    $region6: #{rpn_head_forward.1} parent=1 // loop_footer
      %s18 = sadd.s32 1, %s14
    $region7: #{rpn_head_forward.1} parent=1 // loop_footer_branch
      %13 = sbr.rel target = $region3
    $region8: #{rpn_head_forward.1} parent=1 // loop_exit
      _
    %4823 = vsyncpa [#allocation5], 1
    %s4824 = scalar_lea.sflag [#allocation5], 1
    %4825 = vsyncpa %s4824, 1
    %4826 = vsyncpa [#allocation7], 1
    %4827 = vsyncpa [#allocation10], 1

</llo_original>
